<compile_context>
chip_gen: v7x
topology: tpu7x:2x2x1
jax: 0.10.0
libtpu: 0.0.40
codegen_flags: <defaults>
</compile_context>

<pallas_src>
import jax
import jax.numpy as jnp
from jax.experimental import pallas as pl

# ---- small DistilBERT-like config ----
VOCAB, HIDDEN, N_HEADS, FFN, N_LAYERS = 64, 64, 2, 128, 2
HEAD_DIM = HIDDEN // N_HEADS
NUM_LABELS = 5
B, S = 2, 16
M = B * S
MAX_POS = 32
PAD_ID = 0          # corpus.tokenizer.pad_token_id
DUMMY_LABEL = 0     # corpus.label2id['<pad>']
LN_EPS = 1e-12


# ---------------- in-kernel helpers ----------------
def _mm(a, b):
    # bf16 MXU inputs, f32 accumulation.
    return jnp.dot(a.astype(jnp.bfloat16), b.astype(jnp.bfloat16),
                   preferred_element_type=jnp.float32)


def _mm_nt(a, b):
    # a @ b.T without materializing a transpose (contract last dims).
    return jax.lax.dot_general(a.astype(jnp.bfloat16), b.astype(jnp.bfloat16),
                               dimension_numbers=(((1,), (1,)), ((), ())),
                               preferred_element_type=jnp.float32)


def _layer_norm(x, g, b):
    mu = jnp.mean(x, axis=-1, keepdims=True)
    var = jnp.mean(jnp.square(x - mu), axis=-1, keepdims=True)
    return (x - mu) * jax.lax.rsqrt(var + LN_EPS) * g + b


# ---------------- single fused Pallas kernel ----------------
def _bert_fused_kernel(
    x_ids_ref, q_code_ref, k_code_ref, y_lane_ref,
    word_emb_ref, pos_emb_ref, emb_ln_g_ref, emb_ln_b_ref,
    wqkv_ref, bqkv_ref, wo_ref, bo_ref, ln1_g_ref, ln1_b_ref,
    w1_ref, b1_ref, w2_ref, b2_ref, ln2_g_ref, ln2_b_ref,
    clf_w_ref, clf_b_ref,
    loss_ref, pred_ref,
):
    f32 = jnp.float32

    # ---- embeddings: exact f32 one-hot lookup; pos_emb already tiled to (M, H) ----
    x_ids = x_ids_ref[...]                                            # (M, 1) int32
    vocab_iota = jax.lax.broadcasted_iota(jnp.int32, (M, VOCAB), 1)
    word_oh = (vocab_iota == x_ids).astype(f32)                       # (M, VOCAB)
    h = jnp.dot(word_oh, word_emb_ref[...], preferred_element_type=f32)   # (M, H), f32
    h = h + pos_emb_ref[...]
    h = _layer_norm(h, emb_ln_g_ref[...], emb_ln_b_ref[...])

    # ---- fused (M, M) additive attention bias: block-diagonal over sequences + pad mask.
    # q_code: 1-based sequence id per query row; k_code: same per key, but 0 for pad keys.
    # Equality <=> same sequence AND key is a real token — one broadcast compare.
    att_bias = jnp.where(q_code_ref[...] == k_code_ref[...], 0.0, -1e9).astype(f32)

    for li in range(N_LAYERS):
        # ---- self-attention: one fused QKV matmul, static 2-head loop, fused-batch ----
        qkv = _mm(h, wqkv_ref[li]) + bqkv_ref[li]                     # (M, 3H); Q pre-scaled
        attn_out = h + bo_ref[li]                                     # residual + out-proj bias
        for hh in range(N_HEADS):
            c = hh * HEAD_DIM
            q = qkv[:, c:c + HEAD_DIM]                                # (M, dH)
            k = qkv[:, HIDDEN + c:HIDDEN + c + HEAD_DIM]
            v = qkv[:, 2 * HIDDEN + c:2 * HIDDEN + c + HEAD_DIM]
            s = _mm_nt(q, k) + att_bias                               # (M, M), all batches at once
            s = s - jnp.max(s, axis=-1, keepdims=True)
            p = jnp.exp(s)
            p = p * pl.reciprocal(jnp.sum(p, axis=-1, keepdims=True), approx=True)
            ctx = _mm(p, v)                                           # (M, dH)
            # head concat folded into the output projection (Wo stored per head)
            attn_out = attn_out + _mm(ctx, wo_ref[li, hh])            # (M, H)
        h = _layer_norm(attn_out, ln1_g_ref[li], ln1_b_ref[li])

        # ---- FFN ----
        ff = _mm(h, w1_ref[li]) + b1_ref[li]
        # TODO(synk): HF DistilBERT uses exact (erf) GELU; tanh approximation used here.
        ff = jax.nn.gelu(ff, approximate=True)
        ff = _mm(ff, w2_ref[li]) + b2_ref[li]
        h = _layer_norm(ff + h, ln2_g_ref[li], ln2_b_ref[li])

    # ---- classifier + masked CE + argmax, computed lane-major (labels x tokens) ----
    logits_t = _mm_nt(clf_w_ref[...], h) + clf_b_ref[...]             # (NUM_LABELS, M)
    y_lane = y_lane_ref[...]                                          # (1, M) int32
    valid = (y_lane != DUMMY_LABEL).astype(f32)                       # (1, M)
    lbl = jax.lax.broadcasted_iota(jnp.int32, (NUM_LABELS, M), 0)
    mx = jnp.max(logits_t, axis=0, keepdims=True)                     # (1, M)
    lse = jnp.log(jnp.sum(jnp.exp(logits_t - mx), axis=0, keepdims=True)) + mx
    picked = jnp.sum(jnp.where(lbl == y_lane, logits_t, 0.0), axis=0, keepdims=True)
    nll = (lse - picked) * valid                                      # (1, M)
    total = jnp.sum(nll, keepdims=True)                               # (1, 1)
    count = jnp.maximum(jnp.sum(valid, keepdims=True), 1.0)           # NaN guard
    loss_ref[...] = total / count
    # argmax(log_softmax(logits)) == argmax(logits); first index among ties.
    pred_ref[...] = jnp.min(jnp.where(logits_t == mx, lbl.astype(f32), float(NUM_LABELS)),
                            axis=0, keepdims=True).astype(jnp.int32)  # (1, M) lane-dense store


# ---------------- parameters (deterministic synthetic init) ----------------
def init_params(key):
    def dense(k, fan_in, fan_out):
        return jax.random.normal(k, (fan_in, fan_out), jnp.float32) * 0.02

    keys = jax.random.split(key, 3 + N_LAYERS)
    pos_emb = jax.random.normal(keys[1], (MAX_POS, HIDDEN), jnp.float32) * 0.02
    params = {
        "word_emb": jax.random.normal(keys[0], (VOCAB, HIDDEN), jnp.float32) * 0.02,
        "pos_emb": pos_emb,
        # pre-tiled over the batch so the kernel adds it directly to the (M, H) activations
        "pos_emb_tiled": jnp.tile(pos_emb[:S], (B, 1)),
        "emb_ln_g": jnp.ones((1, HIDDEN), jnp.float32),
        "emb_ln_b": jnp.zeros((1, HIDDEN), jnp.float32),
        # classifier stored transposed so logits are produced lane-major in the kernel
        "clf_w": dense(keys[2], HIDDEN, NUM_LABELS).T,                # (NUM_LABELS, H)
        "clf_b": jnp.zeros((NUM_LABELS, 1), jnp.float32),
    }
    scale = 1.0 / (HEAD_DIM ** 0.5)
    wqkv, wo, w1, w2 = [], [], [], []
    for li in range(N_LAYERS):
        lk = jax.random.split(keys[3 + li], 6)
        # 1/sqrt(HEAD_DIM) folded into the Q columns (bq is zero so no bias scaling needed)
        wqkv.append(jnp.concatenate([dense(lk[0], HIDDEN, HIDDEN) * scale,
                                     dense(lk[1], HIDDEN, HIDDEN),
                                     dense(lk[2], HIDDEN, HIDDEN)], axis=1))
        # output projection stored per head (NH, dH, H): head concat becomes a sum of
        # per-head matmuls — no lane concatenates inside the kernel.
        wo.append(dense(lk[3], HIDDEN, HIDDEN).reshape(N_HEADS, HEAD_DIM, HIDDEN))
        w1.append(dense(lk[4], HIDDEN, FFN))
        w2.append(dense(lk[5], FFN, HIDDEN))
    params.update({
        "wqkv": jnp.stack(wqkv),                                      # (L, H, 3H), Q pre-scaled
        "bqkv": jnp.zeros((N_LAYERS, 1, 3 * HIDDEN), jnp.float32),
        "wo": jnp.stack(wo),                                          # (L, NH, dH, H)
        "bo": jnp.zeros((N_LAYERS, 1, HIDDEN), jnp.float32),
        "ln1_g": jnp.ones((N_LAYERS, 1, HIDDEN), jnp.float32),
        "ln1_b": jnp.zeros((N_LAYERS, 1, HIDDEN), jnp.float32),
        "w1": jnp.stack(w1), "b1": jnp.zeros((N_LAYERS, 1, FFN), jnp.float32),
        "w2": jnp.stack(w2), "b2": jnp.zeros((N_LAYERS, 1, HIDDEN), jnp.float32),
        "ln2_g": jnp.ones((N_LAYERS, 1, HIDDEN), jnp.float32),
        "ln2_b": jnp.zeros((N_LAYERS, 1, HIDDEN), jnp.float32),
    })
    return params


# ---------------- forward: one fused pallas_call ----------------
def bert_forward(params, x, y):
    x_ids = x.reshape(M, 1).astype(jnp.int32)
    y_lane = y.reshape(1, M).astype(jnp.int32)
    # mask = (x != pad) exactly as in BERT.forward; encoded together with the sequence id
    # so the kernel builds the fused block-diagonal+padding bias with one compare.
    mask = (x != PAD_ID)
    seq_id = jax.lax.broadcasted_iota(jnp.int32, (B, S), 0) + 1       # 1-based sequence tag
    q_code = seq_id.reshape(M, 1)
    k_code = jnp.where(mask, seq_id, 0).reshape(1, M)
    # No grid, no BlockSpecs: every operand is a whole-array VMEM block
    # (total footprint ~0.4 MiB << any generation's VMEM limit).
    loss, pred = pl.pallas_call(
        _bert_fused_kernel,
        out_shape=(jax.ShapeDtypeStruct((1, 1), jnp.float32),
                   jax.ShapeDtypeStruct((1, M), jnp.int32)),
    )(x_ids, q_code, k_code, y_lane,
      params["word_emb"], params["pos_emb_tiled"],
      params["emb_ln_g"], params["emb_ln_b"],
      params["wqkv"], params["bqkv"], params["wo"], params["bo"],
      params["ln1_g"], params["ln1_b"],
      params["w1"], params["b1"], params["w2"], params["b2"],
      params["ln2_g"], params["ln2_b"],
      params["clf_w"], params["clf_b"])
    # TODO(synk): torch gathers the dynamic subset scores[valid_labels_mask]; with static
    # shapes we compute the equivalent masked-mean CE and return dense per-token preds + mask.
    valid = (y != DUMMY_LABEL)
    return loss[0, 0], pred.reshape(B, S), valid


if __name__ == "__main__":
    key = jax.random.PRNGKey(0)
    pkey, xkey, ykey = jax.random.split(key, 3)
    params = init_params(pkey)

    x = jax.random.randint(xkey, (B, S), 1, VOCAB, dtype=jnp.int32)
    x = x.at[1, 12:].set(PAD_ID)                 # pad tail of second sequence
    y = jax.random.randint(ykey, (B, S), 1, NUM_LABELS, dtype=jnp.int32)
    y = jnp.where(x == PAD_ID, DUMMY_LABEL, y)   # '<pad>' label on padded positions

    loss, pred, valid = jax.jit(bert_forward)(params, x, y)
    jax.block_until_ready((loss, pred, valid))
    print("KERNEL_OK")
</pallas_src>

<mosaic_0001>
module attributes {stable_mosaic.version = 11 : i64} {
  func.func @_bert_fused_kernel(%arg0: memref<32x1xi32, #tpu.memory_space<vmem>>, %arg1: memref<32x1xi32, #tpu.memory_space<vmem>>, %arg2: memref<1x32xi32, #tpu.memory_space<vmem>>, %arg3: memref<1x32xi32, #tpu.memory_space<vmem>>, %arg4: memref<64x64xf32, #tpu.memory_space<vmem>>, %arg5: memref<32x64xf32, #tpu.memory_space<vmem>>, %arg6: memref<1x64xf32, #tpu.memory_space<vmem>>, %arg7: memref<1x64xf32, #tpu.memory_space<vmem>>, %arg8: memref<2x64x192xf32, #tpu.memory_space<vmem>>, %arg9: memref<2x1x192xf32, #tpu.memory_space<vmem>>, %arg10: memref<2x2x32x64xf32, #tpu.memory_space<vmem>>, %arg11: memref<2x1x64xf32, #tpu.memory_space<vmem>>, %arg12: memref<2x1x64xf32, #tpu.memory_space<vmem>>, %arg13: memref<2x1x64xf32, #tpu.memory_space<vmem>>, %arg14: memref<2x64x128xf32, #tpu.memory_space<vmem>>, %arg15: memref<2x1x128xf32, #tpu.memory_space<vmem>>, %arg16: memref<2x128x64xf32, #tpu.memory_space<vmem>>, %arg17: memref<2x1x64xf32, #tpu.memory_space<vmem>>, %arg18: memref<2x1x64xf32, #tpu.memory_space<vmem>>, %arg19: memref<2x1x64xf32, #tpu.memory_space<vmem>>, %arg20: memref<5x64xf32, #tpu.memory_space<vmem>>, %arg21: memref<5x1xf32, #tpu.memory_space<vmem>>, %arg22: memref<1x1xf32, #tpu.memory_space<vmem>>, %arg23: memref<1x32xi32, #tpu.memory_space<vmem>>) attributes {dimension_semantics = [], scalar_prefetch = 0 : i64, scratch_operands = 0 : i64, tpu.core_type = #tpu.core_type<tc>} {
    %c0 = arith.constant 0 : index
    %c0_0 = arith.constant 0 : index
    %0 = vector.load %arg0[%c0, %c0_0] : memref<32x1xi32, #tpu.memory_space<vmem>>, vector<32x1xi32>
    %1 = tpu.iota {dimensions = array<i32: 1>} : vector<32x64xi32>
    %2 = vector.broadcast %0 : vector<32x1xi32> to vector<32x64xi32>
    %3 = arith.cmpi eq, %1, %2 : vector<32x64xi32>
    %4 = arith.extui %3 : vector<32x64xi1> to vector<32x64xi32>
    %5 = arith.sitofp %4 : vector<32x64xi32> to vector<32x64xf32>
    %c0_1 = arith.constant 0 : index
    %c0_2 = arith.constant 0 : index
    %6 = vector.load %arg4[%c0_1, %c0_2] : memref<64x64xf32, #tpu.memory_space<vmem>>, vector<64x64xf32>
    %cst = arith.constant dense<0.000000e+00> : vector<32x64xf32>
    %7 = tpu.matmul %5, %6, %cst {dimension_numbers = #tpu.dot_dimension_numbers<[1], [0], [0], [1], [0, 0, 1, 1], [], []>} : vector<32x64xf32>, vector<64x64xf32>, vector<32x64xf32> -> vector<32x64xf32>
    %c0_3 = arith.constant 0 : index
    %c0_4 = arith.constant 0 : index
    %8 = vector.load %arg5[%c0_3, %c0_4] : memref<32x64xf32, #tpu.memory_space<vmem>>, vector<32x64xf32>
    %9 = arith.addf %7, %8 : vector<32x64xf32>
    %c0_5 = arith.constant 0 : index
    %c0_6 = arith.constant 0 : index
    %10 = vector.load %arg6[%c0_5, %c0_6] : memref<1x64xf32, #tpu.memory_space<vmem>>, vector<1x64xf32>
    %c0_7 = arith.constant 0 : index
    %c0_8 = arith.constant 0 : index
    %11 = vector.load %arg7[%c0_7, %c0_8] : memref<1x64xf32, #tpu.memory_space<vmem>>, vector<1x64xf32>
    %cst_9 = arith.constant dense<0.000000e+00> : vector<32xf32>
    %12 = vector.multi_reduction <add>, %9, %cst_9 [1] : vector<32x64xf32> to vector<32xf32>
    %13 = vector.shape_cast %12 : vector<32xf32> to vector<32x1xf32>
    %cst_10 = arith.constant 6.400000e+01 : f32
    %14 = vector.broadcast %cst_10 : f32 to vector<32x1xf32>
    %15 = arith.divf %13, %14 : vector<32x1xf32>
    %16 = vector.broadcast %15 : vector<32x1xf32> to vector<32x64xf32>
    %17 = arith.subf %9, %16 : vector<32x64xf32>
    %18 = arith.mulf %17, %17 : vector<32x64xf32>
    %cst_11 = arith.constant dense<0.000000e+00> : vector<32xf32>
    %19 = vector.multi_reduction <add>, %18, %cst_11 [1] : vector<32x64xf32> to vector<32xf32>
    %20 = vector.shape_cast %19 : vector<32xf32> to vector<32x1xf32>
    %cst_12 = arith.constant 6.400000e+01 : f32
    %21 = vector.broadcast %cst_12 : f32 to vector<32x1xf32>
    %22 = arith.divf %20, %21 : vector<32x1xf32>
    %23 = vector.broadcast %15 : vector<32x1xf32> to vector<32x64xf32>
    %24 = arith.subf %9, %23 : vector<32x64xf32>
    %cst_13 = arith.constant 9.99999996E-13 : f32
    %25 = vector.broadcast %cst_13 : f32 to vector<32x1xf32>
    %26 = arith.addf %22, %25 : vector<32x1xf32>
    %27 = math.rsqrt %26 : vector<32x1xf32>
    %28 = vector.broadcast %27 : vector<32x1xf32> to vector<32x64xf32>
    %29 = arith.mulf %24, %28 : vector<32x64xf32>
    %30 = vector.broadcast %10 : vector<1x64xf32> to vector<32x64xf32>
    %31 = arith.mulf %29, %30 : vector<32x64xf32>
    %32 = vector.broadcast %11 : vector<1x64xf32> to vector<32x64xf32>
    %33 = arith.addf %31, %32 : vector<32x64xf32>
    %c0_14 = arith.constant 0 : index
    %c0_15 = arith.constant 0 : index
    %34 = vector.load %arg1[%c0_14, %c0_15] : memref<32x1xi32, #tpu.memory_space<vmem>>, vector<32x1xi32>
    %c0_16 = arith.constant 0 : index
    %c0_17 = arith.constant 0 : index
    %35 = vector.load %arg2[%c0_16, %c0_17] : memref<1x32xi32, #tpu.memory_space<vmem>>, vector<1x32xi32>
    %36 = vector.broadcast %34 : vector<32x1xi32> to vector<32x32xi32>
    %37 = vector.broadcast %35 : vector<1x32xi32> to vector<32x32xi32>
    %38 = arith.cmpi eq, %36, %37 : vector<32x32xi32>
    %cst_18 = arith.constant 0.000000e+00 : f32
    %cst_19 = arith.constant -1.000000e+09 : f32
    %39 = vector.broadcast %cst_18 : f32 to vector<32x32xf32>
    %40 = vector.broadcast %cst_19 : f32 to vector<32x32xf32>
    %41 = arith.select %38, %39, %40 : vector<32x32xi1>, vector<32x32xf32>
    %c0_20 = arith.constant 0 : index
    %c0_21 = arith.constant 0 : index
    %c0_22 = arith.constant 0 : index
    %42 = vector.load %arg8[%c0_20, %c0_21, %c0_22] : memref<2x64x192xf32, #tpu.memory_space<vmem>>, vector<1x64x192xf32>
    %43 = vector.shape_cast %42 : vector<1x64x192xf32> to vector<64x192xf32>
    %44 = arith.truncf %33 : vector<32x64xf32> to vector<32x64xbf16>
    %45 = arith.truncf %43 : vector<64x192xf32> to vector<64x192xbf16>
    %cst_23 = arith.constant dense<0.000000e+00> : vector<32x192xf32>
    %46 = tpu.matmul %44, %45, %cst_23 {dimension_numbers = #tpu.dot_dimension_numbers<[1], [0], [0], [1], [0, 0, 1, 1], [], []>} : vector<32x64xbf16>, vector<64x192xbf16>, vector<32x192xf32> -> vector<32x192xf32>
    %c0_24 = arith.constant 0 : index
    %c0_25 = arith.constant 0 : index
    %c0_26 = arith.constant 0 : index
    %47 = vector.load %arg9[%c0_24, %c0_25, %c0_26] : memref<2x1x192xf32, #tpu.memory_space<vmem>>, vector<1x1x192xf32>
    %48 = vector.shape_cast %47 : vector<1x1x192xf32> to vector<1x192xf32>
    %49 = vector.broadcast %48 : vector<1x192xf32> to vector<32x192xf32>
    %50 = arith.addf %46, %49 : vector<32x192xf32>
    %c0_27 = arith.constant 0 : index
    %c0_28 = arith.constant 0 : index
    %c0_29 = arith.constant 0 : index
    %51 = vector.load %arg11[%c0_27, %c0_28, %c0_29] : memref<2x1x64xf32, #tpu.memory_space<vmem>>, vector<1x1x64xf32>
    %52 = vector.shape_cast %51 : vector<1x1x64xf32> to vector<1x64xf32>
    %53 = vector.broadcast %52 : vector<1x64xf32> to vector<32x64xf32>
    %54 = arith.addf %33, %53 : vector<32x64xf32>
    %55 = vector.extract_strided_slice %50 {offsets = [0, 0], sizes = [32, 32], strides = [1, 1]} : vector<32x192xf32> to vector<32x32xf32>
    %56 = vector.extract_strided_slice %50 {offsets = [0, 64], sizes = [32, 32], strides = [1, 1]} : vector<32x192xf32> to vector<32x32xf32>
    %57 = vector.extract_strided_slice %50 {offsets = [0, 128], sizes = [32, 32], strides = [1, 1]} : vector<32x192xf32> to vector<32x32xf32>
    %58 = arith.truncf %55 : vector<32x32xf32> to vector<32x32xbf16>
    %59 = arith.truncf %56 : vector<32x32xf32> to vector<32x32xbf16>
    %cst_30 = arith.constant dense<0.000000e+00> : vector<32x32xf32>
    %60 = tpu.matmul %58, %59, %cst_30 {dimension_numbers = #tpu.dot_dimension_numbers<[1], [1], [0], [0], [0, 0, 1, 0], [], []>} : vector<32x32xbf16>, vector<32x32xbf16>, vector<32x32xf32> -> vector<32x32xf32>
    %61 = arith.addf %60, %41 : vector<32x32xf32>
    %cst_31 = arith.constant dense<0xFF800000> : vector<32xf32>
    %62 = vector.multi_reduction <maximumf>, %61, %cst_31 [1] : vector<32x32xf32> to vector<32xf32>
    %63 = vector.shape_cast %62 : vector<32xf32> to vector<32x1xf32>
    %64 = vector.broadcast %63 : vector<32x1xf32> to vector<32x32xf32>
    %65 = arith.subf %61, %64 : vector<32x32xf32>
    %66 = math.exp %65 : vector<32x32xf32>
    %cst_32 = arith.constant dense<0.000000e+00> : vector<32xf32>
    %67 = vector.multi_reduction <add>, %66, %cst_32 [1] : vector<32x32xf32> to vector<32xf32>
    %68 = vector.shape_cast %67 : vector<32xf32> to vector<32x1xf32>
    %69 = tpu.reciprocal %68 {approx = true} : vector<32x1xf32> -> vector<32x1xf32>
    %70 = vector.broadcast %69 : vector<32x1xf32> to vector<32x32xf32>
    %71 = arith.mulf %66, %70 : vector<32x32xf32>
    %72 = arith.truncf %71 : vector<32x32xf32> to vector<32x32xbf16>
    %73 = arith.truncf %57 : vector<32x32xf32> to vector<32x32xbf16>
    %cst_33 = arith.constant dense<0.000000e+00> : vector<32x32xf32>
    %74 = tpu.matmul %72, %73, %cst_33 {dimension_numbers = #tpu.dot_dimension_numbers<[1], [0], [0], [1], [0, 0, 1, 1], [], []>} : vector<32x32xbf16>, vector<32x32xbf16>, vector<32x32xf32> -> vector<32x32xf32>
    %c0_34 = arith.constant 0 : index
    %c0_35 = arith.constant 0 : index
    %c0_36 = arith.constant 0 : index
    %c0_37 = arith.constant 0 : index
    %75 = vector.load %arg10[%c0_34, %c0_35, %c0_36, %c0_37] : memref<2x2x32x64xf32, #tpu.memory_space<vmem>>, vector<1x1x32x64xf32>
    %76 = vector.shape_cast %75 : vector<1x1x32x64xf32> to vector<32x64xf32>
    %77 = arith.truncf %74 : vector<32x32xf32> to vector<32x32xbf16>
    %78 = arith.truncf %76 : vector<32x64xf32> to vector<32x64xbf16>
    %cst_38 = arith.constant dense<0.000000e+00> : vector<32x64xf32>
    %79 = tpu.matmul %77, %78, %cst_38 {dimension_numbers = #tpu.dot_dimension_numbers<[1], [0], [0], [1], [0, 0, 1, 1], [], []>} : vector<32x32xbf16>, vector<32x64xbf16>, vector<32x64xf32> -> vector<32x64xf32>
    %80 = arith.addf %54, %79 : vector<32x64xf32>
    %81 = vector.extract_strided_slice %50 {offsets = [0, 32], sizes = [32, 32], strides = [1, 1]} : vector<32x192xf32> to vector<32x32xf32>
    %82 = vector.extract_strided_slice %50 {offsets = [0, 96], sizes = [32, 32], strides = [1, 1]} : vector<32x192xf32> to vector<32x32xf32>
    %83 = vector.extract_strided_slice %50 {offsets = [0, 160], sizes = [32, 32], strides = [1, 1]} : vector<32x192xf32> to vector<32x32xf32>
    %84 = arith.truncf %81 : vector<32x32xf32> to vector<32x32xbf16>
    %85 = arith.truncf %82 : vector<32x32xf32> to vector<32x32xbf16>
    %cst_39 = arith.constant dense<0.000000e+00> : vector<32x32xf32>
    %86 = tpu.matmul %84, %85, %cst_39 {dimension_numbers = #tpu.dot_dimension_numbers<[1], [1], [0], [0], [0, 0, 1, 0], [], []>} : vector<32x32xbf16>, vector<32x32xbf16>, vector<32x32xf32> -> vector<32x32xf32>
    %87 = arith.addf %86, %41 : vector<32x32xf32>
    %cst_40 = arith.constant dense<0xFF800000> : vector<32xf32>
    %88 = vector.multi_reduction <maximumf>, %87, %cst_40 [1] : vector<32x32xf32> to vector<32xf32>
    %89 = vector.shape_cast %88 : vector<32xf32> to vector<32x1xf32>
    %90 = vector.broadcast %89 : vector<32x1xf32> to vector<32x32xf32>
    %91 = arith.subf %87, %90 : vector<32x32xf32>
    %92 = math.exp %91 : vector<32x32xf32>
    %cst_41 = arith.constant dense<0.000000e+00> : vector<32xf32>
    %93 = vector.multi_reduction <add>, %92, %cst_41 [1] : vector<32x32xf32> to vector<32xf32>
    %94 = vector.shape_cast %93 : vector<32xf32> to vector<32x1xf32>
    %95 = tpu.reciprocal %94 {approx = true} : vector<32x1xf32> -> vector<32x1xf32>
    %96 = vector.broadcast %95 : vector<32x1xf32> to vector<32x32xf32>
    %97 = arith.mulf %92, %96 : vector<32x32xf32>
    %98 = arith.truncf %97 : vector<32x32xf32> to vector<32x32xbf16>
    %99 = arith.truncf %83 : vector<32x32xf32> to vector<32x32xbf16>
    %cst_42 = arith.constant dense<0.000000e+00> : vector<32x32xf32>
    %100 = tpu.matmul %98, %99, %cst_42 {dimension_numbers = #tpu.dot_dimension_numbers<[1], [0], [0], [1], [0, 0, 1, 1], [], []>} : vector<32x32xbf16>, vector<32x32xbf16>, vector<32x32xf32> -> vector<32x32xf32>
    %c0_43 = arith.constant 0 : index
    %c1 = arith.constant 1 : index
    %c0_44 = arith.constant 0 : index
    %c0_45 = arith.constant 0 : index
    %101 = vector.load %arg10[%c0_43, %c1, %c0_44, %c0_45] : memref<2x2x32x64xf32, #tpu.memory_space<vmem>>, vector<1x1x32x64xf32>
    %102 = vector.shape_cast %101 : vector<1x1x32x64xf32> to vector<32x64xf32>
    %103 = arith.truncf %100 : vector<32x32xf32> to vector<32x32xbf16>
    %104 = arith.truncf %102 : vector<32x64xf32> to vector<32x64xbf16>
    %cst_46 = arith.constant dense<0.000000e+00> : vector<32x64xf32>
    %105 = tpu.matmul %103, %104, %cst_46 {dimension_numbers = #tpu.dot_dimension_numbers<[1], [0], [0], [1], [0, 0, 1, 1], [], []>} : vector<32x32xbf16>, vector<32x64xbf16>, vector<32x64xf32> -> vector<32x64xf32>
    %106 = arith.addf %80, %105 : vector<32x64xf32>
    %c0_47 = arith.constant 0 : index
    %c0_48 = arith.constant 0 : index
    %c0_49 = arith.constant 0 : index
    %107 = vector.load %arg12[%c0_47, %c0_48, %c0_49] : memref<2x1x64xf32, #tpu.memory_space<vmem>>, vector<1x1x64xf32>
    %108 = vector.shape_cast %107 : vector<1x1x64xf32> to vector<1x64xf32>
    %c0_50 = arith.constant 0 : index
    %c0_51 = arith.constant 0 : index
    %c0_52 = arith.constant 0 : index
    %109 = vector.load %arg13[%c0_50, %c0_51, %c0_52] : memref<2x1x64xf32, #tpu.memory_space<vmem>>, vector<1x1x64xf32>
    %110 = vector.shape_cast %109 : vector<1x1x64xf32> to vector<1x64xf32>
    %cst_53 = arith.constant dense<0.000000e+00> : vector<32xf32>
    %111 = vector.multi_reduction <add>, %106, %cst_53 [1] : vector<32x64xf32> to vector<32xf32>
    %112 = vector.shape_cast %111 : vector<32xf32> to vector<32x1xf32>
    %cst_54 = arith.constant 6.400000e+01 : f32
    %113 = vector.broadcast %cst_54 : f32 to vector<32x1xf32>
    %114 = arith.divf %112, %113 : vector<32x1xf32>
    %115 = vector.broadcast %114 : vector<32x1xf32> to vector<32x64xf32>
    %116 = arith.subf %106, %115 : vector<32x64xf32>
    %117 = arith.mulf %116, %116 : vector<32x64xf32>
    %cst_55 = arith.constant dense<0.000000e+00> : vector<32xf32>
    %118 = vector.multi_reduction <add>, %117, %cst_55 [1] : vector<32x64xf32> to vector<32xf32>
    %119 = vector.shape_cast %118 : vector<32xf32> to vector<32x1xf32>
    %cst_56 = arith.constant 6.400000e+01 : f32
    %120 = vector.broadcast %cst_56 : f32 to vector<32x1xf32>
    %121 = arith.divf %119, %120 : vector<32x1xf32>
    %122 = vector.broadcast %114 : vector<32x1xf32> to vector<32x64xf32>
    %123 = arith.subf %106, %122 : vector<32x64xf32>
    %cst_57 = arith.constant 9.99999996E-13 : f32
    %124 = vector.broadcast %cst_57 : f32 to vector<32x1xf32>
    %125 = arith.addf %121, %124 : vector<32x1xf32>
    %126 = math.rsqrt %125 : vector<32x1xf32>
    %127 = vector.broadcast %126 : vector<32x1xf32> to vector<32x64xf32>
    %128 = arith.mulf %123, %127 : vector<32x64xf32>
    %129 = vector.broadcast %108 : vector<1x64xf32> to vector<32x64xf32>
    %130 = arith.mulf %128, %129 : vector<32x64xf32>
    %131 = vector.broadcast %110 : vector<1x64xf32> to vector<32x64xf32>
    %132 = arith.addf %130, %131 : vector<32x64xf32>
    %c0_58 = arith.constant 0 : index
    %c0_59 = arith.constant 0 : index
    %c0_60 = arith.constant 0 : index
    %133 = vector.load %arg14[%c0_58, %c0_59, %c0_60] : memref<2x64x128xf32, #tpu.memory_space<vmem>>, vector<1x64x128xf32>
    %134 = vector.shape_cast %133 : vector<1x64x128xf32> to vector<64x128xf32>
    %135 = arith.truncf %132 : vector<32x64xf32> to vector<32x64xbf16>
    %136 = arith.truncf %134 : vector<64x128xf32> to vector<64x128xbf16>
    %cst_61 = arith.constant dense<0.000000e+00> : vector<32x128xf32>
    %137 = tpu.matmul %135, %136, %cst_61 {dimension_numbers = #tpu.dot_dimension_numbers<[1], [0], [0], [1], [0, 0, 1, 1], [], []>} : vector<32x64xbf16>, vector<64x128xbf16>, vector<32x128xf32> -> vector<32x128xf32>
    %c0_62 = arith.constant 0 : index
    %c0_63 = arith.constant 0 : index
    %c0_64 = arith.constant 0 : index
    %138 = vector.load %arg15[%c0_62, %c0_63, %c0_64] : memref<2x1x128xf32, #tpu.memory_space<vmem>>, vector<1x1x128xf32>
    %139 = vector.shape_cast %138 : vector<1x1x128xf32> to vector<1x128xf32>
    %140 = vector.broadcast %139 : vector<1x128xf32> to vector<32x128xf32>
    %141 = arith.addf %137, %140 : vector<32x128xf32>
    %142 = arith.mulf %141, %141 : vector<32x128xf32>
    %143 = arith.mulf %141, %142 : vector<32x128xf32>
    %cst_65 = arith.constant 4.471500e-02 : f32
    %144 = vector.broadcast %cst_65 : f32 to vector<32x128xf32>
    %145 = arith.mulf %144, %143 : vector<32x128xf32>
    %146 = arith.addf %141, %145 : vector<32x128xf32>
    %cst_66 = arith.constant 0.797884583 : f32
    %147 = vector.broadcast %cst_66 : f32 to vector<32x128xf32>
    %148 = arith.mulf %147, %146 : vector<32x128xf32>
    %149 = math.tanh %148 : vector<32x128xf32>
    %cst_67 = arith.constant 1.000000e+00 : f32
    %150 = vector.broadcast %cst_67 : f32 to vector<32x128xf32>
    %151 = arith.addf %150, %149 : vector<32x128xf32>
    %cst_68 = arith.constant 5.000000e-01 : f32
    %152 = vector.broadcast %cst_68 : f32 to vector<32x128xf32>
    %153 = arith.mulf %152, %151 : vector<32x128xf32>
    %154 = arith.mulf %141, %153 : vector<32x128xf32>
    %c0_69 = arith.constant 0 : index
    %c0_70 = arith.constant 0 : index
    %c0_71 = arith.constant 0 : index
    %155 = vector.load %arg16[%c0_69, %c0_70, %c0_71] : memref<2x128x64xf32, #tpu.memory_space<vmem>>, vector<1x128x64xf32>
    %156 = vector.shape_cast %155 : vector<1x128x64xf32> to vector<128x64xf32>
    %157 = arith.truncf %154 : vector<32x128xf32> to vector<32x128xbf16>
    %158 = arith.truncf %156 : vector<128x64xf32> to vector<128x64xbf16>
    %cst_72 = arith.constant dense<0.000000e+00> : vector<32x64xf32>
    %159 = tpu.matmul %157, %158, %cst_72 {dimension_numbers = #tpu.dot_dimension_numbers<[1], [0], [0], [1], [0, 0, 1, 1], [], []>} : vector<32x128xbf16>, vector<128x64xbf16>, vector<32x64xf32> -> vector<32x64xf32>
    %c0_73 = arith.constant 0 : index
    %c0_74 = arith.constant 0 : index
    %c0_75 = arith.constant 0 : index
    %160 = vector.load %arg17[%c0_73, %c0_74, %c0_75] : memref<2x1x64xf32, #tpu.memory_space<vmem>>, vector<1x1x64xf32>
    %161 = vector.shape_cast %160 : vector<1x1x64xf32> to vector<1x64xf32>
    %162 = vector.broadcast %161 : vector<1x64xf32> to vector<32x64xf32>
    %163 = arith.addf %159, %162 : vector<32x64xf32>
    %164 = arith.addf %163, %132 : vector<32x64xf32>
    %c0_76 = arith.constant 0 : index
    %c0_77 = arith.constant 0 : index
    %c0_78 = arith.constant 0 : index
    %165 = vector.load %arg18[%c0_76, %c0_77, %c0_78] : memref<2x1x64xf32, #tpu.memory_space<vmem>>, vector<1x1x64xf32>
    %166 = vector.shape_cast %165 : vector<1x1x64xf32> to vector<1x64xf32>
    %c0_79 = arith.constant 0 : index
    %c0_80 = arith.constant 0 : index
    %c0_81 = arith.constant 0 : index
    %167 = vector.load %arg19[%c0_79, %c0_80, %c0_81] : memref<2x1x64xf32, #tpu.memory_space<vmem>>, vector<1x1x64xf32>
    %168 = vector.shape_cast %167 : vector<1x1x64xf32> to vector<1x64xf32>
    %cst_82 = arith.constant dense<0.000000e+00> : vector<32xf32>
    %169 = vector.multi_reduction <add>, %164, %cst_82 [1] : vector<32x64xf32> to vector<32xf32>
    %170 = vector.shape_cast %169 : vector<32xf32> to vector<32x1xf32>
    %cst_83 = arith.constant 6.400000e+01 : f32
    %171 = vector.broadcast %cst_83 : f32 to vector<32x1xf32>
    %172 = arith.divf %170, %171 : vector<32x1xf32>
    %173 = vector.broadcast %172 : vector<32x1xf32> to vector<32x64xf32>
    %174 = arith.subf %164, %173 : vector<32x64xf32>
    %175 = arith.mulf %174, %174 : vector<32x64xf32>
    %cst_84 = arith.constant dense<0.000000e+00> : vector<32xf32>
    %176 = vector.multi_reduction <add>, %175, %cst_84 [1] : vector<32x64xf32> to vector<32xf32>
    %177 = vector.shape_cast %176 : vector<32xf32> to vector<32x1xf32>
    %cst_85 = arith.constant 6.400000e+01 : f32
    %178 = vector.broadcast %cst_85 : f32 to vector<32x1xf32>
    %179 = arith.divf %177, %178 : vector<32x1xf32>
    %180 = vector.broadcast %172 : vector<32x1xf32> to vector<32x64xf32>
    %181 = arith.subf %164, %180 : vector<32x64xf32>
    %cst_86 = arith.constant 9.99999996E-13 : f32
    %182 = vector.broadcast %cst_86 : f32 to vector<32x1xf32>
    %183 = arith.addf %179, %182 : vector<32x1xf32>
    %184 = math.rsqrt %183 : vector<32x1xf32>
    %185 = vector.broadcast %184 : vector<32x1xf32> to vector<32x64xf32>
    %186 = arith.mulf %181, %185 : vector<32x64xf32>
    %187 = vector.broadcast %166 : vector<1x64xf32> to vector<32x64xf32>
    %188 = arith.mulf %186, %187 : vector<32x64xf32>
    %189 = vector.broadcast %168 : vector<1x64xf32> to vector<32x64xf32>
    %190 = arith.addf %188, %189 : vector<32x64xf32>
    %c1_87 = arith.constant 1 : index
    %c0_88 = arith.constant 0 : index
    %c0_89 = arith.constant 0 : index
    %191 = vector.load %arg8[%c1_87, %c0_88, %c0_89] : memref<2x64x192xf32, #tpu.memory_space<vmem>>, vector<1x64x192xf32>
    %192 = vector.shape_cast %191 : vector<1x64x192xf32> to vector<64x192xf32>
    %193 = arith.truncf %190 : vector<32x64xf32> to vector<32x64xbf16>
    %194 = arith.truncf %192 : vector<64x192xf32> to vector<64x192xbf16>
    %cst_90 = arith.constant dense<0.000000e+00> : vector<32x192xf32>
    %195 = tpu.matmul %193, %194, %cst_90 {dimension_numbers = #tpu.dot_dimension_numbers<[1], [0], [0], [1], [0, 0, 1, 1], [], []>} : vector<32x64xbf16>, vector<64x192xbf16>, vector<32x192xf32> -> vector<32x192xf32>
    %c1_91 = arith.constant 1 : index
    %c0_92 = arith.constant 0 : index
    %c0_93 = arith.constant 0 : index
    %196 = vector.load %arg9[%c1_91, %c0_92, %c0_93] : memref<2x1x192xf32, #tpu.memory_space<vmem>>, vector<1x1x192xf32>
    %197 = vector.shape_cast %196 : vector<1x1x192xf32> to vector<1x192xf32>
    %198 = vector.broadcast %197 : vector<1x192xf32> to vector<32x192xf32>
    %199 = arith.addf %195, %198 : vector<32x192xf32>
    %c1_94 = arith.constant 1 : index
    %c0_95 = arith.constant 0 : index
    %c0_96 = arith.constant 0 : index
    %200 = vector.load %arg11[%c1_94, %c0_95, %c0_96] : memref<2x1x64xf32, #tpu.memory_space<vmem>>, vector<1x1x64xf32>
    %201 = vector.shape_cast %200 : vector<1x1x64xf32> to vector<1x64xf32>
    %202 = vector.broadcast %201 : vector<1x64xf32> to vector<32x64xf32>
    %203 = arith.addf %190, %202 : vector<32x64xf32>
    %204 = vector.extract_strided_slice %199 {offsets = [0, 0], sizes = [32, 32], strides = [1, 1]} : vector<32x192xf32> to vector<32x32xf32>
    %205 = vector.extract_strided_slice %199 {offsets = [0, 64], sizes = [32, 32], strides = [1, 1]} : vector<32x192xf32> to vector<32x32xf32>
    %206 = vector.extract_strided_slice %199 {offsets = [0, 128], sizes = [32, 32], strides = [1, 1]} : vector<32x192xf32> to vector<32x32xf32>
    %207 = arith.truncf %204 : vector<32x32xf32> to vector<32x32xbf16>
    %208 = arith.truncf %205 : vector<32x32xf32> to vector<32x32xbf16>
    %cst_97 = arith.constant dense<0.000000e+00> : vector<32x32xf32>
    %209 = tpu.matmul %207, %208, %cst_97 {dimension_numbers = #tpu.dot_dimension_numbers<[1], [1], [0], [0], [0, 0, 1, 0], [], []>} : vector<32x32xbf16>, vector<32x32xbf16>, vector<32x32xf32> -> vector<32x32xf32>
    %210 = arith.addf %209, %41 : vector<32x32xf32>
    %cst_98 = arith.constant dense<0xFF800000> : vector<32xf32>
    %211 = vector.multi_reduction <maximumf>, %210, %cst_98 [1] : vector<32x32xf32> to vector<32xf32>
    %212 = vector.shape_cast %211 : vector<32xf32> to vector<32x1xf32>
    %213 = vector.broadcast %212 : vector<32x1xf32> to vector<32x32xf32>
    %214 = arith.subf %210, %213 : vector<32x32xf32>
    %215 = math.exp %214 : vector<32x32xf32>
    %cst_99 = arith.constant dense<0.000000e+00> : vector<32xf32>
    %216 = vector.multi_reduction <add>, %215, %cst_99 [1] : vector<32x32xf32> to vector<32xf32>
    %217 = vector.shape_cast %216 : vector<32xf32> to vector<32x1xf32>
    %218 = tpu.reciprocal %217 {approx = true} : vector<32x1xf32> -> vector<32x1xf32>
    %219 = vector.broadcast %218 : vector<32x1xf32> to vector<32x32xf32>
    %220 = arith.mulf %215, %219 : vector<32x32xf32>
    %221 = arith.truncf %220 : vector<32x32xf32> to vector<32x32xbf16>
    %222 = arith.truncf %206 : vector<32x32xf32> to vector<32x32xbf16>
    %cst_100 = arith.constant dense<0.000000e+00> : vector<32x32xf32>
    %223 = tpu.matmul %221, %222, %cst_100 {dimension_numbers = #tpu.dot_dimension_numbers<[1], [0], [0], [1], [0, 0, 1, 1], [], []>} : vector<32x32xbf16>, vector<32x32xbf16>, vector<32x32xf32> -> vector<32x32xf32>
    %c1_101 = arith.constant 1 : index
    %c0_102 = arith.constant 0 : index
    %c0_103 = arith.constant 0 : index
    %c0_104 = arith.constant 0 : index
    %224 = vector.load %arg10[%c1_101, %c0_102, %c0_103, %c0_104] : memref<2x2x32x64xf32, #tpu.memory_space<vmem>>, vector<1x1x32x64xf32>
    %225 = vector.shape_cast %224 : vector<1x1x32x64xf32> to vector<32x64xf32>
    %226 = arith.truncf %223 : vector<32x32xf32> to vector<32x32xbf16>
    %227 = arith.truncf %225 : vector<32x64xf32> to vector<32x64xbf16>
    %cst_105 = arith.constant dense<0.000000e+00> : vector<32x64xf32>
    %228 = tpu.matmul %226, %227, %cst_105 {dimension_numbers = #tpu.dot_dimension_numbers<[1], [0], [0], [1], [0, 0, 1, 1], [], []>} : vector<32x32xbf16>, vector<32x64xbf16>, vector<32x64xf32> -> vector<32x64xf32>
    %229 = arith.addf %203, %228 : vector<32x64xf32>
    %230 = vector.extract_strided_slice %199 {offsets = [0, 32], sizes = [32, 32], strides = [1, 1]} : vector<32x192xf32> to vector<32x32xf32>
    %231 = vector.extract_strided_slice %199 {offsets = [0, 96], sizes = [32, 32], strides = [1, 1]} : vector<32x192xf32> to vector<32x32xf32>
    %232 = vector.extract_strided_slice %199 {offsets = [0, 160], sizes = [32, 32], strides = [1, 1]} : vector<32x192xf32> to vector<32x32xf32>
    %233 = arith.truncf %230 : vector<32x32xf32> to vector<32x32xbf16>
    %234 = arith.truncf %231 : vector<32x32xf32> to vector<32x32xbf16>
    %cst_106 = arith.constant dense<0.000000e+00> : vector<32x32xf32>
    %235 = tpu.matmul %233, %234, %cst_106 {dimension_numbers = #tpu.dot_dimension_numbers<[1], [1], [0], [0], [0, 0, 1, 0], [], []>} : vector<32x32xbf16>, vector<32x32xbf16>, vector<32x32xf32> -> vector<32x32xf32>
    %236 = arith.addf %235, %41 : vector<32x32xf32>
    %cst_107 = arith.constant dense<0xFF800000> : vector<32xf32>
    %237 = vector.multi_reduction <maximumf>, %236, %cst_107 [1] : vector<32x32xf32> to vector<32xf32>
    %238 = vector.shape_cast %237 : vector<32xf32> to vector<32x1xf32>
    %239 = vector.broadcast %238 : vector<32x1xf32> to vector<32x32xf32>
    %240 = arith.subf %236, %239 : vector<32x32xf32>
    %241 = math.exp %240 : vector<32x32xf32>
    %cst_108 = arith.constant dense<0.000000e+00> : vector<32xf32>
    %242 = vector.multi_reduction <add>, %241, %cst_108 [1] : vector<32x32xf32> to vector<32xf32>
    %243 = vector.shape_cast %242 : vector<32xf32> to vector<32x1xf32>
    %244 = tpu.reciprocal %243 {approx = true} : vector<32x1xf32> -> vector<32x1xf32>
    %245 = vector.broadcast %244 : vector<32x1xf32> to vector<32x32xf32>
    %246 = arith.mulf %241, %245 : vector<32x32xf32>
    %247 = arith.truncf %246 : vector<32x32xf32> to vector<32x32xbf16>
    %248 = arith.truncf %232 : vector<32x32xf32> to vector<32x32xbf16>
    %cst_109 = arith.constant dense<0.000000e+00> : vector<32x32xf32>
    %249 = tpu.matmul %247, %248, %cst_109 {dimension_numbers = #tpu.dot_dimension_numbers<[1], [0], [0], [1], [0, 0, 1, 1], [], []>} : vector<32x32xbf16>, vector<32x32xbf16>, vector<32x32xf32> -> vector<32x32xf32>
    %c1_110 = arith.constant 1 : index
    %c1_111 = arith.constant 1 : index
    %c0_112 = arith.constant 0 : index
    %c0_113 = arith.constant 0 : index
    %250 = vector.load %arg10[%c1_110, %c1_111, %c0_112, %c0_113] : memref<2x2x32x64xf32, #tpu.memory_space<vmem>>, vector<1x1x32x64xf32>
    %251 = vector.shape_cast %250 : vector<1x1x32x64xf32> to vector<32x64xf32>
    %252 = arith.truncf %249 : vector<32x32xf32> to vector<32x32xbf16>
    %253 = arith.truncf %251 : vector<32x64xf32> to vector<32x64xbf16>
    %cst_114 = arith.constant dense<0.000000e+00> : vector<32x64xf32>
    %254 = tpu.matmul %252, %253, %cst_114 {dimension_numbers = #tpu.dot_dimension_numbers<[1], [0], [0], [1], [0, 0, 1, 1], [], []>} : vector<32x32xbf16>, vector<32x64xbf16>, vector<32x64xf32> -> vector<32x64xf32>
    %255 = arith.addf %229, %254 : vector<32x64xf32>
    %c1_115 = arith.constant 1 : index
    %c0_116 = arith.constant 0 : index
    %c0_117 = arith.constant 0 : index
    %256 = vector.load %arg12[%c1_115, %c0_116, %c0_117] : memref<2x1x64xf32, #tpu.memory_space<vmem>>, vector<1x1x64xf32>
    %257 = vector.shape_cast %256 : vector<1x1x64xf32> to vector<1x64xf32>
    %c1_118 = arith.constant 1 : index
    %c0_119 = arith.constant 0 : index
    %c0_120 = arith.constant 0 : index
    %258 = vector.load %arg13[%c1_118, %c0_119, %c0_120] : memref<2x1x64xf32, #tpu.memory_space<vmem>>, vector<1x1x64xf32>
    %259 = vector.shape_cast %258 : vector<1x1x64xf32> to vector<1x64xf32>
    %cst_121 = arith.constant dense<0.000000e+00> : vector<32xf32>
    %260 = vector.multi_reduction <add>, %255, %cst_121 [1] : vector<32x64xf32> to vector<32xf32>
    %261 = vector.shape_cast %260 : vector<32xf32> to vector<32x1xf32>
    %cst_122 = arith.constant 6.400000e+01 : f32
    %262 = vector.broadcast %cst_122 : f32 to vector<32x1xf32>
    %263 = arith.divf %261, %262 : vector<32x1xf32>
    %264 = vector.broadcast %263 : vector<32x1xf32> to vector<32x64xf32>
    %265 = arith.subf %255, %264 : vector<32x64xf32>
    %266 = arith.mulf %265, %265 : vector<32x64xf32>
    %cst_123 = arith.constant dense<0.000000e+00> : vector<32xf32>
    %267 = vector.multi_reduction <add>, %266, %cst_123 [1] : vector<32x64xf32> to vector<32xf32>
    %268 = vector.shape_cast %267 : vector<32xf32> to vector<32x1xf32>
    %cst_124 = arith.constant 6.400000e+01 : f32
    %269 = vector.broadcast %cst_124 : f32 to vector<32x1xf32>
    %270 = arith.divf %268, %269 : vector<32x1xf32>
    %271 = vector.broadcast %263 : vector<32x1xf32> to vector<32x64xf32>
    %272 = arith.subf %255, %271 : vector<32x64xf32>
    %cst_125 = arith.constant 9.99999996E-13 : f32
    %273 = vector.broadcast %cst_125 : f32 to vector<32x1xf32>
    %274 = arith.addf %270, %273 : vector<32x1xf32>
    %275 = math.rsqrt %274 : vector<32x1xf32>
    %276 = vector.broadcast %275 : vector<32x1xf32> to vector<32x64xf32>
    %277 = arith.mulf %272, %276 : vector<32x64xf32>
    %278 = vector.broadcast %257 : vector<1x64xf32> to vector<32x64xf32>
    %279 = arith.mulf %277, %278 : vector<32x64xf32>
    %280 = vector.broadcast %259 : vector<1x64xf32> to vector<32x64xf32>
    %281 = arith.addf %279, %280 : vector<32x64xf32>
    %c1_126 = arith.constant 1 : index
    %c0_127 = arith.constant 0 : index
    %c0_128 = arith.constant 0 : index
    %282 = vector.load %arg14[%c1_126, %c0_127, %c0_128] : memref<2x64x128xf32, #tpu.memory_space<vmem>>, vector<1x64x128xf32>
    %283 = vector.shape_cast %282 : vector<1x64x128xf32> to vector<64x128xf32>
    %284 = arith.truncf %281 : vector<32x64xf32> to vector<32x64xbf16>
    %285 = arith.truncf %283 : vector<64x128xf32> to vector<64x128xbf16>
    %cst_129 = arith.constant dense<0.000000e+00> : vector<32x128xf32>
    %286 = tpu.matmul %284, %285, %cst_129 {dimension_numbers = #tpu.dot_dimension_numbers<[1], [0], [0], [1], [0, 0, 1, 1], [], []>} : vector<32x64xbf16>, vector<64x128xbf16>, vector<32x128xf32> -> vector<32x128xf32>
    %c1_130 = arith.constant 1 : index
    %c0_131 = arith.constant 0 : index
    %c0_132 = arith.constant 0 : index
    %287 = vector.load %arg15[%c1_130, %c0_131, %c0_132] : memref<2x1x128xf32, #tpu.memory_space<vmem>>, vector<1x1x128xf32>
    %288 = vector.shape_cast %287 : vector<1x1x128xf32> to vector<1x128xf32>
    %289 = vector.broadcast %288 : vector<1x128xf32> to vector<32x128xf32>
    %290 = arith.addf %286, %289 : vector<32x128xf32>
    %291 = arith.mulf %290, %290 : vector<32x128xf32>
    %292 = arith.mulf %290, %291 : vector<32x128xf32>
    %cst_133 = arith.constant 4.471500e-02 : f32
    %293 = vector.broadcast %cst_133 : f32 to vector<32x128xf32>
    %294 = arith.mulf %293, %292 : vector<32x128xf32>
    %295 = arith.addf %290, %294 : vector<32x128xf32>
    %cst_134 = arith.constant 0.797884583 : f32
    %296 = vector.broadcast %cst_134 : f32 to vector<32x128xf32>
    %297 = arith.mulf %296, %295 : vector<32x128xf32>
    %298 = math.tanh %297 : vector<32x128xf32>
    %cst_135 = arith.constant 1.000000e+00 : f32
    %299 = vector.broadcast %cst_135 : f32 to vector<32x128xf32>
    %300 = arith.addf %299, %298 : vector<32x128xf32>
    %cst_136 = arith.constant 5.000000e-01 : f32
    %301 = vector.broadcast %cst_136 : f32 to vector<32x128xf32>
    %302 = arith.mulf %301, %300 : vector<32x128xf32>
    %303 = arith.mulf %290, %302 : vector<32x128xf32>
    %c1_137 = arith.constant 1 : index
    %c0_138 = arith.constant 0 : index
    %c0_139 = arith.constant 0 : index
    %304 = vector.load %arg16[%c1_137, %c0_138, %c0_139] : memref<2x128x64xf32, #tpu.memory_space<vmem>>, vector<1x128x64xf32>
    %305 = vector.shape_cast %304 : vector<1x128x64xf32> to vector<128x64xf32>
    %306 = arith.truncf %303 : vector<32x128xf32> to vector<32x128xbf16>
    %307 = arith.truncf %305 : vector<128x64xf32> to vector<128x64xbf16>
    %cst_140 = arith.constant dense<0.000000e+00> : vector<32x64xf32>
    %308 = tpu.matmul %306, %307, %cst_140 {dimension_numbers = #tpu.dot_dimension_numbers<[1], [0], [0], [1], [0, 0, 1, 1], [], []>} : vector<32x128xbf16>, vector<128x64xbf16>, vector<32x64xf32> -> vector<32x64xf32>
    %c1_141 = arith.constant 1 : index
    %c0_142 = arith.constant 0 : index
    %c0_143 = arith.constant 0 : index
    %309 = vector.load %arg17[%c1_141, %c0_142, %c0_143] : memref<2x1x64xf32, #tpu.memory_space<vmem>>, vector<1x1x64xf32>
    %310 = vector.shape_cast %309 : vector<1x1x64xf32> to vector<1x64xf32>
    %311 = vector.broadcast %310 : vector<1x64xf32> to vector<32x64xf32>
    %312 = arith.addf %308, %311 : vector<32x64xf32>
    %313 = arith.addf %312, %281 : vector<32x64xf32>
    %c1_144 = arith.constant 1 : index
    %c0_145 = arith.constant 0 : index
    %c0_146 = arith.constant 0 : index
    %314 = vector.load %arg18[%c1_144, %c0_145, %c0_146] : memref<2x1x64xf32, #tpu.memory_space<vmem>>, vector<1x1x64xf32>
    %315 = vector.shape_cast %314 : vector<1x1x64xf32> to vector<1x64xf32>
    %c1_147 = arith.constant 1 : index
    %c0_148 = arith.constant 0 : index
    %c0_149 = arith.constant 0 : index
    %316 = vector.load %arg19[%c1_147, %c0_148, %c0_149] : memref<2x1x64xf32, #tpu.memory_space<vmem>>, vector<1x1x64xf32>
    %317 = vector.shape_cast %316 : vector<1x1x64xf32> to vector<1x64xf32>
    %cst_150 = arith.constant dense<0.000000e+00> : vector<32xf32>
    %318 = vector.multi_reduction <add>, %313, %cst_150 [1] : vector<32x64xf32> to vector<32xf32>
    %319 = vector.shape_cast %318 : vector<32xf32> to vector<32x1xf32>
    %cst_151 = arith.constant 6.400000e+01 : f32
    %320 = vector.broadcast %cst_151 : f32 to vector<32x1xf32>
    %321 = arith.divf %319, %320 : vector<32x1xf32>
    %322 = vector.broadcast %321 : vector<32x1xf32> to vector<32x64xf32>
    %323 = arith.subf %313, %322 : vector<32x64xf32>
    %324 = arith.mulf %323, %323 : vector<32x64xf32>
    %cst_152 = arith.constant dense<0.000000e+00> : vector<32xf32>
    %325 = vector.multi_reduction <add>, %324, %cst_152 [1] : vector<32x64xf32> to vector<32xf32>
    %326 = vector.shape_cast %325 : vector<32xf32> to vector<32x1xf32>
    %cst_153 = arith.constant 6.400000e+01 : f32
    %327 = vector.broadcast %cst_153 : f32 to vector<32x1xf32>
    %328 = arith.divf %326, %327 : vector<32x1xf32>
    %329 = vector.broadcast %321 : vector<32x1xf32> to vector<32x64xf32>
    %330 = arith.subf %313, %329 : vector<32x64xf32>
    %cst_154 = arith.constant 9.99999996E-13 : f32
    %331 = vector.broadcast %cst_154 : f32 to vector<32x1xf32>
    %332 = arith.addf %328, %331 : vector<32x1xf32>
    %333 = math.rsqrt %332 : vector<32x1xf32>
    %334 = vector.broadcast %333 : vector<32x1xf32> to vector<32x64xf32>
    %335 = arith.mulf %330, %334 : vector<32x64xf32>
    %336 = vector.broadcast %315 : vector<1x64xf32> to vector<32x64xf32>
    %337 = arith.mulf %335, %336 : vector<32x64xf32>
    %338 = vector.broadcast %317 : vector<1x64xf32> to vector<32x64xf32>
    %339 = arith.addf %337, %338 : vector<32x64xf32>
    %c0_155 = arith.constant 0 : index
    %c0_156 = arith.constant 0 : index
    %340 = vector.load %arg20[%c0_155, %c0_156] : memref<5x64xf32, #tpu.memory_space<vmem>>, vector<5x64xf32>
    %341 = arith.truncf %340 : vector<5x64xf32> to vector<5x64xbf16>
    %342 = arith.truncf %339 : vector<32x64xf32> to vector<32x64xbf16>
    %cst_157 = arith.constant dense<0.000000e+00> : vector<5x32xf32>
    %343 = tpu.matmul %341, %342, %cst_157 {dimension_numbers = #tpu.dot_dimension_numbers<[1], [1], [0], [0], [0, 0, 1, 0], [], []>} : vector<5x64xbf16>, vector<32x64xbf16>, vector<5x32xf32> -> vector<5x32xf32>
    %c0_158 = arith.constant 0 : index
    %c0_159 = arith.constant 0 : index
    %344 = vector.load %arg21[%c0_158, %c0_159] : memref<5x1xf32, #tpu.memory_space<vmem>>, vector<5x1xf32>
    %345 = vector.broadcast %344 : vector<5x1xf32> to vector<5x32xf32>
    %346 = arith.addf %343, %345 : vector<5x32xf32>
    %c0_160 = arith.constant 0 : index
    %c0_161 = arith.constant 0 : index
    %347 = vector.load %arg3[%c0_160, %c0_161] : memref<1x32xi32, #tpu.memory_space<vmem>>, vector<1x32xi32>
    %c0_i32 = arith.constant 0 : i32
    %348 = vector.broadcast %c0_i32 : i32 to vector<1x32xi32>
    %349 = arith.cmpi ne, %347, %348 : vector<1x32xi32>
    %350 = arith.extui %349 : vector<1x32xi1> to vector<1x32xi32>
    %351 = arith.sitofp %350 : vector<1x32xi32> to vector<1x32xf32>
    %352 = tpu.iota {dimensions = array<i32: 0>} : vector<5x32xi32>
    %cst_162 = arith.constant dense<0xFF800000> : vector<32xf32>
    %353 = vector.multi_reduction <maximumf>, %346, %cst_162 [0] : vector<5x32xf32> to vector<32xf32>
    %354 = vector.shape_cast %353 : vector<32xf32> to vector<1x32xf32>
    %355 = vector.broadcast %354 : vector<1x32xf32> to vector<5x32xf32>
    %356 = arith.subf %346, %355 : vector<5x32xf32>
    %357 = math.exp %356 : vector<5x32xf32>
    %cst_163 = arith.constant dense<0.000000e+00> : vector<32xf32>
    %358 = vector.multi_reduction <add>, %357, %cst_163 [0] : vector<5x32xf32> to vector<32xf32>
    %359 = vector.shape_cast %358 : vector<32xf32> to vector<1x32xf32>
    %360 = math.log %359 : vector<1x32xf32>
    %361 = arith.addf %360, %354 : vector<1x32xf32>
    %362 = vector.broadcast %347 : vector<1x32xi32> to vector<5x32xi32>
    %363 = arith.cmpi eq, %352, %362 : vector<5x32xi32>
    %cst_164 = arith.constant 0.000000e+00 : f32
    %364 = vector.broadcast %cst_164 : f32 to vector<5x32xf32>
    %365 = arith.select %363, %346, %364 : vector<5x32xi1>, vector<5x32xf32>
    %cst_165 = arith.constant dense<0.000000e+00> : vector<32xf32>
    %366 = vector.multi_reduction <add>, %365, %cst_165 [0] : vector<5x32xf32> to vector<32xf32>
    %367 = vector.shape_cast %366 : vector<32xf32> to vector<1x32xf32>
    %368 = arith.subf %361, %367 : vector<1x32xf32>
    %369 = arith.mulf %368, %351 : vector<1x32xf32>
    %370 = vector.shape_cast %369 : vector<1x32xf32> to vector<1x1x32xf32>
    %cst_166 = arith.constant dense<0.000000e+00> : vector<1xf32>
    %371 = vector.multi_reduction <add>, %370, %cst_166 [1, 2] : vector<1x1x32xf32> to vector<1xf32>
    %372 = vector.shape_cast %371 : vector<1xf32> to vector<1x1x1xf32>
    %373 = vector.extract %372[0, 0, 0] : f32 from vector<1x1x1xf32>
    %374 = vector.broadcast %373 : f32 to vector<1x1xf32>
    %375 = vector.shape_cast %351 : vector<1x32xf32> to vector<1x1x32xf32>
    %cst_167 = arith.constant dense<0.000000e+00> : vector<1xf32>
    %376 = vector.multi_reduction <add>, %375, %cst_167 [1, 2] : vector<1x1x32xf32> to vector<1xf32>
    %377 = vector.shape_cast %376 : vector<1xf32> to vector<1x1x1xf32>
    %378 = vector.extract %377[0, 0, 0] : f32 from vector<1x1x1xf32>
    %379 = vector.broadcast %378 : f32 to vector<1x1xf32>
    %cst_168 = arith.constant 1.000000e+00 : f32
    %380 = vector.broadcast %cst_168 : f32 to vector<1x1xf32>
    %381 = arith.maximumf %379, %380 : vector<1x1xf32>
    %382 = arith.divf %374, %381 : vector<1x1xf32>
    %c0_169 = arith.constant 0 : index
    %c0_170 = arith.constant 0 : index
    %383 = vector.load %arg22[%c0_169, %c0_170] : memref<1x1xf32, #tpu.memory_space<vmem>>, vector<1x1xf32>
    tpu.vector_store %arg22[%c0_169, %c0_170], %382 {strides = array<i32>} : memref<1x1xf32, #tpu.memory_space<vmem>>, vector<1x1xf32>,
    %384 = vector.broadcast %354 : vector<1x32xf32> to vector<5x32xf32>
    %385 = arith.cmpf oeq, %346, %384 : vector<5x32xf32>
    %386 = arith.sitofp %352 : vector<5x32xi32> to vector<5x32xf32>
    %cst_171 = arith.constant 5.000000e+00 : f32
    %387 = vector.broadcast %cst_171 : f32 to vector<5x32xf32>
    %388 = arith.select %385, %386, %387 : vector<5x32xi1>, vector<5x32xf32>
    %cst_172 = arith.constant dense<0x7F800000> : vector<32xf32>
    %389 = vector.multi_reduction <minimumf>, %388, %cst_172 [0] : vector<5x32xf32> to vector<32xf32>
    %390 = vector.shape_cast %389 : vector<32xf32> to vector<1x32xf32>
    %391 = arith.fptosi %390 : vector<1x32xf32> to vector<1x32xi32>
    %c0_173 = arith.constant 0 : index
    %c0_174 = arith.constant 0 : index
    %392 = vector.load %arg23[%c0_173, %c0_174] : memref<1x32xi32, #tpu.memory_space<vmem>>, vector<1x32xi32>
    tpu.vector_store %arg23[%c0_173, %c0_174], %391 {strides = array<i32>} : memref<1x32xi32, #tpu.memory_space<vmem>>, vector<1x32xi32>,
    return
  }
}

</mosaic_0001>

<llo_original>
// kernel: bert_forward.1
$region0: #{bert_forward.1}
  #allocation0 [shape = 'u32[]', space=smem, size = 0x4, offset = 0x4, fixed_abs, tag = 'smem constant byte address 0x4 - core index']
  #allocation1 [shape = 'u32[144,128]{1,0:T(1,128)}', space=vmem, size = 0x12000, scoped, tag = 'internal scratch']
  %s0 = inlined_call_operand.vmem [shape: s32[32,1], index: 0, kind: input, shape index: {}]
  %s1 = inlined_call_operand.vmem [shape: s32[32,1], index: 1, kind: input, shape index: {}]
  %s2 = inlined_call_operand.vmem [shape: s32[1,32], index: 2, kind: input, shape index: {}]
  %s3 = inlined_call_operand.vmem [shape: s32[1,32], index: 3, kind: input, shape index: {}]
  %s4 = inlined_call_operand.vmem [shape: f32[64,64], index: 4, kind: input, shape index: {}]
  %s5 = inlined_call_operand.vmem [shape: f32[32,64], index: 5, kind: input, shape index: {}]
  %s6 = inlined_call_operand.vmem [shape: f32[1,64], index: 6, kind: input, shape index: {}]
  %s7 = inlined_call_operand.vmem [shape: f32[1,64], index: 7, kind: input, shape index: {}]
  %s8 = inlined_call_operand.vmem [shape: f32[2,64,192], index: 8, kind: input, shape index: {}]
  %s9 = inlined_call_operand.vmem [shape: f32[2,1,192], index: 9, kind: input, shape index: {}]
  %s10 = inlined_call_operand.vmem [shape: f32[2,2,32,64], index: 10, kind: input, shape index: {}]
  %s11 = inlined_call_operand.vmem [shape: f32[2,1,64], index: 11, kind: input, shape index: {}]
  %s12 = inlined_call_operand.vmem [shape: f32[2,1,64], index: 12, kind: input, shape index: {}]
  %s13 = inlined_call_operand.vmem [shape: f32[2,1,64], index: 13, kind: input, shape index: {}]
  %s14 = inlined_call_operand.hbm [shape: f32[2,64,128], index: 14, kind: input, shape index: {}]
  %s15 = inlined_call_operand.vmem [shape: f32[2,1,128], index: 15, kind: input, shape index: {}]
  %s16 = inlined_call_operand.vmem [shape: f32[2,128,64], index: 16, kind: input, shape index: {}]
  %s17 = inlined_call_operand.vmem [shape: f32[2,1,64], index: 17, kind: input, shape index: {}]
  %s18 = inlined_call_operand.hbm [shape: f32[2,1,64], index: 18, kind: input, shape index: {}]
  %s19 = inlined_call_operand.hbm [shape: f32[2,1,64], index: 19, kind: input, shape index: {}]
  %s20 = inlined_call_operand.vmem [shape: f32[5,64], index: 20, kind: input, shape index: {}]
  %s21 = inlined_call_operand.vmem [shape: f32[5,1], index: 21, kind: input, shape index: {}]
  %s22 = inlined_call_operand.hbm [shape: f32[1,1], index: 22, kind: output, shape index: {0}]
  %s23 = inlined_call_operand.vmem [shape: s32[1,32], index: 23, kind: output, shape index: {1}]
  %24 = xla_tuple %s22, %s23
  %s25 = sld [smem:[#allocation0]]
  $region118: #{bert_forward.1} parent=0
    _
  %s27 = ssub.s32 1, %s25
  %s28 = scalar_select 0, %s27, %s25
  $region1: #{bert_forward.1} parent=0
    #allocation2 [shape = 'u8[65536]{0}', space=vmem, size = 0x10000, scoped, tag = 'input window, operand 14, single buffered']
    #allocation3 [shape = 's32[1]{0}', space=sflag, size = 0x4, scoped, tag = 'scoped memory for bert_forward.1']
    #allocation4 [shape = 's32[1]{0}', space=sflag, size = 0x4, scoped, tag = 'scoped memory for bert_forward.1']
    #allocation5 [shape = 'u8[1024]{0}', space=vmem, size = 0x400, scoped, tag = 'input window, operand 18, single buffered']
    #allocation6 [shape = 's32[1]{0}', space=sflag, size = 0x4, scoped, tag = 'scoped memory for bert_forward.1']
    #allocation7 [shape = 'u8[1024]{0}', space=vmem, size = 0x400, scoped, tag = 'input window, operand 19, single buffered']
    #allocation8 [shape = 'u8[512]{0}', space=vmem, size = 0x400, scoped, tag = 'output window, operand 0, single buffered']
    %29 = vsyncpa [#allocation3], 0
    %30 = vsyncpa [#allocation6], 0
    %31 = vsyncpa [#allocation4], 0
    // Predicated region
    $region2: #{bert_forward.1} parent=1 // pred_check
      _
    $region3: #{bert_forward.1} parent=1 // pred_check_branch
      %33 = sbr.rel (0) target = $region5
    $region4: #{bert_forward.1} parent=1 // pred_region
      _
    $region5: #{bert_forward.1} parent=1 // pred_fallthru
      _
    // Predicated region
    $region6: #{bert_forward.1} parent=1 // pred_check
      _
    $region7: #{bert_forward.1} parent=1 // pred_check_branch
      %35 = sbr.rel (0) target = $region9
    $region8: #{bert_forward.1} parent=1 // pred_region
      _
    $region9: #{bert_forward.1} parent=1 // pred_fallthru
      _
    // Predicated region
    $region10: #{bert_forward.1} parent=1 // pred_check
      _
    $region11: #{bert_forward.1} parent=1 // pred_check_branch
      %37 = sbr.rel (0) target = $region13
    $region12: #{bert_forward.1} parent=1 // pred_region
      _
    $region13: #{bert_forward.1} parent=1 // pred_fallthru
      _
    // Predicated region
    $region14: #{bert_forward.1} parent=1 // pred_check
      _
    $region15: #{bert_forward.1} parent=1 // pred_check_branch
      %39 = sbr.rel (0) target = $region17
    $region16: #{bert_forward.1} parent=1 // pred_region
      _
    $region17: #{bert_forward.1} parent=1 // pred_fallthru
      _
    // Predicated region
    $region18: #{bert_forward.1} parent=1 // pred_check
      _
    $region19: #{bert_forward.1} parent=1 // pred_check_branch
      %41 = sbr.rel (0) target = $region21
    $region20: #{bert_forward.1} parent=1 // pred_region
      _
    $region21: #{bert_forward.1} parent=1 // pred_fallthru
      _
    // Predicated region
    $region22: #{bert_forward.1} parent=1 // pred_check
      _
    $region23: #{bert_forward.1} parent=1 // pred_check_branch
      %43 = sbr.rel (0) target = $region25
    $region24: #{bert_forward.1} parent=1 // pred_region
      _
    $region25: #{bert_forward.1} parent=1 // pred_fallthru
      _
    // Predicated region
    $region26: #{bert_forward.1} parent=1 // pred_check
      _
    $region27: #{bert_forward.1} parent=1 // pred_check_branch
      %45 = sbr.rel (0) target = $region29
    $region28: #{bert_forward.1} parent=1 // pred_region
      _
    $region29: #{bert_forward.1} parent=1 // pred_fallthru
      _
    // Predicated region
    $region30: #{bert_forward.1} parent=1 // pred_check
      _
    $region31: #{bert_forward.1} parent=1 // pred_check_branch
      %47 = sbr.rel (0) target = $region33
    $region32: #{bert_forward.1} parent=1 // pred_region
      _
    $region33: #{bert_forward.1} parent=1 // pred_fallthru
      _
    // Predicated region
    $region34: #{bert_forward.1} parent=1 // pred_check
      _
    $region35: #{bert_forward.1} parent=1 // pred_check_branch
      %49 = sbr.rel (0) target = $region37
    $region36: #{bert_forward.1} parent=1 // pred_region
      _
    $region37: #{bert_forward.1} parent=1 // pred_fallthru
      _
    // Predicated region
    $region38: #{bert_forward.1} parent=1 // pred_check
      _
    $region39: #{bert_forward.1} parent=1 // pred_check_branch
      %51 = sbr.rel (0) target = $region41
    $region40: #{bert_forward.1} parent=1 // pred_region
      _
    $region41: #{bert_forward.1} parent=1 // pred_fallthru
      _
    // Predicated region
    $region42: #{bert_forward.1} parent=1 // pred_check
      _
    $region43: #{bert_forward.1} parent=1 // pred_check_branch
      %53 = sbr.rel (0) target = $region45
    $region44: #{bert_forward.1} parent=1 // pred_region
      _
    $region45: #{bert_forward.1} parent=1 // pred_fallthru
      _
    // Predicated region
    $region46: #{bert_forward.1} parent=1 // pred_check
      _
    $region47: #{bert_forward.1} parent=1 // pred_check_branch
      %55 = sbr.rel (0) target = $region49
    $region48: #{bert_forward.1} parent=1 // pred_region
      _
    $region49: #{bert_forward.1} parent=1 // pred_fallthru
      _
    // Predicated region
    $region50: #{bert_forward.1} parent=1 // pred_check
      _
    $region51: #{bert_forward.1} parent=1 // pred_check_branch
      %57 = sbr.rel (0) target = $region53
    $region52: #{bert_forward.1} parent=1 // pred_region
      _
    $region53: #{bert_forward.1} parent=1 // pred_fallthru
      _
    // Predicated region
    $region54: #{bert_forward.1} parent=1 // pred_check
      _
    $region55: #{bert_forward.1} parent=1 // pred_check_branch
      %59 = sbr.rel (0) target = $region57
    $region56: #{bert_forward.1} parent=1 // pred_region
      _
    $region57: #{bert_forward.1} parent=1 // pred_fallthru
      _
    // Predicated region
    $region58: #{bert_forward.1} parent=1 // pred_check
      _
    $region59: #{bert_forward.1} parent=1 // pred_check_branch
      %61 = sbr.rel (0) target = $region61
    $region60: #{bert_forward.1} parent=1 // pred_region
      %s63 = ssub.s32 2048, 2048
      %64 = vsyncadd [#allocation3], %s63
      %s65 = sshll.u32 [#allocation2], 4
      %s66 = int_to_ptr.vmem [resolvable:$true] %s65
      %71 = dma.hbm_to_vmem [thread:$0]  %s14, 2048, %s66, [#allocation3], 128, 128, 8
    $region61: #{bert_forward.1} parent=1 // pred_fallthru
      _
    // Predicated region
    $region62: #{bert_forward.1} parent=1 // pred_check
      _
    $region63: #{bert_forward.1} parent=1 // pred_check_branch
      %73 = sbr.rel (0) target = $region65
    $region64: #{bert_forward.1} parent=1 // pred_region
      _
    $region65: #{bert_forward.1} parent=1 // pred_fallthru
      _
    // Predicated region
    $region66: #{bert_forward.1} parent=1 // pred_check
      _
    $region67: #{bert_forward.1} parent=1 // pred_check_branch
      %75 = sbr.rel (0) target = $region69
    $region68: #{bert_forward.1} parent=1 // pred_region
      _
    $region69: #{bert_forward.1} parent=1 // pred_fallthru
      _
    // Predicated region
    $region70: #{bert_forward.1} parent=1 // pred_check
      _
    $region71: #{bert_forward.1} parent=1 // pred_check_branch
      %77 = sbr.rel (0) target = $region73
    $region72: #{bert_forward.1} parent=1 // pred_region
      _
    $region73: #{bert_forward.1} parent=1 // pred_fallthru
      _
    // Predicated region
    $region74: #{bert_forward.1} parent=1 // pred_check
      _
    $region75: #{bert_forward.1} parent=1 // pred_check_branch
      %79 = sbr.rel (0) target = $region77
    $region76: #{bert_forward.1} parent=1 // pred_region
      %s81 = ssub.s32 32, 32
      %82 = vsyncadd [#allocation6], %s81
      %s83 = sshll.u32 [#allocation5], 4
      %s84 = int_to_ptr.vmem [resolvable:$true] %s83
      %89 = dma.hbm_to_vmem [thread:$0]  %s18, 32, %s84, [#allocation6], 16, 16, 1
    $region77: #{bert_forward.1} parent=1 // pred_fallthru
      _
    // Predicated region
    $region78: #{bert_forward.1} parent=1 // pred_check
      _
    $region79: #{bert_forward.1} parent=1 // pred_check_branch
      %91 = sbr.rel (0) target = $region81
    $region80: #{bert_forward.1} parent=1 // pred_region
      %s93 = ssub.s32 32, 32
      %94 = vsyncadd [#allocation6], %s93
      %s95 = sshll.u32 [#allocation7], 4
      %s96 = int_to_ptr.vmem [resolvable:$true] %s95
      %101 = dma.hbm_to_vmem [thread:$0]  %s19, 32, %s96, [#allocation6], 16, 16, 1
    $region81: #{bert_forward.1} parent=1 // pred_fallthru
      _
    // Predicated region
    $region82: #{bert_forward.1} parent=1 // pred_check
      _
    $region83: #{bert_forward.1} parent=1 // pred_check_branch
      %103 = sbr.rel (0) target = $region85
    $region84: #{bert_forward.1} parent=1 // pred_region
      _
    $region85: #{bert_forward.1} parent=1 // pred_fallthru
      _
    // Predicated region
    $region86: #{bert_forward.1} parent=1 // pred_check
      _
    $region87: #{bert_forward.1} parent=1 // pred_check_branch
      %105 = sbr.rel (0) target = $region89
    $region88: #{bert_forward.1} parent=1 // pred_region
      _
    $region89: #{bert_forward.1} parent=1 // pred_fallthru
      _
    // Predicated region
    $region90: #{bert_forward.1} parent=1 // pred_check
      _
    $region91: #{bert_forward.1} parent=1 // pred_check_branch
      %107 = sbr.rel (0) target = $region93
    $region92: #{bert_forward.1} parent=1 // pred_region
      %108 = dma.done [#allocation3], 2048
    $region93: #{bert_forward.1} parent=1 // pred_fallthru
      _
    // Predicated region
    $region94: #{bert_forward.1} parent=1 // pred_check
      _
    $region95: #{bert_forward.1} parent=1 // pred_check_branch
      %110 = sbr.rel (0) target = $region97
    $region96: #{bert_forward.1} parent=1 // pred_region
      %111 = dma.done [#allocation6], 32
    $region97: #{bert_forward.1} parent=1 // pred_fallthru
      _
    // Predicated region
    $region98: #{bert_forward.1} parent=1 // pred_check
      _
    $region99: #{bert_forward.1} parent=1 // pred_check_branch
      %113 = sbr.rel (0) target = $region101
    $region100: #{bert_forward.1} parent=1 // pred_region
      %114 = dma.done [#allocation6], 32
    $region101: #{bert_forward.1} parent=1 // pred_fallthru
      _
    %v116 = vld [vmem:[%s0] sm:$0xff]
    %v117 = vld [vmem:[%s0 + $0x8] sm:$0xff]
    %v118 = vld [vmem:[%s0 + $0x10] sm:$0xff]
    %v119 = vld [vmem:[%s0 + $0x18] sm:$0xff]
    %v120 = vlaneseq
    %v121 = vand.u32 %v120, 127
    %122 = vset.pattern.permute.xlu0 0
    %123 = vperm.xlu0 %122, %v116
    %v124 = vpop.permute.xlu0 %123
    %125 = vset.pattern.permute.xlu0 0
    %126 = vperm.xlu0 %125, %v117
    %v127 = vpop.permute.xlu0 %126
    %128 = vset.pattern.permute.xlu0 0
    %129 = vperm.xlu0 %128, %v118
    %v130 = vpop.permute.xlu0 %129
    %131 = vset.pattern.permute.xlu0 0
    %132 = vperm.xlu0 %131, %v119
    %v133 = vpop.permute.xlu0 %132
    %vm134 = vcmp.eq.s32.totalorder %v121, %v124
    %vm135 = vcmp.eq.s32.totalorder %v121, %v127
    %vm136 = vcmp.eq.s32.totalorder %v121, %v130
    %vm137 = vcmp.eq.s32.totalorder %v121, %v133
    %v138 = vsel %vm134, 1, 0
    %v139 = vsel %vm135, 1, 0
    %v140 = vsel %vm136, 1, 0
    %v141 = vsel %vm137, 1, 0
    %v142 = vcvt.s32.f32 %v138
    %v143 = vcvt.s32.f32 %v139
    %v144 = vcvt.s32.f32 %v140
    %v145 = vcvt.s32.f32 %v141
    %v146 = vld [vmem:[%s4] sm:$0xff]
    %v147 = vld [vmem:[%s4 + $0x8] sm:$0xff]
    %v148 = vld [vmem:[%s4 + $0x10] sm:$0xff]
    %v149 = vld [vmem:[%s4 + $0x18] sm:$0xff]
    %v150 = vld [vmem:[%s4 + $0x20] sm:$0xff]
    %v151 = vld [vmem:[%s4 + $0x28] sm:$0xff]
    %v152 = vld [vmem:[%s4 + $0x30] sm:$0xff]
    %v153 = vld [vmem:[%s4 + $0x38] sm:$0xff]
    %v154 = vld [vmem:[%s5] sm:$0xff]
    %v155 = vld [vmem:[%s5 + $0x8] sm:$0xff]
    %v156 = vld [vmem:[%s5 + $0x10] sm:$0xff]
    %v157 = vld [vmem:[%s5 + $0x18] sm:$0xff]
    %vm158 = vcmask 523264
    %v160 = vsel %vm158, %v142, 0
    %v163 = vsel %vm158, %v143, 0
    %v166 = vsel %vm158, %v144, 0
    %v169 = vsel %vm158, %v145, 0
    %171 = vmatprep.subr.mxu0 0.0
    %172 = vmatpush1.msra.mxu0 %v146
    %173 = vmatprep.subr.mxu0 0.0
    %174 = vmatpush1.msra.mxu0 %v147
    %175 = vmatprep.subr.mxu0 0.0
    %176 = vmatpush1.msra.mxu0 %v148
    %177 = vmatprep.subr.mxu0 0.0
    %178 = vmatpush1.msra.mxu0 %v149
    %179 = vmatprep.subr.mxu0 0.0
    %180 = vmatpush1.msra.mxu0 %v150
    %181 = vmatprep.subr.mxu0 0.0
    %182 = vmatpush1.msra.mxu0 %v151
    %183 = vmatprep.subr.mxu0 0.0
    %184 = vmatpush1.msra.mxu0 %v152
    %185 = vmatprep.subr.mxu0 0.0
    %186 = vmatpush1.msra.mxu0 %v153
    %187 = vmatprep.subr.mxu0 0.0
    %188 = vmatpush1.msra.mxu0 0.0
    %189 = vmatprep.subr.mxu0 0.0
    %190 = vmatpush1.msra.mxu0 0.0
    %191 = vmatprep.subr.mxu0 0.0
    %192 = vmatpush1.msra.mxu0 0.0
    %193 = vmatprep.subr.mxu0 0.0
    %194 = vmatpush1.msra.mxu0 0.0
    %195 = vmatprep.subr.mxu0 0.0
    %196 = vmatpush1.msra.mxu0 0.0
    %197 = vmatprep.subr.mxu0 0.0
    %198 = vmatpush1.msra.mxu0 0.0
    %199 = vmatprep.subr.mxu0 0.0
    %200 = vmatpush1.msra.mxu0 0.0
    %201 = vmatprep.subr.mxu0 0.0
    %202 = vmatpush1.msra.mxu0 0.0
    %203 = vmatprep.subr.mxu0 0.0
    %204 = vmatpush1.msra.mxu0 0.0
    %205 = vmatprep.subr.mxu0 0.0
    %206 = vmatpush1.msra.mxu0 0.0
    %207 = vmatprep.subr.mxu0 0.0
    %208 = vmatpush1.msra.mxu0 0.0
    %209 = vmatprep.subr.mxu0 0.0
    %210 = vmatpush1.msra.mxu0 0.0
    %211 = vmatprep.subr.mxu0 0.0
    %212 = vmatpush1.msra.mxu0 0.0
    %213 = vmatprep.subr.mxu0 0.0
    %214 = vmatpush1.msra.mxu0 0.0
    %215 = vmatprep.subr.mxu0 0.0
    %216 = vmatpush1.msra.mxu0 0.0
    %217 = vmatprep.subr.mxu0 0.0
    %218 = vmatpush1.msra.mxu0 0.0
    %219 = vmatprep.subr.mxu0 0.0
    %220 = vmatpush1.msra.mxu0 0.0
    %221 = vmatprep.subr.mxu0 0.0
    %222 = vmatpush1.msra.mxu0 0.0
    %223 = vmatprep.subr.mxu0 0.0
    %224 = vmatpush1.msra.mxu0 0.0
    %225 = vmatprep.subr.mxu0 0.0
    %226 = vmatpush1.msra.mxu0 0.0
    %227 = vmatprep.subr.mxu0 0.0
    %228 = vmatpush1.msra.mxu0 0.0
    %229 = vmatprep.subr.mxu0 0.0
    %230 = vmatpush1.msra.mxu0 0.0
    %231 = vmatprep.subr.mxu0 0.0
    %232 = vmatpush1.msra.mxu0 0.0
    %233 = vmatprep.subr.mxu0 0.0
    %234 = vmatpush1.msra.mxu0 0.0
    %235 = vmatprep.mubr.f32.mxu0 0.0
    %236 = vmatmul.mubr.f32.gmra.mrb[0].mxu0 %v160
    %v237 = vpop.f32.mrb[0].mxu0
    %v238 = vadd.f32 %v154, %v237
    %v239 = vpop.f32.mrb[0].mxu0
    %240 = vmatprep.mubr.f32.mxu0 0.0
    %241 = vmatmul.mubr.f32.gmra.mrb[0].mxu0 %v163
    %v242 = vpop.f32.mrb[0].mxu0
    %v243 = vadd.f32 %v155, %v242
    %v244 = vpop.f32.mrb[0].mxu0
    %245 = vmatprep.mubr.f32.mxu0 0.0
    %246 = vmatmul.mubr.f32.gmra.mrb[0].mxu0 %v166
    %v247 = vpop.f32.mrb[0].mxu0
    %v248 = vadd.f32 %v156, %v247
    %v249 = vpop.f32.mrb[0].mxu0
    %250 = vmatprep.mubr.f32.mxu0 0.0
    %251 = vmatmul.mubr.f32.gmra.mrb[0].mxu0 %v169
    %v252 = vpop.f32.mrb[0].mxu0
    %v253 = vadd.f32 %v157, %v252
    %v254 = vpop.f32.mrb[0].mxu0
    %255 = vdwg.mxu0
    %v256 = vld [vmem:[%s6] sm:$0x1]
    %v257 = vld [vmem:[%s7] sm:$0x1]
    %v258 = vsel %vm158, %v238, 0.0
    %259 = vadd.xlane.f32.xlu0 %v258
    %v260 = vpop.xlane.xlu0 %259
    %v261 = vsel %vm158, %v243, 0.0
    %262 = vadd.xlane.f32.xlu0 %v261
    %v263 = vpop.xlane.xlu0 %262
    %v264 = vsel %vm158, %v248, 0.0
    %265 = vadd.xlane.f32.xlu0 %v264
    %v266 = vpop.xlane.xlu0 %265
    %v267 = vsel %vm158, %v253, 0.0
    %268 = vadd.xlane.f32.xlu0 %v267
    %v269 = vpop.xlane.xlu0 %268
    %v270 = vrcp.pop 64.0
    %v271 = vmul.f32 %v260, %v270
    %v272 = vmul.f32 %v263, %v270
    %v273 = vmul.f32 %v266, %v270
    %v274 = vmul.f32 %v269, %v270
    %v275 = vsub.f32 %v238, %v271
    %v276 = vsub.f32 %v243, %v272
    %v277 = vsub.f32 %v248, %v273
    %v278 = vsub.f32 %v253, %v274
    %v279 = vmul.f32 %v275, %v275
    %v280 = vmul.f32 %v276, %v276
    %v281 = vmul.f32 %v277, %v277
    %v282 = vmul.f32 %v278, %v278
    %v283 = vsel %vm158, %v279, 0.0
    %284 = vadd.xlane.f32.xlu0 %v283
    %v285 = vpop.xlane.xlu0 %284
    %v286 = vsel %vm158, %v280, 0.0
    %287 = vadd.xlane.f32.xlu0 %v286
    %v288 = vpop.xlane.xlu0 %287
    %v289 = vsel %vm158, %v281, 0.0
    %290 = vadd.xlane.f32.xlu0 %v289
    %v291 = vpop.xlane.xlu0 %290
    %v292 = vsel %vm158, %v282, 0.0
    %293 = vadd.xlane.f32.xlu0 %v292
    %v294 = vpop.xlane.xlu0 %293
    %v295 = vmul.f32 %v285, %v270
    %v296 = vmul.f32 %v288, %v270
    %v297 = vmul.f32 %v291, %v270
    %v298 = vmul.f32 %v294, %v270
    %v299 = vadd.f32 %v295, 1e-12
    %v300 = vadd.f32 %v296, 1e-12
    %v301 = vadd.f32 %v297, 1e-12
    %v302 = vadd.f32 %v298, 1e-12
    %v303 = vrsqrt.pop %v299
    %v304 = vrsqrt.pop %v300
    %v305 = vrsqrt.pop %v301
    %v306 = vrsqrt.pop %v302
    %v307 = vmul.f32 %v275, %v303
    %v308 = vmul.f32 %v276, %v304
    %v309 = vmul.f32 %v277, %v305
    %v310 = vmul.f32 %v278, %v306
    %v312 = vlaneseq
    %v313 = vshrl.u32 %v312, 7
    %v314 = vsub.s32 0, %v313
    %v315 = vrot.slane %v256, %v314
    %v317 = vmul.f32 %v307, %v315
    %v318 = vmul.f32 %v308, %v315
    %v319 = vmul.f32 %v309, %v315
    %v320 = vmul.f32 %v310, %v315
    %v322 = vlaneseq
    %v323 = vshrl.u32 %v322, 7
    %v324 = vsub.s32 0, %v323
    %v325 = vrot.slane %v257, %v324
    %v327 = vadd.f32 %v317, %v325
    %v328 = vadd.f32 %v318, %v325
    %v329 = vadd.f32 %v319, %v325
    %v330 = vadd.f32 %v320, %v325
    %v331 = vld [vmem:[%s1] sm:$0xff]
    %v332 = vld [vmem:[%s1 + $0x8] sm:$0xff]
    %v333 = vld [vmem:[%s1 + $0x10] sm:$0xff]
    %v334 = vld [vmem:[%s1 + $0x18] sm:$0xff]
    %v335 = vld [vmem:[%s2] sm:$0x1]
    %336 = vset.pattern.permute.xlu0 0
    %337 = vperm.xlu0 %336, %v331
    %v338 = vpop.permute.xlu0 %337
    %339 = vset.pattern.permute.xlu0 0
    %340 = vperm.xlu0 %339, %v332
    %v341 = vpop.permute.xlu0 %340
    %342 = vset.pattern.permute.xlu0 0
    %343 = vperm.xlu0 %342, %v333
    %v344 = vpop.permute.xlu0 %343
    %345 = vset.pattern.permute.xlu0 0
    %346 = vperm.xlu0 %345, %v334
    %v347 = vpop.permute.xlu0 %346
    %v348 = vlaneseq
    %v349 = vshrl.u32 %v348, 7
    %v350 = vsub.s32 0, %v349
    %v351 = vrot.slane %v335, %v350
    %vm352 = vcmp.eq.s32.totalorder %v338, %v351
    %vm353 = vcmp.eq.s32.totalorder %v341, %v351
    %vm354 = vcmp.eq.s32.totalorder %v344, %v351
    %vm355 = vcmp.eq.s32.totalorder %v347, %v351
    %v356 = vsel %vm352, 0.0, -1e+09
    %v357 = vsel %vm353, 0.0, -1e+09
    %v358 = vsel %vm354, 0.0, -1e+09
    %v359 = vsel %vm355, 0.0, -1e+09
    %v360 = vld [vmem:[%s8] sm:$0xff]
    %v361 = vld [vmem:[%s8 + $0x8] sm:$0xff]
    %v362 = vld [vmem:[%s8 + $0x10] sm:$0xff]
    %v363 = vld [vmem:[%s8 + $0x18] sm:$0xff]
    %v364 = vld [vmem:[%s8 + $0x20] sm:$0xff]
    %v365 = vld [vmem:[%s8 + $0x28] sm:$0xff]
    %v366 = vld [vmem:[%s8 + $0x30] sm:$0xff]
    %v367 = vld [vmem:[%s8 + $0x38] sm:$0xff]
    %v368 = vld [vmem:[%s8 + $0x40] sm:$0xff]
    %v369 = vld [vmem:[%s8 + $0x48] sm:$0xff]
    %v370 = vld [vmem:[%s8 + $0x50] sm:$0xff]
    %v371 = vld [vmem:[%s8 + $0x58] sm:$0xff]
    %v372 = vld [vmem:[%s8 + $0x60] sm:$0xff]
    %v373 = vld [vmem:[%s8 + $0x68] sm:$0xff]
    %v374 = vld [vmem:[%s8 + $0x70] sm:$0xff]
    %v375 = vld [vmem:[%s8 + $0x78] sm:$0xff]
    %v376 = vpack.c.bf16 %v328, %v327
    %v377 = vpack.c.bf16 %v330, %v329
    %v378 = vpack.c.bf16 %v362, %v360
    %v379 = vpack.c.bf16 %v363, %v361
    %v380 = vpack.c.bf16 %v366, %v364
    %v381 = vpack.c.bf16 %v367, %v365
    %v382 = vpack.c.bf16 %v370, %v368
    %v383 = vpack.c.bf16 %v371, %v369
    %v384 = vpack.c.bf16 %v374, %v372
    %v385 = vpack.c.bf16 %v375, %v373
    %v386 = vld [vmem:[%s9] sm:$0x3]
    %v388 = vlaneseq
    %v389 = vshrl.u32 %v388, 7
    %v390 = vsub.s32 0, %v389
    %v391 = vrot.slane %v386, %v390
    %v392 = vlaneseq
    %v393 = vshrl.u32 %v392, 7
    %v394 = vsub.s32 1, %v393
    %v395 = vrot.slane %v386, %v394
    %v399 = vsel %vm158, %v376, 0
    %v402 = vsel %vm158, %v377, 0
    %404 = vmatprep.subr.bf16.mxu0 %v379
    %405 = vmatpush1.bf16.msra.mxu0 %v378
    %406 = vmatprep.subr.bf16.mxu0 %v381
    %407 = vmatpush1.bf16.msra.mxu0 %v380
    %408 = vmatprep.subr.bf16.mxu0 %v383
    %409 = vmatpush1.bf16.msra.mxu0 %v382
    %410 = vmatprep.subr.bf16.mxu0 %v385
    %411 = vmatpush1.bf16.msra.mxu0 %v384
    %412 = vmatprep.subr.bf16.mxu0 0
    %413 = vmatpush1.bf16.msra.mxu0 0
    %414 = vmatprep.subr.bf16.mxu0 0
    %415 = vmatpush1.bf16.msra.mxu0 0
    %416 = vmatprep.subr.bf16.mxu0 0
    %417 = vmatpush1.bf16.msra.mxu0 0
    %418 = vmatprep.subr.bf16.mxu0 0
    %419 = vmatpush1.bf16.msra.mxu0 0
    %420 = vmatprep.subr.bf16.mxu0 0
    %421 = vmatpush1.bf16.msra.mxu0 0
    %422 = vmatprep.subr.bf16.mxu0 0
    %423 = vmatpush1.bf16.msra.mxu0 0
    %424 = vmatprep.subr.bf16.mxu0 0
    %425 = vmatpush1.bf16.msra.mxu0 0
    %426 = vmatprep.subr.bf16.mxu0 0
    %427 = vmatpush1.bf16.msra.mxu0 0
    %428 = vmatprep.subr.bf16.mxu0 0
    %429 = vmatpush1.bf16.msra.mxu0 0
    %430 = vmatprep.subr.bf16.mxu0 0
    %431 = vmatpush1.bf16.msra.mxu0 0
    %432 = vmatprep.subr.bf16.mxu0 0
    %433 = vmatpush1.bf16.msra.mxu0 0
    %434 = vmatprep.subr.bf16.mxu0 0
    %435 = vmatpush1.bf16.msra.mxu0 0
    %436 = vmatprep.mubr.bf16.mxu0 0
    %437 = vmatmul.mubr.bf16.gmra.mrb[0].mxu0 %v399
    %v438 = vpop.f32.mrb[0].mxu0
    %v439 = vadd.f32 %v391, %v438
    %v440 = vpop.f32.mrb[0].mxu0
    %v441 = vadd.f32 %v395, %v440
    %v442 = vpop.f32.mrb[0].mxu0
    %v443 = vadd.f32 %v391, %v442
    %v444 = vpop.f32.mrb[0].mxu0
    %v445 = vadd.f32 %v395, %v444
    %446 = vmatprep.mubr.bf16.mxu0 0
    %447 = vmatmul.mubr.bf16.gmra.mrb[0].mxu0 %v402
    %v448 = vpop.f32.mrb[0].mxu0
    %v449 = vadd.f32 %v391, %v448
    %v450 = vpop.f32.mrb[0].mxu0
    %v451 = vadd.f32 %v395, %v450
    %v452 = vpop.f32.mrb[0].mxu0
    %v453 = vadd.f32 %v391, %v452
    %v454 = vpop.f32.mrb[0].mxu0
    %v455 = vadd.f32 %v395, %v454
    %456 = vdwg.mxu0
    %v457 = vld [vmem:[%s11] sm:$0x1]
    %v459 = vlaneseq
    %v460 = vshrl.u32 %v459, 7
    %v461 = vsub.s32 0, %v460
    %v462 = vrot.slane %v457, %v461
    %v464 = vadd.f32 %v327, %v462
    %v465 = vadd.f32 %v328, %v462
    %v466 = vadd.f32 %v329, %v462
    %v467 = vadd.f32 %v330, %v462
    %v468 = vpack.c.bf16 %v443, %v439
    %v469 = vpack.c.bf16 %v453, %v449
    %472 = vrot.lane.b32.xlu0 %v468, 64
    %v473 = vpop.permute.xlu0 %472
    %474 = vrot.lane.b32.xlu0 %v469, 64
    %v475 = vpop.permute.xlu0 %474
    %vm476 = vcmask 261120
    %v478 = vsel %vm476, %v468, 0
    %v481 = vsel %vm476, %v469, 0
    %v484 = vsel %vm476, %v473, 0
    %v487 = vsel %vm476, %v475, 0
    %489 = vmatprep.subr.bf16.mxu0 0
    %490 = vmatpush1.bf16.xpose.msra.mxu0 %v484
    %491 = vmatprep.subr.bf16.mxu0 0
    %492 = vmatpush1.bf16.xpose.msra.mxu0 %v487
    %493 = vmatprep.subr.bf16.mxu0 0
    %494 = vmatpush1.bf16.xpose.msra.mxu0 0
    %495 = vmatprep.subr.bf16.mxu0 0
    %496 = vmatpush1.bf16.xpose.msra.mxu0 0
    %497 = vmatprep.subr.bf16.mxu0 0
    %498 = vmatpush1.bf16.xpose.msra.mxu0 0
    %499 = vmatprep.subr.bf16.mxu0 0
    %500 = vmatpush1.bf16.xpose.msra.mxu0 0
    %501 = vmatprep.subr.bf16.mxu0 0
    %502 = vmatpush1.bf16.xpose.msra.mxu0 0
    %503 = vmatprep.subr.bf16.mxu0 0
    %504 = vmatpush1.bf16.xpose.msra.mxu0 0
    %505 = vmatprep.subr.bf16.mxu0 0
    %506 = vmatpush1.bf16.xpose.msra.mxu0 0
    %507 = vmatprep.subr.bf16.mxu0 0
    %508 = vmatpush1.bf16.xpose.msra.mxu0 0
    %509 = vmatprep.subr.bf16.mxu0 0
    %510 = vmatpush1.bf16.xpose.msra.mxu0 0
    %511 = vmatprep.subr.bf16.mxu0 0
    %512 = vmatpush1.bf16.xpose.msra.mxu0 0
    %513 = vmatprep.subr.bf16.mxu0 0
    %514 = vmatpush1.bf16.xpose.msra.mxu0 0
    %515 = vmatprep.subr.bf16.mxu0 0
    %516 = vmatpush1.bf16.xpose.msra.mxu0 0
    %517 = vmatprep.subr.bf16.mxu0 0
    %518 = vmatpush1.bf16.xpose.msra.mxu0 0
    %519 = vmatprep.subr.bf16.mxu0 0
    %520 = vmatpush1.bf16.xpose.msra.mxu0 0
    %521 = vmatprep.mubr.bf16.mxu0 0
    %522 = vmatmul.mubr.bf16.gmra.mrb[0].mxu0 %v478
    %v523 = vpop.f32.mrb[0].mxu0
    %v524 = vadd.f32 %v356, %v523
    %v525 = vpop.f32.mrb[0].mxu0
    %v526 = vpop.f32.mrb[0].mxu0
    %v527 = vadd.f32 %v357, %v526
    %v528 = vpop.f32.mrb[0].mxu0
    %529 = vmatprep.mubr.bf16.mxu0 0
    %530 = vmatmul.mubr.bf16.gmra.mrb[0].mxu0 %v481
    %v531 = vpop.f32.mrb[0].mxu0
    %v532 = vadd.f32 %v358, %v531
    %v533 = vpop.f32.mrb[0].mxu0
    %v534 = vpop.f32.mrb[0].mxu0
    %v535 = vadd.f32 %v359, %v534
    %v536 = vpop.f32.mrb[0].mxu0
    %537 = vdwg.mxu0
    %v538 = vsel %vm476, %v524, -inf
    %539 = vmax.xlane.f32.xlu0 %v538
    %v540 = vpop.xlane.xlu0 %539
    %v541 = vsel %vm476, %v527, -inf
    %542 = vmax.xlane.f32.xlu0 %v541
    %v543 = vpop.xlane.xlu0 %542
    %v544 = vsel %vm476, %v532, -inf
    %545 = vmax.xlane.f32.xlu0 %v544
    %v546 = vpop.xlane.xlu0 %545
    %v547 = vsel %vm476, %v535, -inf
    %548 = vmax.xlane.f32.xlu0 %v547
    %v549 = vpop.xlane.xlu0 %548
    %v550 = vsub.f32 %v524, %v540
    %v551 = vsub.f32 %v527, %v543
    %v552 = vsub.f32 %v532, %v546
    %v553 = vsub.f32 %v535, %v549
    %v554 = vmul.f32 %v550, 1.442695
    %v555 = vpow.pop %v554
    %v556 = vmul.f32 %v551, 1.442695
    %v557 = vpow.pop %v556
    %v558 = vmul.f32 %v552, 1.442695
    %v559 = vpow.pop %v558
    %v560 = vmul.f32 %v553, 1.442695
    %v561 = vpow.pop %v560
    %v562 = vsel %vm476, %v555, 0.0
    %563 = vadd.xlane.f32.xlu0 %v562
    %v564 = vpop.xlane.xlu0 %563
    %v565 = vsel %vm476, %v557, 0.0
    %566 = vadd.xlane.f32.xlu0 %v565
    %v567 = vpop.xlane.xlu0 %566
    %v568 = vsel %vm476, %v559, 0.0
    %569 = vadd.xlane.f32.xlu0 %v568
    %v570 = vpop.xlane.xlu0 %569
    %v571 = vsel %vm476, %v561, 0.0
    %572 = vadd.xlane.f32.xlu0 %v571
    %v573 = vpop.xlane.xlu0 %572
    %v574 = vrcp.pop %v564
    %v575 = vrcp.pop %v567
    %v576 = vrcp.pop %v570
    %v577 = vrcp.pop %v573
    %v578 = vmul.f32 %v555, %v574
    %v579 = vmul.f32 %v557, %v575
    %v580 = vmul.f32 %v559, %v576
    %v581 = vmul.f32 %v561, %v577
    %v582 = vpack.c.bf16 %v579, %v578
    %v583 = vpack.c.bf16 %v581, %v580
    %v584 = vpack.c.bf16 %v445, %v441
    %v585 = vpack.c.bf16 %v455, %v451
    %v587 = vsel %vm476, %v582, 0
    %v590 = vsel %vm476, %v583, 0
    %592 = vmatprep.subr.bf16.mxu0 0
    %593 = vmatpush1.bf16.msra.mxu0 %v584
    %594 = vmatprep.subr.bf16.mxu0 0
    %595 = vmatpush1.bf16.msra.mxu0 %v585
    %596 = vmatprep.subr.bf16.mxu0 0
    %597 = vmatpush1.bf16.msra.mxu0 0
    %598 = vmatprep.subr.bf16.mxu0 0
    %599 = vmatpush1.bf16.msra.mxu0 0
    %600 = vmatprep.subr.bf16.mxu0 0
    %601 = vmatpush1.bf16.msra.mxu0 0
    %602 = vmatprep.subr.bf16.mxu0 0
    %603 = vmatpush1.bf16.msra.mxu0 0
    %604 = vmatprep.subr.bf16.mxu0 0
    %605 = vmatpush1.bf16.msra.mxu0 0
    %606 = vmatprep.subr.bf16.mxu0 0
    %607 = vmatpush1.bf16.msra.mxu0 0
    %608 = vmatprep.subr.bf16.mxu0 0
    %609 = vmatpush1.bf16.msra.mxu0 0
    %610 = vmatprep.subr.bf16.mxu0 0
    %611 = vmatpush1.bf16.msra.mxu0 0
    %612 = vmatprep.subr.bf16.mxu0 0
    %613 = vmatpush1.bf16.msra.mxu0 0
    %614 = vmatprep.subr.bf16.mxu0 0
    %615 = vmatpush1.bf16.msra.mxu0 0
    %616 = vmatprep.subr.bf16.mxu0 0
    %617 = vmatpush1.bf16.msra.mxu0 0
    %618 = vmatprep.subr.bf16.mxu0 0
    %619 = vmatpush1.bf16.msra.mxu0 0
    %620 = vmatprep.subr.bf16.mxu0 0
    %621 = vmatpush1.bf16.msra.mxu0 0
    %622 = vmatprep.subr.bf16.mxu0 0
    %623 = vmatpush1.bf16.msra.mxu0 0
    %624 = vmatprep.mubr.bf16.mxu0 0
    %625 = vmatmul.mubr.bf16.gmra.mrb[0].mxu0 %v587
    %v626 = vpop.f32.mrb[0].mxu0
    %v627 = vadd.f32 0.0, %v626
    %v628 = vpop.f32.mrb[0].mxu0
    %v629 = vpop.f32.mrb[0].mxu0
    %v630 = vadd.f32 0.0, %v629
    %v631 = vpop.f32.mrb[0].mxu0
    %632 = vmatprep.mubr.bf16.mxu0 0
    %633 = vmatmul.mubr.bf16.gmra.mrb[0].mxu0 %v590
    %v634 = vpop.f32.mrb[0].mxu0
    %v635 = vadd.f32 0.0, %v634
    %v636 = vpop.f32.mrb[0].mxu0
    %v637 = vpop.f32.mrb[0].mxu0
    %v638 = vadd.f32 0.0, %v637
    %v639 = vpop.f32.mrb[0].mxu0
    %640 = vdwg.mxu0
    %v641 = vld [vmem:[%s10] sm:$0xff]
    %v642 = vld [vmem:[%s10 + $0x8] sm:$0xff]
    %v643 = vld [vmem:[%s10 + $0x10] sm:$0xff]
    %v644 = vld [vmem:[%s10 + $0x18] sm:$0xff]
    %v645 = vpack.c.bf16 %v630, %v627
    %v646 = vpack.c.bf16 %v638, %v635
    %v647 = vpack.c.bf16 %v642, %v641
    %v648 = vpack.c.bf16 %v644, %v643
    %v650 = vsel %vm476, %v645, 0
    %v653 = vsel %vm476, %v646, 0
    %655 = vmatprep.subr.bf16.mxu0 0
    %656 = vmatpush1.bf16.msra.mxu0 %v647
    %657 = vmatprep.subr.bf16.mxu0 0
    %658 = vmatpush1.bf16.msra.mxu0 %v648
    %659 = vmatprep.subr.bf16.mxu0 0
    %660 = vmatpush1.bf16.msra.mxu0 0
    %661 = vmatprep.subr.bf16.mxu0 0
    %662 = vmatpush1.bf16.msra.mxu0 0
    %663 = vmatprep.subr.bf16.mxu0 0
    %664 = vmatpush1.bf16.msra.mxu0 0
    %665 = vmatprep.subr.bf16.mxu0 0
    %666 = vmatpush1.bf16.msra.mxu0 0
    %667 = vmatprep.subr.bf16.mxu0 0
    %668 = vmatpush1.bf16.msra.mxu0 0
    %669 = vmatprep.subr.bf16.mxu0 0
    %670 = vmatpush1.bf16.msra.mxu0 0
    %671 = vmatprep.subr.bf16.mxu0 0
    %672 = vmatpush1.bf16.msra.mxu0 0
    %673 = vmatprep.subr.bf16.mxu0 0
    %674 = vmatpush1.bf16.msra.mxu0 0
    %675 = vmatprep.subr.bf16.mxu0 0
    %676 = vmatpush1.bf16.msra.mxu0 0
    %677 = vmatprep.subr.bf16.mxu0 0
    %678 = vmatpush1.bf16.msra.mxu0 0
    %679 = vmatprep.subr.bf16.mxu0 0
    %680 = vmatpush1.bf16.msra.mxu0 0
    %681 = vmatprep.subr.bf16.mxu0 0
    %682 = vmatpush1.bf16.msra.mxu0 0
    %683 = vmatprep.subr.bf16.mxu0 0
    %684 = vmatpush1.bf16.msra.mxu0 0
    %685 = vmatprep.subr.bf16.mxu0 0
    %686 = vmatpush1.bf16.msra.mxu0 0
    %687 = vmatprep.mubr.bf16.mxu0 0
    %688 = vmatmul.mubr.bf16.gmra.mrb[0].mxu0 %v650
    %v689 = vpop.f32.mrb[0].mxu0
    %v690 = vadd.f32 0.0, %v689
    %v691 = vpop.f32.mrb[0].mxu0
    %v692 = vpop.f32.mrb[0].mxu0
    %v693 = vadd.f32 0.0, %v692
    %v694 = vpop.f32.mrb[0].mxu0
    %695 = vmatprep.mubr.bf16.mxu0 0
    %696 = vmatmul.mubr.bf16.gmra.mrb[0].mxu0 %v653
    %v697 = vpop.f32.mrb[0].mxu0
    %v698 = vadd.f32 0.0, %v697
    %v699 = vpop.f32.mrb[0].mxu0
    %v700 = vpop.f32.mrb[0].mxu0
    %v701 = vadd.f32 0.0, %v700
    %v702 = vpop.f32.mrb[0].mxu0
    %703 = vdwg.mxu0
    %v704 = vadd.f32 %v464, %v690
    %v705 = vadd.f32 %v465, %v693
    %v706 = vadd.f32 %v466, %v698
    %v707 = vadd.f32 %v467, %v701
    %708 = vrot.lane.b32.xlu0 %v468, 96
    %v709 = vpop.permute.xlu0 %708
    %710 = vrot.lane.b32.xlu0 %v469, 96
    %v711 = vpop.permute.xlu0 %710
    %712 = vrot.lane.b32.xlu0 %v468, 32
    %v713 = vpop.permute.xlu0 %712
    %714 = vrot.lane.b32.xlu0 %v469, 32
    %v715 = vpop.permute.xlu0 %714
    %v717 = vsel %vm476, %v709, 0
    %v720 = vsel %vm476, %v711, 0
    %v723 = vsel %vm476, %v713, 0
    %v726 = vsel %vm476, %v715, 0
    %728 = vmatprep.subr.bf16.mxu0 0
    %729 = vmatpush1.bf16.xpose.msra.mxu0 %v723
    %730 = vmatprep.subr.bf16.mxu0 0
    %731 = vmatpush1.bf16.xpose.msra.mxu0 %v726
    %732 = vmatprep.subr.bf16.mxu0 0
    %733 = vmatpush1.bf16.xpose.msra.mxu0 0
    %734 = vmatprep.subr.bf16.mxu0 0
    %735 = vmatpush1.bf16.xpose.msra.mxu0 0
    %736 = vmatprep.subr.bf16.mxu0 0
    %737 = vmatpush1.bf16.xpose.msra.mxu0 0
    %738 = vmatprep.subr.bf16.mxu0 0
    %739 = vmatpush1.bf16.xpose.msra.mxu0 0
    %740 = vmatprep.subr.bf16.mxu0 0
    %741 = vmatpush1.bf16.xpose.msra.mxu0 0
    %742 = vmatprep.subr.bf16.mxu0 0
    %743 = vmatpush1.bf16.xpose.msra.mxu0 0
    %744 = vmatprep.subr.bf16.mxu0 0
    %745 = vmatpush1.bf16.xpose.msra.mxu0 0
    %746 = vmatprep.subr.bf16.mxu0 0
    %747 = vmatpush1.bf16.xpose.msra.mxu0 0
    %748 = vmatprep.subr.bf16.mxu0 0
    %749 = vmatpush1.bf16.xpose.msra.mxu0 0
    %750 = vmatprep.subr.bf16.mxu0 0
    %751 = vmatpush1.bf16.xpose.msra.mxu0 0
    %752 = vmatprep.subr.bf16.mxu0 0
    %753 = vmatpush1.bf16.xpose.msra.mxu0 0
    %754 = vmatprep.subr.bf16.mxu0 0
    %755 = vmatpush1.bf16.xpose.msra.mxu0 0
    %756 = vmatprep.subr.bf16.mxu0 0
    %757 = vmatpush1.bf16.xpose.msra.mxu0 0
    %758 = vmatprep.subr.bf16.mxu0 0
    %759 = vmatpush1.bf16.xpose.msra.mxu0 0
    %760 = vmatprep.mubr.bf16.mxu0 0
    %761 = vmatmul.mubr.bf16.gmra.mrb[0].mxu0 %v717
    %v762 = vpop.f32.mrb[0].mxu0
    %v763 = vadd.f32 %v356, %v762
    %v764 = vpop.f32.mrb[0].mxu0
    %v765 = vpop.f32.mrb[0].mxu0
    %v766 = vadd.f32 %v357, %v765
    %v767 = vpop.f32.mrb[0].mxu0
    %768 = vmatprep.mubr.bf16.mxu0 0
    %769 = vmatmul.mubr.bf16.gmra.mrb[0].mxu0 %v720
    %v770 = vpop.f32.mrb[0].mxu0
    %v771 = vadd.f32 %v358, %v770
    %v772 = vpop.f32.mrb[0].mxu0
    %v773 = vpop.f32.mrb[0].mxu0
    %v774 = vadd.f32 %v359, %v773
    %v775 = vpop.f32.mrb[0].mxu0
    %776 = vdwg.mxu0
    %v777 = vsel %vm476, %v763, -inf
    %778 = vmax.xlane.f32.xlu0 %v777
    %v779 = vpop.xlane.xlu0 %778
    %v780 = vsel %vm476, %v766, -inf
    %781 = vmax.xlane.f32.xlu0 %v780
    %v782 = vpop.xlane.xlu0 %781
    %v783 = vsel %vm476, %v771, -inf
    %784 = vmax.xlane.f32.xlu0 %v783
    %v785 = vpop.xlane.xlu0 %784
    %v786 = vsel %vm476, %v774, -inf
    %787 = vmax.xlane.f32.xlu0 %v786
    %v788 = vpop.xlane.xlu0 %787
    %v789 = vsub.f32 %v763, %v779
    %v790 = vsub.f32 %v766, %v782
    %v791 = vsub.f32 %v771, %v785
    %v792 = vsub.f32 %v774, %v788
    %v793 = vmul.f32 %v789, 1.442695
    %v794 = vpow.pop %v793
    %v795 = vmul.f32 %v790, 1.442695
    %v796 = vpow.pop %v795
    %v797 = vmul.f32 %v791, 1.442695
    %v798 = vpow.pop %v797
    %v799 = vmul.f32 %v792, 1.442695
    %v800 = vpow.pop %v799
    %v801 = vsel %vm476, %v794, 0.0
    %802 = vadd.xlane.f32.xlu0 %v801
    %v803 = vpop.xlane.xlu0 %802
    %v804 = vsel %vm476, %v796, 0.0
    %805 = vadd.xlane.f32.xlu0 %v804
    %v806 = vpop.xlane.xlu0 %805
    %v807 = vsel %vm476, %v798, 0.0
    %808 = vadd.xlane.f32.xlu0 %v807
    %v809 = vpop.xlane.xlu0 %808
    %v810 = vsel %vm476, %v800, 0.0
    %811 = vadd.xlane.f32.xlu0 %v810
    %v812 = vpop.xlane.xlu0 %811
    %v813 = vrcp.pop %v803
    %v814 = vrcp.pop %v806
    %v815 = vrcp.pop %v809
    %v816 = vrcp.pop %v812
    %v817 = vmul.f32 %v794, %v813
    %v818 = vmul.f32 %v796, %v814
    %v819 = vmul.f32 %v798, %v815
    %v820 = vmul.f32 %v800, %v816
    %v821 = vpack.c.bf16 %v818, %v817
    %v822 = vpack.c.bf16 %v820, %v819
    %825 = vrot.lane.b32.xlu0 %v584, 96
    %v826 = vpop.permute.xlu0 %825
    %827 = vrot.lane.b32.xlu0 %v585, 96
    %v828 = vpop.permute.xlu0 %827
    %v832 = vsel %vm476, %v821, 0
    %v835 = vsel %vm476, %v822, 0
    %837 = vmatprep.subr.bf16.mxu0 0
    %838 = vmatpush1.bf16.msra.mxu0 %v826
    %839 = vmatprep.subr.bf16.mxu0 0
    %840 = vmatpush1.bf16.msra.mxu0 %v828
    %841 = vmatprep.subr.bf16.mxu0 0
    %842 = vmatpush1.bf16.msra.mxu0 0
    %843 = vmatprep.subr.bf16.mxu0 0
    %844 = vmatpush1.bf16.msra.mxu0 0
    %845 = vmatprep.subr.bf16.mxu0 0
    %846 = vmatpush1.bf16.msra.mxu0 0
    %847 = vmatprep.subr.bf16.mxu0 0
    %848 = vmatpush1.bf16.msra.mxu0 0
    %849 = vmatprep.subr.bf16.mxu0 0
    %850 = vmatpush1.bf16.msra.mxu0 0
    %851 = vmatprep.subr.bf16.mxu0 0
    %852 = vmatpush1.bf16.msra.mxu0 0
    %853 = vmatprep.subr.bf16.mxu0 0
    %854 = vmatpush1.bf16.msra.mxu0 0
    %855 = vmatprep.subr.bf16.mxu0 0
    %856 = vmatpush1.bf16.msra.mxu0 0
    %857 = vmatprep.subr.bf16.mxu0 0
    %858 = vmatpush1.bf16.msra.mxu0 0
    %859 = vmatprep.subr.bf16.mxu0 0
    %860 = vmatpush1.bf16.msra.mxu0 0
    %861 = vmatprep.subr.bf16.mxu0 0
    %862 = vmatpush1.bf16.msra.mxu0 0
    %863 = vmatprep.subr.bf16.mxu0 0
    %864 = vmatpush1.bf16.msra.mxu0 0
    %865 = vmatprep.subr.bf16.mxu0 0
    %866 = vmatpush1.bf16.msra.mxu0 0
    %867 = vmatprep.subr.bf16.mxu0 0
    %868 = vmatpush1.bf16.msra.mxu0 0
    %869 = vmatprep.mubr.bf16.mxu0 0
    %870 = vmatmul.mubr.bf16.gmra.mrb[0].mxu0 %v832
    %v871 = vpop.f32.mrb[0].mxu0
    %v872 = vadd.f32 0.0, %v871
    %v873 = vpop.f32.mrb[0].mxu0
    %v874 = vpop.f32.mrb[0].mxu0
    %v875 = vadd.f32 0.0, %v874
    %v876 = vpop.f32.mrb[0].mxu0
    %877 = vmatprep.mubr.bf16.mxu0 0
    %878 = vmatmul.mubr.bf16.gmra.mrb[0].mxu0 %v835
    %v879 = vpop.f32.mrb[0].mxu0
    %v880 = vadd.f32 0.0, %v879
    %v881 = vpop.f32.mrb[0].mxu0
    %v882 = vpop.f32.mrb[0].mxu0
    %v883 = vadd.f32 0.0, %v882
    %v884 = vpop.f32.mrb[0].mxu0
    %885 = vdwg.mxu0
    %s886 = scalar_lea.vmem %s10, 32
    %v887 = vld [vmem:[%s886] sm:$0xff]
    %v888 = vld [vmem:[%s886 + $0x8] sm:$0xff]
    %v889 = vld [vmem:[%s886 + $0x10] sm:$0xff]
    %v890 = vld [vmem:[%s886 + $0x18] sm:$0xff]
    %v891 = vpack.c.bf16 %v875, %v872
    %v892 = vpack.c.bf16 %v883, %v880
    %v893 = vpack.c.bf16 %v888, %v887
    %v894 = vpack.c.bf16 %v890, %v889
    %v896 = vsel %vm476, %v891, 0
    %v899 = vsel %vm476, %v892, 0
    %901 = vmatprep.subr.bf16.mxu0 0
    %902 = vmatpush1.bf16.msra.mxu0 %v893
    %903 = vmatprep.subr.bf16.mxu0 0
    %904 = vmatpush1.bf16.msra.mxu0 %v894
    %905 = vmatprep.subr.bf16.mxu0 0
    %906 = vmatpush1.bf16.msra.mxu0 0
    %907 = vmatprep.subr.bf16.mxu0 0
    %908 = vmatpush1.bf16.msra.mxu0 0
    %909 = vmatprep.subr.bf16.mxu0 0
    %910 = vmatpush1.bf16.msra.mxu0 0
    %911 = vmatprep.subr.bf16.mxu0 0
    %912 = vmatpush1.bf16.msra.mxu0 0
    %913 = vmatprep.subr.bf16.mxu0 0
    %914 = vmatpush1.bf16.msra.mxu0 0
    %915 = vmatprep.subr.bf16.mxu0 0
    %916 = vmatpush1.bf16.msra.mxu0 0
    %917 = vmatprep.subr.bf16.mxu0 0
    %918 = vmatpush1.bf16.msra.mxu0 0
    %919 = vmatprep.subr.bf16.mxu0 0
    %920 = vmatpush1.bf16.msra.mxu0 0
    %921 = vmatprep.subr.bf16.mxu0 0
    %922 = vmatpush1.bf16.msra.mxu0 0
    %923 = vmatprep.subr.bf16.mxu0 0
    %924 = vmatpush1.bf16.msra.mxu0 0
    %925 = vmatprep.subr.bf16.mxu0 0
    %926 = vmatpush1.bf16.msra.mxu0 0
    %927 = vmatprep.subr.bf16.mxu0 0
    %928 = vmatpush1.bf16.msra.mxu0 0
    %929 = vmatprep.subr.bf16.mxu0 0
    %930 = vmatpush1.bf16.msra.mxu0 0
    %931 = vmatprep.subr.bf16.mxu0 0
    %932 = vmatpush1.bf16.msra.mxu0 0
    %933 = vmatprep.mubr.bf16.mxu0 0
    %934 = vmatmul.mubr.bf16.gmra.mrb[0].mxu0 %v896
    %v935 = vpop.f32.mrb[0].mxu0
    %v936 = vadd.f32 0.0, %v935
    %v937 = vpop.f32.mrb[0].mxu0
    %v938 = vpop.f32.mrb[0].mxu0
    %v939 = vadd.f32 0.0, %v938
    %v940 = vpop.f32.mrb[0].mxu0
    %941 = vmatprep.mubr.bf16.mxu0 0
    %942 = vmatmul.mubr.bf16.gmra.mrb[0].mxu0 %v899
    %v943 = vpop.f32.mrb[0].mxu0
    %v944 = vadd.f32 0.0, %v943
    %v945 = vpop.f32.mrb[0].mxu0
    %v946 = vpop.f32.mrb[0].mxu0
    %v947 = vadd.f32 0.0, %v946
    %v948 = vpop.f32.mrb[0].mxu0
    %949 = vdwg.mxu0
    %v950 = vadd.f32 %v704, %v936
    %v951 = vadd.f32 %v705, %v939
    %v952 = vadd.f32 %v706, %v944
    %v953 = vadd.f32 %v707, %v947
    %v954 = vld [vmem:[%s12] sm:$0x1]
    %v955 = vld [vmem:[%s13] sm:$0x1]
    %v956 = vsel %vm158, %v950, 0.0
    %957 = vadd.xlane.f32.xlu0 %v956
    %v958 = vpop.xlane.xlu0 %957
    %v959 = vsel %vm158, %v951, 0.0
    %960 = vadd.xlane.f32.xlu0 %v959
    %v961 = vpop.xlane.xlu0 %960
    %v962 = vsel %vm158, %v952, 0.0
    %963 = vadd.xlane.f32.xlu0 %v962
    %v964 = vpop.xlane.xlu0 %963
    %v965 = vsel %vm158, %v953, 0.0
    %966 = vadd.xlane.f32.xlu0 %v965
    %v967 = vpop.xlane.xlu0 %966
    %v968 = vmul.f32 %v958, %v270
    %v969 = vmul.f32 %v961, %v270
    %v970 = vmul.f32 %v964, %v270
    %v971 = vmul.f32 %v967, %v270
    %v972 = vsub.f32 %v950, %v968
    %v973 = vsub.f32 %v951, %v969
    %v974 = vsub.f32 %v952, %v970
    %v975 = vsub.f32 %v953, %v971
    %v976 = vmul.f32 %v972, %v972
    %v977 = vmul.f32 %v973, %v973
    %v978 = vmul.f32 %v974, %v974
    %v979 = vmul.f32 %v975, %v975
    %v980 = vsel %vm158, %v976, 0.0
    %981 = vadd.xlane.f32.xlu0 %v980
    %v982 = vpop.xlane.xlu0 %981
    %v983 = vsel %vm158, %v977, 0.0
    %984 = vadd.xlane.f32.xlu0 %v983
    %v985 = vpop.xlane.xlu0 %984
    %v986 = vsel %vm158, %v978, 0.0
    %987 = vadd.xlane.f32.xlu0 %v986
    %v988 = vpop.xlane.xlu0 %987
    %v989 = vsel %vm158, %v979, 0.0
    %990 = vadd.xlane.f32.xlu0 %v989
    %v991 = vpop.xlane.xlu0 %990
    %v992 = vmul.f32 %v982, %v270
    %v993 = vmul.f32 %v985, %v270
    %v994 = vmul.f32 %v988, %v270
    %v995 = vmul.f32 %v991, %v270
    %v996 = vadd.f32 %v992, 1e-12
    %v997 = vadd.f32 %v993, 1e-12
    %v998 = vadd.f32 %v994, 1e-12
    %v999 = vadd.f32 %v995, 1e-12
    %v1000 = vrsqrt.pop %v996
    %v1001 = vrsqrt.pop %v997
    %v1002 = vrsqrt.pop %v998
    %v1003 = vrsqrt.pop %v999
    %v1004 = vmul.f32 %v972, %v1000
    %v1005 = vmul.f32 %v973, %v1001
    %v1006 = vmul.f32 %v974, %v1002
    %v1007 = vmul.f32 %v975, %v1003
    %v1009 = vlaneseq
    %v1010 = vshrl.u32 %v1009, 7
    %v1011 = vsub.s32 0, %v1010
    %v1012 = vrot.slane %v954, %v1011
    %v1014 = vmul.f32 %v1004, %v1012
    %v1015 = vmul.f32 %v1005, %v1012
    %v1016 = vmul.f32 %v1006, %v1012
    %v1017 = vmul.f32 %v1007, %v1012
    %v1019 = vlaneseq
    %v1020 = vshrl.u32 %v1019, 7
    %v1021 = vsub.s32 0, %v1020
    %v1022 = vrot.slane %v955, %v1021
    %v1024 = vadd.f32 %v1014, %v1022
    %v1025 = vadd.f32 %v1015, %v1022
    %v1026 = vadd.f32 %v1016, %v1022
    %v1027 = vadd.f32 %v1017, %v1022
    %v1028 = vld [vmem:[#allocation2] sm:$0xff]
    %v1029 = vld [vmem:[#allocation2 + $0x8] sm:$0xff]
    %v1030 = vld [vmem:[#allocation2 + $0x10] sm:$0xff]
    %v1031 = vld [vmem:[#allocation2 + $0x18] sm:$0xff]
    %v1032 = vld [vmem:[#allocation2 + $0x20] sm:$0xff]
    %v1033 = vld [vmem:[#allocation2 + $0x28] sm:$0xff]
    %v1034 = vld [vmem:[#allocation2 + $0x30] sm:$0xff]
    %v1035 = vld [vmem:[#allocation2 + $0x38] sm:$0xff]
    %v1036 = vpack.c.bf16 %v1025, %v1024
    %v1037 = vpack.c.bf16 %v1027, %v1026
    %v1038 = vpack.c.bf16 %v1029, %v1028
    %v1039 = vpack.c.bf16 %v1031, %v1030
    %v1040 = vpack.c.bf16 %v1033, %v1032
    %v1041 = vpack.c.bf16 %v1035, %v1034
    %v1042 = vld [vmem:[%s15] sm:$0x1]
    %v1044 = vlaneseq
    %v1045 = vshrl.u32 %v1044, 7
    %v1046 = vsub.s32 0, %v1045
    %v1047 = vrot.slane %v1042, %v1046
    %v1050 = vsel %vm158, %v1036, 0
    %v1053 = vsel %vm158, %v1037, 0
    %1055 = vmatprep.subr.bf16.mxu0 0
    %1056 = vmatpush1.bf16.msra.mxu0 %v1038
    %1057 = vmatprep.subr.bf16.mxu0 0
    %1058 = vmatpush1.bf16.msra.mxu0 %v1039
    %1059 = vmatprep.subr.bf16.mxu0 0
    %1060 = vmatpush1.bf16.msra.mxu0 %v1040
    %1061 = vmatprep.subr.bf16.mxu0 0
    %1062 = vmatpush1.bf16.msra.mxu0 %v1041
    %1063 = vmatprep.subr.bf16.mxu0 0
    %1064 = vmatpush1.bf16.msra.mxu0 0
    %1065 = vmatprep.subr.bf16.mxu0 0
    %1066 = vmatpush1.bf16.msra.mxu0 0
    %1067 = vmatprep.subr.bf16.mxu0 0
    %1068 = vmatpush1.bf16.msra.mxu0 0
    %1069 = vmatprep.subr.bf16.mxu0 0
    %1070 = vmatpush1.bf16.msra.mxu0 0
    %1071 = vmatprep.subr.bf16.mxu0 0
    %1072 = vmatpush1.bf16.msra.mxu0 0
    %1073 = vmatprep.subr.bf16.mxu0 0
    %1074 = vmatpush1.bf16.msra.mxu0 0
    %1075 = vmatprep.subr.bf16.mxu0 0
    %1076 = vmatpush1.bf16.msra.mxu0 0
    %1077 = vmatprep.subr.bf16.mxu0 0
    %1078 = vmatpush1.bf16.msra.mxu0 0
    %1079 = vmatprep.subr.bf16.mxu0 0
    %1080 = vmatpush1.bf16.msra.mxu0 0
    %1081 = vmatprep.subr.bf16.mxu0 0
    %1082 = vmatpush1.bf16.msra.mxu0 0
    %1083 = vmatprep.subr.bf16.mxu0 0
    %1084 = vmatpush1.bf16.msra.mxu0 0
    %1085 = vmatprep.subr.bf16.mxu0 0
    %1086 = vmatpush1.bf16.msra.mxu0 0
    %1087 = vmatprep.mubr.bf16.mxu0 0
    %1088 = vmatmul.mubr.bf16.gmra.mrb[0].mxu0 %v1050
    %v1089 = vpop.f32.mrb[0].mxu0
    %v1090 = vadd.f32 %v1047, %v1089
    %v1091 = vpop.f32.mrb[0].mxu0
    %v1092 = vpop.f32.mrb[0].mxu0
    %v1093 = vadd.f32 %v1047, %v1092
    %v1094 = vpop.f32.mrb[0].mxu0
    %1095 = vmatprep.mubr.bf16.mxu0 0
    %1096 = vmatmul.mubr.bf16.gmra.mrb[0].mxu0 %v1053
    %v1097 = vpop.f32.mrb[0].mxu0
    %v1098 = vadd.f32 %v1047, %v1097
    %v1099 = vpop.f32.mrb[0].mxu0
    %v1100 = vpop.f32.mrb[0].mxu0
    %v1101 = vadd.f32 %v1047, %v1100
    %v1102 = vpop.f32.mrb[0].mxu0
    %1103 = vdwg.mxu0
    %v1104 = vmul.f32 %v1090, %v1090
    %v1105 = vmul.f32 %v1093, %v1093
    %v1106 = vmul.f32 %v1098, %v1098
    %v1107 = vmul.f32 %v1101, %v1101
    %v1108 = vmul.f32 %v1090, %v1104
    %v1109 = vmul.f32 %v1093, %v1105
    %v1110 = vmul.f32 %v1098, %v1106
    %v1111 = vmul.f32 %v1101, %v1107
    %v1112 = vmul.f32 %v1108, 0.044715
    %v1113 = vmul.f32 %v1109, 0.044715
    %v1114 = vmul.f32 %v1110, 0.044715
    %v1115 = vmul.f32 %v1111, 0.044715
    %v1116 = vadd.f32 %v1090, %v1112
    %v1117 = vadd.f32 %v1093, %v1113
    %v1118 = vadd.f32 %v1098, %v1114
    %v1119 = vadd.f32 %v1101, %v1115
    %v1120 = vmul.f32 %v1116, 0.7978846
    %v1121 = vmul.f32 %v1117, 0.7978846
    %v1122 = vmul.f32 %v1118, 0.7978846
    %v1123 = vmul.f32 %v1119, 0.7978846
    %v1124 = vtanh.pop %v1120
    %v1125 = vtanh.pop %v1121
    %v1126 = vtanh.pop %v1122
    %v1127 = vtanh.pop %v1123
    %v1128 = vadd.f32 %v1124, 1.0
    %v1129 = vadd.f32 %v1125, 1.0
    %v1130 = vadd.f32 %v1126, 1.0
    %v1131 = vadd.f32 %v1127, 1.0
    %v1132 = vmul.f32 %v1128, 0.5
    %v1133 = vmul.f32 %v1129, 0.5
    %v1134 = vmul.f32 %v1130, 0.5
    %v1135 = vmul.f32 %v1131, 0.5
    %v1136 = vmul.f32 %v1090, %v1132
    %v1137 = vmul.f32 %v1093, %v1133
    %v1138 = vmul.f32 %v1098, %v1134
    %v1139 = vmul.f32 %v1101, %v1135
    %v1140 = vld [vmem:[%s16] sm:$0xff]
    %v1141 = vld [vmem:[%s16 + $0x8] sm:$0xff]
    %v1142 = vld [vmem:[%s16 + $0x10] sm:$0xff]
    %v1143 = vld [vmem:[%s16 + $0x18] sm:$0xff]
    %v1144 = vld [vmem:[%s16 + $0x20] sm:$0xff]
    %v1145 = vld [vmem:[%s16 + $0x28] sm:$0xff]
    %v1146 = vld [vmem:[%s16 + $0x30] sm:$0xff]
    %v1147 = vld [vmem:[%s16 + $0x38] sm:$0xff]
    %v1148 = vld [vmem:[%s16 + $0x40] sm:$0xff]
    %v1149 = vld [vmem:[%s16 + $0x48] sm:$0xff]
    %v1150 = vld [vmem:[%s16 + $0x50] sm:$0xff]
    %v1151 = vld [vmem:[%s16 + $0x58] sm:$0xff]
    %v1152 = vld [vmem:[%s16 + $0x60] sm:$0xff]
    %v1153 = vld [vmem:[%s16 + $0x68] sm:$0xff]
    %v1154 = vld [vmem:[%s16 + $0x70] sm:$0xff]
    %v1155 = vld [vmem:[%s16 + $0x78] sm:$0xff]
    %v1156 = vpack.c.bf16 %v1137, %v1136
    %v1157 = vpack.c.bf16 %v1139, %v1138
    %v1158 = vpack.c.bf16 %v1141, %v1140
    %v1159 = vpack.c.bf16 %v1143, %v1142
    %v1160 = vpack.c.bf16 %v1145, %v1144
    %v1161 = vpack.c.bf16 %v1147, %v1146
    %v1162 = vpack.c.bf16 %v1149, %v1148
    %v1163 = vpack.c.bf16 %v1151, %v1150
    %v1164 = vpack.c.bf16 %v1153, %v1152
    %v1165 = vpack.c.bf16 %v1155, %v1154
    %v1166 = vld [vmem:[%s17] sm:$0x1]
    %v1168 = vlaneseq
    %v1169 = vshrl.u32 %v1168, 7
    %v1170 = vsub.s32 0, %v1169
    %v1171 = vrot.slane %v1166, %v1170
    %1173 = vmatprep.subr.bf16.mxu0 0
    %1174 = vmatpush1.bf16.msra.mxu0 %v1158
    %1175 = vmatprep.subr.bf16.mxu0 0
    %1176 = vmatpush1.bf16.msra.mxu0 %v1159
    %1177 = vmatprep.subr.bf16.mxu0 0
    %1178 = vmatpush1.bf16.msra.mxu0 %v1160
    %1179 = vmatprep.subr.bf16.mxu0 0
    %1180 = vmatpush1.bf16.msra.mxu0 %v1161
    %1181 = vmatprep.subr.bf16.mxu0 0
    %1182 = vmatpush1.bf16.msra.mxu0 %v1162
    %1183 = vmatprep.subr.bf16.mxu0 0
    %1184 = vmatpush1.bf16.msra.mxu0 %v1163
    %1185 = vmatprep.subr.bf16.mxu0 0
    %1186 = vmatpush1.bf16.msra.mxu0 %v1164
    %1187 = vmatprep.subr.bf16.mxu0 0
    %1188 = vmatpush1.bf16.msra.mxu0 %v1165
    %1189 = vmatprep.subr.bf16.mxu0 0
    %1190 = vmatpush1.bf16.msra.mxu0 0
    %1191 = vmatprep.subr.bf16.mxu0 0
    %1192 = vmatpush1.bf16.msra.mxu0 0
    %1193 = vmatprep.subr.bf16.mxu0 0
    %1194 = vmatpush1.bf16.msra.mxu0 0
    %1195 = vmatprep.subr.bf16.mxu0 0
    %1196 = vmatpush1.bf16.msra.mxu0 0
    %1197 = vmatprep.subr.bf16.mxu0 0
    %1198 = vmatpush1.bf16.msra.mxu0 0
    %1199 = vmatprep.subr.bf16.mxu0 0
    %1200 = vmatpush1.bf16.msra.mxu0 0
    %1201 = vmatprep.subr.bf16.mxu0 0
    %1202 = vmatpush1.bf16.msra.mxu0 0
    %1203 = vmatprep.subr.bf16.mxu0 0
    %1204 = vmatpush1.bf16.msra.mxu0 0
    %1205 = vmatprep.mubr.bf16.mxu0 0
    %1206 = vmatmul.mubr.bf16.gmra.mrb[0].mxu0 %v1156
    %v1207 = vpop.f32.mrb[0].mxu0
    %v1208 = vadd.f32 %v1171, %v1207
    %v1209 = vpop.f32.mrb[0].mxu0
    %v1210 = vpop.f32.mrb[0].mxu0
    %v1211 = vadd.f32 %v1171, %v1210
    %v1212 = vpop.f32.mrb[0].mxu0
    %1213 = vmatprep.mubr.bf16.mxu0 0
    %1214 = vmatmul.mubr.bf16.gmra.mrb[0].mxu0 %v1157
    %v1215 = vpop.f32.mrb[0].mxu0
    %v1216 = vadd.f32 %v1171, %v1215
    %v1217 = vpop.f32.mrb[0].mxu0
    %v1218 = vpop.f32.mrb[0].mxu0
    %v1219 = vadd.f32 %v1171, %v1218
    %v1220 = vpop.f32.mrb[0].mxu0
    %1221 = vdwg.mxu0
    %v1222 = vadd.f32 %v1208, %v1024
    %v1223 = vadd.f32 %v1211, %v1025
    %v1224 = vadd.f32 %v1216, %v1026
    %v1225 = vadd.f32 %v1219, %v1027
    %v1226 = vld [vmem:[#allocation5] sm:$0x1]
    %v1227 = vld [vmem:[#allocation7] sm:$0x1]
    %v1228 = vsel %vm158, %v1222, 0.0
    %1229 = vadd.xlane.f32.xlu0 %v1228
    %v1230 = vpop.xlane.xlu0 %1229
    %v1231 = vsel %vm158, %v1223, 0.0
    %1232 = vadd.xlane.f32.xlu0 %v1231
    %v1233 = vpop.xlane.xlu0 %1232
    %v1234 = vsel %vm158, %v1224, 0.0
    %1235 = vadd.xlane.f32.xlu0 %v1234
    %v1236 = vpop.xlane.xlu0 %1235
    %v1237 = vsel %vm158, %v1225, 0.0
    %1238 = vadd.xlane.f32.xlu0 %v1237
    %v1239 = vpop.xlane.xlu0 %1238
    %v1240 = vmul.f32 %v1230, %v270
    %v1241 = vmul.f32 %v1233, %v270
    %v1242 = vmul.f32 %v1236, %v270
    %v1243 = vmul.f32 %v1239, %v270
    %v1244 = vsub.f32 %v1222, %v1240
    %v1245 = vsub.f32 %v1223, %v1241
    %v1246 = vsub.f32 %v1224, %v1242
    %v1247 = vsub.f32 %v1225, %v1243
    %v1248 = vmul.f32 %v1244, %v1244
    %v1249 = vmul.f32 %v1245, %v1245
    %v1250 = vmul.f32 %v1246, %v1246
    %v1251 = vmul.f32 %v1247, %v1247
    %v1252 = vsel %vm158, %v1248, 0.0
    %1253 = vadd.xlane.f32.xlu0 %v1252
    %v1254 = vpop.xlane.xlu0 %1253
    %v1255 = vsel %vm158, %v1249, 0.0
    %1256 = vadd.xlane.f32.xlu0 %v1255
    %v1257 = vpop.xlane.xlu0 %1256
    %v1258 = vsel %vm158, %v1250, 0.0
    %1259 = vadd.xlane.f32.xlu0 %v1258
    %v1260 = vpop.xlane.xlu0 %1259
    %v1261 = vsel %vm158, %v1251, 0.0
    %1262 = vadd.xlane.f32.xlu0 %v1261
    %v1263 = vpop.xlane.xlu0 %1262
    %v1264 = vmul.f32 %v1254, %v270
    %v1265 = vmul.f32 %v1257, %v270
    %v1266 = vmul.f32 %v1260, %v270
    %v1267 = vmul.f32 %v1263, %v270
    %v1268 = vadd.f32 %v1264, 1e-12
    %v1269 = vadd.f32 %v1265, 1e-12
    %v1270 = vadd.f32 %v1266, 1e-12
    %v1271 = vadd.f32 %v1267, 1e-12
    %v1272 = vrsqrt.pop %v1268
    %v1273 = vrsqrt.pop %v1269
    %v1274 = vrsqrt.pop %v1270
    %v1275 = vrsqrt.pop %v1271
    %v1276 = vmul.f32 %v1244, %v1272
    %v1277 = vmul.f32 %v1245, %v1273
    %v1278 = vmul.f32 %v1246, %v1274
    %v1279 = vmul.f32 %v1247, %v1275
    %v1281 = vlaneseq
    %v1282 = vshrl.u32 %v1281, 7
    %v1283 = vsub.s32 0, %v1282
    %v1284 = vrot.slane %v1226, %v1283
    %v1286 = vmul.f32 %v1276, %v1284
    %v1287 = vmul.f32 %v1277, %v1284
    %v1288 = vmul.f32 %v1278, %v1284
    %v1289 = vmul.f32 %v1279, %v1284
    %v1291 = vlaneseq
    %v1292 = vshrl.u32 %v1291, 7
    %v1293 = vsub.s32 0, %v1292
    %v1294 = vrot.slane %v1227, %v1293
    %v1296 = vadd.f32 %v1286, %v1294
    %v1297 = vadd.f32 %v1287, %v1294
    %v1298 = vadd.f32 %v1288, %v1294
    %v1299 = vadd.f32 %v1289, %v1294
    %s1300 = scalar_lea.vmem %s8, 128
    %v1301 = vld [vmem:[%s1300] sm:$0xff]
    %v1302 = vld [vmem:[%s1300 + $0x8] sm:$0xff]
    %v1303 = vld [vmem:[%s1300 + $0x10] sm:$0xff]
    %v1304 = vld [vmem:[%s1300 + $0x18] sm:$0xff]
    %v1305 = vld [vmem:[%s1300 + $0x20] sm:$0xff]
    %v1306 = vld [vmem:[%s1300 + $0x28] sm:$0xff]
    %v1307 = vld [vmem:[%s1300 + $0x30] sm:$0xff]
    %v1308 = vld [vmem:[%s1300 + $0x38] sm:$0xff]
    %v1309 = vld [vmem:[%s1300 + $0x40] sm:$0xff]
    %v1310 = vld [vmem:[%s1300 + $0x48] sm:$0xff]
    %v1311 = vld [vmem:[%s1300 + $0x50] sm:$0xff]
    %v1312 = vld [vmem:[%s1300 + $0x58] sm:$0xff]
    %v1313 = vld [vmem:[%s1300 + $0x60] sm:$0xff]
    %v1314 = vld [vmem:[%s1300 + $0x68] sm:$0xff]
    %v1315 = vld [vmem:[%s1300 + $0x70] sm:$0xff]
    %v1316 = vld [vmem:[%s1300 + $0x78] sm:$0xff]
    %v1317 = vpack.c.bf16 %v1297, %v1296
    %v1318 = vpack.c.bf16 %v1299, %v1298
    %v1319 = vpack.c.bf16 %v1303, %v1301
    %v1320 = vpack.c.bf16 %v1304, %v1302
    %v1321 = vpack.c.bf16 %v1307, %v1305
    %v1322 = vpack.c.bf16 %v1308, %v1306
    %v1323 = vpack.c.bf16 %v1311, %v1309
    %v1324 = vpack.c.bf16 %v1312, %v1310
    %v1325 = vpack.c.bf16 %v1315, %v1313
    %v1326 = vpack.c.bf16 %v1316, %v1314
    %s1327 = scalar_lea.vmem %s9, 2
    %v1328 = vld [vmem:[%s1327] sm:$0x3]
    %v1330 = vlaneseq
    %v1331 = vshrl.u32 %v1330, 7
    %v1332 = vsub.s32 0, %v1331
    %v1333 = vrot.slane %v1328, %v1332
    %v1334 = vlaneseq
    %v1335 = vshrl.u32 %v1334, 7
    %v1336 = vsub.s32 1, %v1335
    %v1337 = vrot.slane %v1328, %v1336
    %v1341 = vsel %vm158, %v1317, 0
    %v1344 = vsel %vm158, %v1318, 0
    %1346 = vmatprep.subr.bf16.mxu0 %v1320
    %1347 = vmatpush1.bf16.msra.mxu0 %v1319
    %1348 = vmatprep.subr.bf16.mxu0 %v1322
    %1349 = vmatpush1.bf16.msra.mxu0 %v1321
    %1350 = vmatprep.subr.bf16.mxu0 %v1324
    %1351 = vmatpush1.bf16.msra.mxu0 %v1323
    %1352 = vmatprep.subr.bf16.mxu0 %v1326
    %1353 = vmatpush1.bf16.msra.mxu0 %v1325
    %1354 = vmatprep.subr.bf16.mxu0 0
    %1355 = vmatpush1.bf16.msra.mxu0 0
    %1356 = vmatprep.subr.bf16.mxu0 0
    %1357 = vmatpush1.bf16.msra.mxu0 0
    %1358 = vmatprep.subr.bf16.mxu0 0
    %1359 = vmatpush1.bf16.msra.mxu0 0
    %1360 = vmatprep.subr.bf16.mxu0 0
    %1361 = vmatpush1.bf16.msra.mxu0 0
    %1362 = vmatprep.subr.bf16.mxu0 0
    %1363 = vmatpush1.bf16.msra.mxu0 0
    %1364 = vmatprep.subr.bf16.mxu0 0
    %1365 = vmatpush1.bf16.msra.mxu0 0
    %1366 = vmatprep.subr.bf16.mxu0 0
    %1367 = vmatpush1.bf16.msra.mxu0 0
    %1368 = vmatprep.subr.bf16.mxu0 0
    %1369 = vmatpush1.bf16.msra.mxu0 0
    %1370 = vmatprep.subr.bf16.mxu0 0
    %1371 = vmatpush1.bf16.msra.mxu0 0
    %1372 = vmatprep.subr.bf16.mxu0 0
    %1373 = vmatpush1.bf16.msra.mxu0 0
    %1374 = vmatprep.subr.bf16.mxu0 0
    %1375 = vmatpush1.bf16.msra.mxu0 0
    %1376 = vmatprep.subr.bf16.mxu0 0
    %1377 = vmatpush1.bf16.msra.mxu0 0
    %1378 = vmatprep.mubr.bf16.mxu0 0
    %1379 = vmatmul.mubr.bf16.gmra.mrb[0].mxu0 %v1341
    %v1380 = vpop.f32.mrb[0].mxu0
    %v1381 = vadd.f32 %v1333, %v1380
    %v1382 = vpop.f32.mrb[0].mxu0
    %v1383 = vadd.f32 %v1337, %v1382
    %v1384 = vpop.f32.mrb[0].mxu0
    %v1385 = vadd.f32 %v1333, %v1384
    %v1386 = vpop.f32.mrb[0].mxu0
    %v1387 = vadd.f32 %v1337, %v1386
    %1388 = vmatprep.mubr.bf16.mxu0 0
    %1389 = vmatmul.mubr.bf16.gmra.mrb[0].mxu0 %v1344
    %v1390 = vpop.f32.mrb[0].mxu0
    %v1391 = vadd.f32 %v1333, %v1390
    %v1392 = vpop.f32.mrb[0].mxu0
    %v1393 = vadd.f32 %v1337, %v1392
    %v1394 = vpop.f32.mrb[0].mxu0
    %v1395 = vadd.f32 %v1333, %v1394
    %v1396 = vpop.f32.mrb[0].mxu0
    %v1397 = vadd.f32 %v1337, %v1396
    %1398 = vdwg.mxu0
    %s1399 = scalar_lea.vmem %s11, 1
    %v1400 = vld [vmem:[%s1399] sm:$0x1]
    %v1402 = vlaneseq
    %v1403 = vshrl.u32 %v1402, 7
    %v1404 = vsub.s32 0, %v1403
    %v1405 = vrot.slane %v1400, %v1404
    %v1407 = vadd.f32 %v1296, %v1405
    %v1408 = vadd.f32 %v1297, %v1405
    %v1409 = vadd.f32 %v1298, %v1405
    %v1410 = vadd.f32 %v1299, %v1405
    %v1411 = vpack.c.bf16 %v1385, %v1381
    %v1412 = vpack.c.bf16 %v1395, %v1391
    %1415 = vrot.lane.b32.xlu0 %v1411, 64
    %v1416 = vpop.permute.xlu0 %1415
    %1417 = vrot.lane.b32.xlu0 %v1412, 64
    %v1418 = vpop.permute.xlu0 %1417
    %v1420 = vsel %vm476, %v1411, 0
    %v1423 = vsel %vm476, %v1412, 0
    %v1426 = vsel %vm476, %v1416, 0
    %v1429 = vsel %vm476, %v1418, 0
    %1431 = vmatprep.subr.bf16.mxu0 0
    %1432 = vmatpush1.bf16.xpose.msra.mxu0 %v1426
    %1433 = vmatprep.subr.bf16.mxu0 0
    %1434 = vmatpush1.bf16.xpose.msra.mxu0 %v1429
    %1435 = vmatprep.subr.bf16.mxu0 0
    %1436 = vmatpush1.bf16.xpose.msra.mxu0 0
    %1437 = vmatprep.subr.bf16.mxu0 0
    %1438 = vmatpush1.bf16.xpose.msra.mxu0 0
    %1439 = vmatprep.subr.bf16.mxu0 0
    %1440 = vmatpush1.bf16.xpose.msra.mxu0 0
    %1441 = vmatprep.subr.bf16.mxu0 0
    %1442 = vmatpush1.bf16.xpose.msra.mxu0 0
    %1443 = vmatprep.subr.bf16.mxu0 0
    %1444 = vmatpush1.bf16.xpose.msra.mxu0 0
    %1445 = vmatprep.subr.bf16.mxu0 0
    %1446 = vmatpush1.bf16.xpose.msra.mxu0 0
    %1447 = vmatprep.subr.bf16.mxu0 0
    %1448 = vmatpush1.bf16.xpose.msra.mxu0 0
    %1449 = vmatprep.subr.bf16.mxu0 0
    %1450 = vmatpush1.bf16.xpose.msra.mxu0 0
    %1451 = vmatprep.subr.bf16.mxu0 0
    %1452 = vmatpush1.bf16.xpose.msra.mxu0 0
    %1453 = vmatprep.subr.bf16.mxu0 0
    %1454 = vmatpush1.bf16.xpose.msra.mxu0 0
    %1455 = vmatprep.subr.bf16.mxu0 0
    %1456 = vmatpush1.bf16.xpose.msra.mxu0 0
    %1457 = vmatprep.subr.bf16.mxu0 0
    %1458 = vmatpush1.bf16.xpose.msra.mxu0 0
    %1459 = vmatprep.subr.bf16.mxu0 0
    %1460 = vmatpush1.bf16.xpose.msra.mxu0 0
    %1461 = vmatprep.subr.bf16.mxu0 0
    %1462 = vmatpush1.bf16.xpose.msra.mxu0 0
    %1463 = vmatprep.mubr.bf16.mxu0 0
    %1464 = vmatmul.mubr.bf16.gmra.mrb[0].mxu0 %v1420
    %v1465 = vpop.f32.mrb[0].mxu0
    %v1466 = vadd.f32 %v356, %v1465
    %v1467 = vpop.f32.mrb[0].mxu0
    %v1468 = vpop.f32.mrb[0].mxu0
    %v1469 = vadd.f32 %v357, %v1468
    %v1470 = vpop.f32.mrb[0].mxu0
    %1471 = vmatprep.mubr.bf16.mxu0 0
    %1472 = vmatmul.mubr.bf16.gmra.mrb[0].mxu0 %v1423
    %v1473 = vpop.f32.mrb[0].mxu0
    %v1474 = vadd.f32 %v358, %v1473
    %v1475 = vpop.f32.mrb[0].mxu0
    %v1476 = vpop.f32.mrb[0].mxu0
    %v1477 = vadd.f32 %v359, %v1476
    %v1478 = vpop.f32.mrb[0].mxu0
    %1479 = vdwg.mxu0
    %v1480 = vsel %vm476, %v1466, -inf
    %1481 = vmax.xlane.f32.xlu0 %v1480
    %v1482 = vpop.xlane.xlu0 %1481
    %v1483 = vsel %vm476, %v1469, -inf
    %1484 = vmax.xlane.f32.xlu0 %v1483
    %v1485 = vpop.xlane.xlu0 %1484
    %v1486 = vsel %vm476, %v1474, -inf
    %1487 = vmax.xlane.f32.xlu0 %v1486
    %v1488 = vpop.xlane.xlu0 %1487
    %v1489 = vsel %vm476, %v1477, -inf
    %1490 = vmax.xlane.f32.xlu0 %v1489
    %v1491 = vpop.xlane.xlu0 %1490
    %v1492 = vsub.f32 %v1466, %v1482
    %v1493 = vsub.f32 %v1469, %v1485
    %v1494 = vsub.f32 %v1474, %v1488
    %v1495 = vsub.f32 %v1477, %v1491
    %v1496 = vmul.f32 %v1492, 1.442695
    %v1497 = vpow.pop %v1496
    %v1498 = vmul.f32 %v1493, 1.442695
    %v1499 = vpow.pop %v1498
    %v1500 = vmul.f32 %v1494, 1.442695
    %v1501 = vpow.pop %v1500
    %v1502 = vmul.f32 %v1495, 1.442695
    %v1503 = vpow.pop %v1502
    %v1504 = vsel %vm476, %v1497, 0.0
    %1505 = vadd.xlane.f32.xlu0 %v1504
    %v1506 = vpop.xlane.xlu0 %1505
    %v1507 = vsel %vm476, %v1499, 0.0
    %1508 = vadd.xlane.f32.xlu0 %v1507
    %v1509 = vpop.xlane.xlu0 %1508
    %v1510 = vsel %vm476, %v1501, 0.0
    %1511 = vadd.xlane.f32.xlu0 %v1510
    %v1512 = vpop.xlane.xlu0 %1511
    %v1513 = vsel %vm476, %v1503, 0.0
    %1514 = vadd.xlane.f32.xlu0 %v1513
    %v1515 = vpop.xlane.xlu0 %1514
    %v1516 = vrcp.pop %v1506
    %v1517 = vrcp.pop %v1509
    %v1518 = vrcp.pop %v1512
    %v1519 = vrcp.pop %v1515
    %v1520 = vmul.f32 %v1497, %v1516
    %v1521 = vmul.f32 %v1499, %v1517
    %v1522 = vmul.f32 %v1501, %v1518
    %v1523 = vmul.f32 %v1503, %v1519
    %v1524 = vpack.c.bf16 %v1521, %v1520
    %v1525 = vpack.c.bf16 %v1523, %v1522
    %v1526 = vpack.c.bf16 %v1387, %v1383
    %v1527 = vpack.c.bf16 %v1397, %v1393
    %v1529 = vsel %vm476, %v1524, 0
    %v1532 = vsel %vm476, %v1525, 0
    %1534 = vmatprep.subr.bf16.mxu0 0
    %1535 = vmatpush1.bf16.msra.mxu0 %v1526
    %1536 = vmatprep.subr.bf16.mxu0 0
    %1537 = vmatpush1.bf16.msra.mxu0 %v1527
    %1538 = vmatprep.subr.bf16.mxu0 0
    %1539 = vmatpush1.bf16.msra.mxu0 0
    %1540 = vmatprep.subr.bf16.mxu0 0
    %1541 = vmatpush1.bf16.msra.mxu0 0
    %1542 = vmatprep.subr.bf16.mxu0 0
    %1543 = vmatpush1.bf16.msra.mxu0 0
    %1544 = vmatprep.subr.bf16.mxu0 0
    %1545 = vmatpush1.bf16.msra.mxu0 0
    %1546 = vmatprep.subr.bf16.mxu0 0
    %1547 = vmatpush1.bf16.msra.mxu0 0
    %1548 = vmatprep.subr.bf16.mxu0 0
    %1549 = vmatpush1.bf16.msra.mxu0 0
    %1550 = vmatprep.subr.bf16.mxu0 0
    %1551 = vmatpush1.bf16.msra.mxu0 0
    %1552 = vmatprep.subr.bf16.mxu0 0
    %1553 = vmatpush1.bf16.msra.mxu0 0
    %1554 = vmatprep.subr.bf16.mxu0 0
    %1555 = vmatpush1.bf16.msra.mxu0 0
    %1556 = vmatprep.subr.bf16.mxu0 0
    %1557 = vmatpush1.bf16.msra.mxu0 0
    %1558 = vmatprep.subr.bf16.mxu0 0
    %1559 = vmatpush1.bf16.msra.mxu0 0
    %1560 = vmatprep.subr.bf16.mxu0 0
    %1561 = vmatpush1.bf16.msra.mxu0 0
    %1562 = vmatprep.subr.bf16.mxu0 0
    %1563 = vmatpush1.bf16.msra.mxu0 0
    %1564 = vmatprep.subr.bf16.mxu0 0
    %1565 = vmatpush1.bf16.msra.mxu0 0
    %1566 = vmatprep.mubr.bf16.mxu0 0
    %1567 = vmatmul.mubr.bf16.gmra.mrb[0].mxu0 %v1529
    %v1568 = vpop.f32.mrb[0].mxu0
    %v1569 = vadd.f32 0.0, %v1568
    %v1570 = vpop.f32.mrb[0].mxu0
    %v1571 = vpop.f32.mrb[0].mxu0
    %v1572 = vadd.f32 0.0, %v1571
    %v1573 = vpop.f32.mrb[0].mxu0
    %1574 = vmatprep.mubr.bf16.mxu0 0
    %1575 = vmatmul.mubr.bf16.gmra.mrb[0].mxu0 %v1532
    %v1576 = vpop.f32.mrb[0].mxu0
    %v1577 = vadd.f32 0.0, %v1576
    %v1578 = vpop.f32.mrb[0].mxu0
    %v1579 = vpop.f32.mrb[0].mxu0
    %v1580 = vadd.f32 0.0, %v1579
    %v1581 = vpop.f32.mrb[0].mxu0
    %1582 = vdwg.mxu0
    %s1583 = scalar_lea.vmem %s10, 64
    %v1584 = vld [vmem:[%s1583] sm:$0xff]
    %v1585 = vld [vmem:[%s1583 + $0x8] sm:$0xff]
    %v1586 = vld [vmem:[%s1583 + $0x10] sm:$0xff]
    %v1587 = vld [vmem:[%s1583 + $0x18] sm:$0xff]
    %v1588 = vpack.c.bf16 %v1572, %v1569
    %v1589 = vpack.c.bf16 %v1580, %v1577
    %v1590 = vpack.c.bf16 %v1585, %v1584
    %v1591 = vpack.c.bf16 %v1587, %v1586
    %v1593 = vsel %vm476, %v1588, 0
    %v1596 = vsel %vm476, %v1589, 0
    %1598 = vmatprep.subr.bf16.mxu0 0
    %1599 = vmatpush1.bf16.msra.mxu0 %v1590
    %1600 = vmatprep.subr.bf16.mxu0 0
    %1601 = vmatpush1.bf16.msra.mxu0 %v1591
    %1602 = vmatprep.subr.bf16.mxu0 0
    %1603 = vmatpush1.bf16.msra.mxu0 0
    %1604 = vmatprep.subr.bf16.mxu0 0
    %1605 = vmatpush1.bf16.msra.mxu0 0
    %1606 = vmatprep.subr.bf16.mxu0 0
    %1607 = vmatpush1.bf16.msra.mxu0 0
    %1608 = vmatprep.subr.bf16.mxu0 0
    %1609 = vmatpush1.bf16.msra.mxu0 0
    %1610 = vmatprep.subr.bf16.mxu0 0
    %1611 = vmatpush1.bf16.msra.mxu0 0
    %1612 = vmatprep.subr.bf16.mxu0 0
    %1613 = vmatpush1.bf16.msra.mxu0 0
    %1614 = vmatprep.subr.bf16.mxu0 0
    %1615 = vmatpush1.bf16.msra.mxu0 0
    %1616 = vmatprep.subr.bf16.mxu0 0
    %1617 = vmatpush1.bf16.msra.mxu0 0
    %1618 = vmatprep.subr.bf16.mxu0 0
    %1619 = vmatpush1.bf16.msra.mxu0 0
    %1620 = vmatprep.subr.bf16.mxu0 0
    %1621 = vmatpush1.bf16.msra.mxu0 0
    %1622 = vmatprep.subr.bf16.mxu0 0
    %1623 = vmatpush1.bf16.msra.mxu0 0
    %1624 = vmatprep.subr.bf16.mxu0 0
    %1625 = vmatpush1.bf16.msra.mxu0 0
    %1626 = vmatprep.subr.bf16.mxu0 0
    %1627 = vmatpush1.bf16.msra.mxu0 0
    %1628 = vmatprep.subr.bf16.mxu0 0
    %1629 = vmatpush1.bf16.msra.mxu0 0
    %1630 = vmatprep.mubr.bf16.mxu0 0
    %1631 = vmatmul.mubr.bf16.gmra.mrb[0].mxu0 %v1593
    %v1632 = vpop.f32.mrb[0].mxu0
    %v1633 = vadd.f32 0.0, %v1632
    %v1634 = vpop.f32.mrb[0].mxu0
    %v1635 = vpop.f32.mrb[0].mxu0
    %v1636 = vadd.f32 0.0, %v1635
    %v1637 = vpop.f32.mrb[0].mxu0
    %1638 = vmatprep.mubr.bf16.mxu0 0
    %1639 = vmatmul.mubr.bf16.gmra.mrb[0].mxu0 %v1596
    %v1640 = vpop.f32.mrb[0].mxu0
    %v1641 = vadd.f32 0.0, %v1640
    %v1642 = vpop.f32.mrb[0].mxu0
    %v1643 = vpop.f32.mrb[0].mxu0
    %v1644 = vadd.f32 0.0, %v1643
    %v1645 = vpop.f32.mrb[0].mxu0
    %1646 = vdwg.mxu0
    %v1647 = vadd.f32 %v1407, %v1633
    %v1648 = vadd.f32 %v1408, %v1636
    %v1649 = vadd.f32 %v1409, %v1641
    %v1650 = vadd.f32 %v1410, %v1644
    %1651 = vrot.lane.b32.xlu0 %v1411, 96
    %v1652 = vpop.permute.xlu0 %1651
    %1653 = vrot.lane.b32.xlu0 %v1412, 96
    %v1654 = vpop.permute.xlu0 %1653
    %1655 = vrot.lane.b32.xlu0 %v1411, 32
    %v1656 = vpop.permute.xlu0 %1655
    %1657 = vrot.lane.b32.xlu0 %v1412, 32
    %v1658 = vpop.permute.xlu0 %1657
    %v1660 = vsel %vm476, %v1652, 0
    %v1663 = vsel %vm476, %v1654, 0
    %v1666 = vsel %vm476, %v1656, 0
    %v1669 = vsel %vm476, %v1658, 0
    %1671 = vmatprep.subr.bf16.mxu0 0
    %1672 = vmatpush1.bf16.xpose.msra.mxu0 %v1666
    %1673 = vmatprep.subr.bf16.mxu0 0
    %1674 = vmatpush1.bf16.xpose.msra.mxu0 %v1669
    %1675 = vmatprep.subr.bf16.mxu0 0
    %1676 = vmatpush1.bf16.xpose.msra.mxu0 0
    %1677 = vmatprep.subr.bf16.mxu0 0
    %1678 = vmatpush1.bf16.xpose.msra.mxu0 0
    %1679 = vmatprep.subr.bf16.mxu0 0
    %1680 = vmatpush1.bf16.xpose.msra.mxu0 0
    %1681 = vmatprep.subr.bf16.mxu0 0
    %1682 = vmatpush1.bf16.xpose.msra.mxu0 0
    %1683 = vmatprep.subr.bf16.mxu0 0
    %1684 = vmatpush1.bf16.xpose.msra.mxu0 0
    %1685 = vmatprep.subr.bf16.mxu0 0
    %1686 = vmatpush1.bf16.xpose.msra.mxu0 0
    %1687 = vmatprep.subr.bf16.mxu0 0
    %1688 = vmatpush1.bf16.xpose.msra.mxu0 0
    %1689 = vmatprep.subr.bf16.mxu0 0
    %1690 = vmatpush1.bf16.xpose.msra.mxu0 0
    %1691 = vmatprep.subr.bf16.mxu0 0
    %1692 = vmatpush1.bf16.xpose.msra.mxu0 0
    %1693 = vmatprep.subr.bf16.mxu0 0
    %1694 = vmatpush1.bf16.xpose.msra.mxu0 0
    %1695 = vmatprep.subr.bf16.mxu0 0
    %1696 = vmatpush1.bf16.xpose.msra.mxu0 0
    %1697 = vmatprep.subr.bf16.mxu0 0
    %1698 = vmatpush1.bf16.xpose.msra.mxu0 0
    %1699 = vmatprep.subr.bf16.mxu0 0
    %1700 = vmatpush1.bf16.xpose.msra.mxu0 0
    %1701 = vmatprep.subr.bf16.mxu0 0
    %1702 = vmatpush1.bf16.xpose.msra.mxu0 0
    %1703 = vmatprep.mubr.bf16.mxu0 0
    %1704 = vmatmul.mubr.bf16.gmra.mrb[0].mxu0 %v1660
    %v1705 = vpop.f32.mrb[0].mxu0
    %v1706 = vadd.f32 %v356, %v1705
    %v1707 = vpop.f32.mrb[0].mxu0
    %v1708 = vpop.f32.mrb[0].mxu0
    %v1709 = vadd.f32 %v357, %v1708
    %v1710 = vpop.f32.mrb[0].mxu0
    %1711 = vmatprep.mubr.bf16.mxu0 0
    %1712 = vmatmul.mubr.bf16.gmra.mrb[0].mxu0 %v1663
    %v1713 = vpop.f32.mrb[0].mxu0
    %v1714 = vadd.f32 %v358, %v1713
    %v1715 = vpop.f32.mrb[0].mxu0
    %v1716 = vpop.f32.mrb[0].mxu0
    %v1717 = vadd.f32 %v359, %v1716
    %v1718 = vpop.f32.mrb[0].mxu0
    %1719 = vdwg.mxu0
    %v1720 = vsel %vm476, %v1706, -inf
    %1721 = vmax.xlane.f32.xlu0 %v1720
    %v1722 = vpop.xlane.xlu0 %1721
    %v1723 = vsel %vm476, %v1709, -inf
    %1724 = vmax.xlane.f32.xlu0 %v1723
    %v1725 = vpop.xlane.xlu0 %1724
    %v1726 = vsel %vm476, %v1714, -inf
    %1727 = vmax.xlane.f32.xlu0 %v1726
    %v1728 = vpop.xlane.xlu0 %1727
    %v1729 = vsel %vm476, %v1717, -inf
    %1730 = vmax.xlane.f32.xlu0 %v1729
    %v1731 = vpop.xlane.xlu0 %1730
    %v1732 = vsub.f32 %v1706, %v1722
    %v1733 = vsub.f32 %v1709, %v1725
    %v1734 = vsub.f32 %v1714, %v1728
    %v1735 = vsub.f32 %v1717, %v1731
    %v1736 = vmul.f32 %v1732, 1.442695
    %v1737 = vpow.pop %v1736
    %v1738 = vmul.f32 %v1733, 1.442695
    %v1739 = vpow.pop %v1738
    %v1740 = vmul.f32 %v1734, 1.442695
    %v1741 = vpow.pop %v1740
    %v1742 = vmul.f32 %v1735, 1.442695
    %v1743 = vpow.pop %v1742
    %v1744 = vsel %vm476, %v1737, 0.0
    %1745 = vadd.xlane.f32.xlu0 %v1744
    %v1746 = vpop.xlane.xlu0 %1745
    %v1747 = vsel %vm476, %v1739, 0.0
    %1748 = vadd.xlane.f32.xlu0 %v1747
    %v1749 = vpop.xlane.xlu0 %1748
    %v1750 = vsel %vm476, %v1741, 0.0
    %1751 = vadd.xlane.f32.xlu0 %v1750
    %v1752 = vpop.xlane.xlu0 %1751
    %v1753 = vsel %vm476, %v1743, 0.0
    %1754 = vadd.xlane.f32.xlu0 %v1753
    %v1755 = vpop.xlane.xlu0 %1754
    %v1756 = vrcp.pop %v1746
    %v1757 = vrcp.pop %v1749
    %v1758 = vrcp.pop %v1752
    %v1759 = vrcp.pop %v1755
    %v1760 = vmul.f32 %v1737, %v1756
    %v1761 = vmul.f32 %v1739, %v1757
    %v1762 = vmul.f32 %v1741, %v1758
    %v1763 = vmul.f32 %v1743, %v1759
    %v1764 = vpack.c.bf16 %v1761, %v1760
    %v1765 = vpack.c.bf16 %v1763, %v1762
    %1768 = vrot.lane.b32.xlu0 %v1526, 96
    %v1769 = vpop.permute.xlu0 %1768
    %1770 = vrot.lane.b32.xlu0 %v1527, 96
    %v1771 = vpop.permute.xlu0 %1770
    %v1775 = vsel %vm476, %v1764, 0
    %v1778 = vsel %vm476, %v1765, 0
    %1780 = vmatprep.subr.bf16.mxu0 0
    %1781 = vmatpush1.bf16.msra.mxu0 %v1769
    %1782 = vmatprep.subr.bf16.mxu0 0
    %1783 = vmatpush1.bf16.msra.mxu0 %v1771
    %1784 = vmatprep.subr.bf16.mxu0 0
    %1785 = vmatpush1.bf16.msra.mxu0 0
    %1786 = vmatprep.subr.bf16.mxu0 0
    %1787 = vmatpush1.bf16.msra.mxu0 0
    %1788 = vmatprep.subr.bf16.mxu0 0
    %1789 = vmatpush1.bf16.msra.mxu0 0
    %1790 = vmatprep.subr.bf16.mxu0 0
    %1791 = vmatpush1.bf16.msra.mxu0 0
    %1792 = vmatprep.subr.bf16.mxu0 0
    %1793 = vmatpush1.bf16.msra.mxu0 0
    %1794 = vmatprep.subr.bf16.mxu0 0
    %1795 = vmatpush1.bf16.msra.mxu0 0
    %1796 = vmatprep.subr.bf16.mxu0 0
    %1797 = vmatpush1.bf16.msra.mxu0 0
    %1798 = vmatprep.subr.bf16.mxu0 0
    %1799 = vmatpush1.bf16.msra.mxu0 0
    %1800 = vmatprep.subr.bf16.mxu0 0
    %1801 = vmatpush1.bf16.msra.mxu0 0
    %1802 = vmatprep.subr.bf16.mxu0 0
    %1803 = vmatpush1.bf16.msra.mxu0 0
    %1804 = vmatprep.subr.bf16.mxu0 0
    %1805 = vmatpush1.bf16.msra.mxu0 0
    %1806 = vmatprep.subr.bf16.mxu0 0
    %1807 = vmatpush1.bf16.msra.mxu0 0
    %1808 = vmatprep.subr.bf16.mxu0 0
    %1809 = vmatpush1.bf16.msra.mxu0 0
    %1810 = vmatprep.subr.bf16.mxu0 0
    %1811 = vmatpush1.bf16.msra.mxu0 0
    %1812 = vmatprep.mubr.bf16.mxu0 0
    %1813 = vmatmul.mubr.bf16.gmra.mrb[0].mxu0 %v1775
    %v1814 = vpop.f32.mrb[0].mxu0
    %v1815 = vadd.f32 0.0, %v1814
    %v1816 = vpop.f32.mrb[0].mxu0
    %v1817 = vpop.f32.mrb[0].mxu0
    %v1818 = vadd.f32 0.0, %v1817
    %v1819 = vpop.f32.mrb[0].mxu0
    %1820 = vmatprep.mubr.bf16.mxu0 0
    %1821 = vmatmul.mubr.bf16.gmra.mrb[0].mxu0 %v1778
    %v1822 = vpop.f32.mrb[0].mxu0
    %v1823 = vadd.f32 0.0, %v1822
    %v1824 = vpop.f32.mrb[0].mxu0
    %v1825 = vpop.f32.mrb[0].mxu0
    %v1826 = vadd.f32 0.0, %v1825
    %v1827 = vpop.f32.mrb[0].mxu0
    %1828 = vdwg.mxu0
    %s1829 = scalar_lea.vmem %s10, 96
    %v1830 = vld [vmem:[%s1829] sm:$0xff]
    %v1831 = vld [vmem:[%s1829 + $0x8] sm:$0xff]
    %v1832 = vld [vmem:[%s1829 + $0x10] sm:$0xff]
    %v1833 = vld [vmem:[%s1829 + $0x18] sm:$0xff]
    %v1834 = vpack.c.bf16 %v1818, %v1815
    %v1835 = vpack.c.bf16 %v1826, %v1823
    %v1836 = vpack.c.bf16 %v1831, %v1830
    %v1837 = vpack.c.bf16 %v1833, %v1832
    %v1839 = vsel %vm476, %v1834, 0
    %v1842 = vsel %vm476, %v1835, 0
    %1844 = vmatprep.subr.bf16.mxu0 0
    %1845 = vmatpush1.bf16.msra.mxu0 %v1836
    %1846 = vmatprep.subr.bf16.mxu0 0
    %1847 = vmatpush1.bf16.msra.mxu0 %v1837
    %1848 = vmatprep.subr.bf16.mxu0 0
    %1849 = vmatpush1.bf16.msra.mxu0 0
    %1850 = vmatprep.subr.bf16.mxu0 0
    %1851 = vmatpush1.bf16.msra.mxu0 0
    %1852 = vmatprep.subr.bf16.mxu0 0
    %1853 = vmatpush1.bf16.msra.mxu0 0
    %1854 = vmatprep.subr.bf16.mxu0 0
    %1855 = vmatpush1.bf16.msra.mxu0 0
    %1856 = vmatprep.subr.bf16.mxu0 0
    %1857 = vmatpush1.bf16.msra.mxu0 0
    %1858 = vmatprep.subr.bf16.mxu0 0
    %1859 = vmatpush1.bf16.msra.mxu0 0
    %1860 = vmatprep.subr.bf16.mxu0 0
    %1861 = vmatpush1.bf16.msra.mxu0 0
    %1862 = vmatprep.subr.bf16.mxu0 0
    %1863 = vmatpush1.bf16.msra.mxu0 0
    %1864 = vmatprep.subr.bf16.mxu0 0
    %1865 = vmatpush1.bf16.msra.mxu0 0
    %1866 = vmatprep.subr.bf16.mxu0 0
    %1867 = vmatpush1.bf16.msra.mxu0 0
    %1868 = vmatprep.subr.bf16.mxu0 0
    %1869 = vmatpush1.bf16.msra.mxu0 0
    %1870 = vmatprep.subr.bf16.mxu0 0
    %1871 = vmatpush1.bf16.msra.mxu0 0
    %1872 = vmatprep.subr.bf16.mxu0 0
    %1873 = vmatpush1.bf16.msra.mxu0 0
    %1874 = vmatprep.subr.bf16.mxu0 0
    %1875 = vmatpush1.bf16.msra.mxu0 0
    %1876 = vmatprep.mubr.bf16.mxu0 0
    %1877 = vmatmul.mubr.bf16.gmra.mrb[0].mxu0 %v1839
    %v1878 = vpop.f32.mrb[0].mxu0
    %v1879 = vadd.f32 0.0, %v1878
    %v1880 = vpop.f32.mrb[0].mxu0
    %v1881 = vpop.f32.mrb[0].mxu0
    %v1882 = vadd.f32 0.0, %v1881
    %v1883 = vpop.f32.mrb[0].mxu0
    %1884 = vmatprep.mubr.bf16.mxu0 0
    %1885 = vmatmul.mubr.bf16.gmra.mrb[0].mxu0 %v1842
    %v1886 = vpop.f32.mrb[0].mxu0
    %v1887 = vadd.f32 0.0, %v1886
    %v1888 = vpop.f32.mrb[0].mxu0
    %v1889 = vpop.f32.mrb[0].mxu0
    %v1890 = vadd.f32 0.0, %v1889
    %v1891 = vpop.f32.mrb[0].mxu0
    %1892 = vdwg.mxu0
    %v1893 = vadd.f32 %v1647, %v1879
    %v1894 = vadd.f32 %v1648, %v1882
    %v1895 = vadd.f32 %v1649, %v1887
    %v1896 = vadd.f32 %v1650, %v1890
    %s1897 = scalar_lea.vmem %s12, 1
    %v1898 = vld [vmem:[%s1897] sm:$0x1]
    %s1899 = scalar_lea.vmem %s13, 1
    %v1900 = vld [vmem:[%s1899] sm:$0x1]
    %v1901 = vsel %vm158, %v1893, 0.0
    %1902 = vadd.xlane.f32.xlu0 %v1901
    %v1903 = vpop.xlane.xlu0 %1902
    %v1904 = vsel %vm158, %v1894, 0.0
    %1905 = vadd.xlane.f32.xlu0 %v1904
    %v1906 = vpop.xlane.xlu0 %1905
    %v1907 = vsel %vm158, %v1895, 0.0
    %1908 = vadd.xlane.f32.xlu0 %v1907
    %v1909 = vpop.xlane.xlu0 %1908
    %v1910 = vsel %vm158, %v1896, 0.0
    %1911 = vadd.xlane.f32.xlu0 %v1910
    %v1912 = vpop.xlane.xlu0 %1911
    %v1913 = vmul.f32 %v1903, %v270
    %v1914 = vmul.f32 %v1906, %v270
    %v1915 = vmul.f32 %v1909, %v270
    %v1916 = vmul.f32 %v1912, %v270
    %v1917 = vsub.f32 %v1893, %v1913
    %v1918 = vsub.f32 %v1894, %v1914
    %v1919 = vsub.f32 %v1895, %v1915
    %v1920 = vsub.f32 %v1896, %v1916
    %v1921 = vmul.f32 %v1917, %v1917
    %v1922 = vmul.f32 %v1918, %v1918
    %v1923 = vmul.f32 %v1919, %v1919
    %v1924 = vmul.f32 %v1920, %v1920
    %v1925 = vsel %vm158, %v1921, 0.0
    %1926 = vadd.xlane.f32.xlu0 %v1925
    %v1927 = vpop.xlane.xlu0 %1926
    %v1928 = vsel %vm158, %v1922, 0.0
    %1929 = vadd.xlane.f32.xlu0 %v1928
    %v1930 = vpop.xlane.xlu0 %1929
    %v1931 = vsel %vm158, %v1923, 0.0
    %1932 = vadd.xlane.f32.xlu0 %v1931
    %v1933 = vpop.xlane.xlu0 %1932
    %v1934 = vsel %vm158, %v1924, 0.0
    %1935 = vadd.xlane.f32.xlu0 %v1934
    %v1936 = vpop.xlane.xlu0 %1935
    %v1937 = vmul.f32 %v1927, %v270
    %v1938 = vmul.f32 %v1930, %v270
    %v1939 = vmul.f32 %v1933, %v270
    %v1940 = vmul.f32 %v1936, %v270
    %v1941 = vadd.f32 %v1937, 1e-12
    %v1942 = vadd.f32 %v1938, 1e-12
    %v1943 = vadd.f32 %v1939, 1e-12
    %v1944 = vadd.f32 %v1940, 1e-12
    %v1945 = vrsqrt.pop %v1941
    %v1946 = vrsqrt.pop %v1942
    %v1947 = vrsqrt.pop %v1943
    %v1948 = vrsqrt.pop %v1944
    %v1949 = vmul.f32 %v1917, %v1945
    %v1950 = vmul.f32 %v1918, %v1946
    %v1951 = vmul.f32 %v1919, %v1947
    %v1952 = vmul.f32 %v1920, %v1948
    %v1954 = vlaneseq
    %v1955 = vshrl.u32 %v1954, 7
    %v1956 = vsub.s32 0, %v1955
    %v1957 = vrot.slane %v1898, %v1956
    %v1959 = vmul.f32 %v1949, %v1957
    %v1960 = vmul.f32 %v1950, %v1957
    %v1961 = vmul.f32 %v1951, %v1957
    %v1962 = vmul.f32 %v1952, %v1957
    %v1964 = vlaneseq
    %v1965 = vshrl.u32 %v1964, 7
    %v1966 = vsub.s32 0, %v1965
    %v1967 = vrot.slane %v1900, %v1966
    %v1969 = vadd.f32 %v1959, %v1967
    %v1970 = vadd.f32 %v1960, %v1967
    %v1971 = vadd.f32 %v1961, %v1967
    %v1972 = vadd.f32 %v1962, %v1967
    %s1973 = scalar_lea.vmem [#allocation2], 64
    %v1974 = vld [vmem:[%s1973] sm:$0xff]
    %v1975 = vld [vmem:[%s1973 + $0x8] sm:$0xff]
    %v1976 = vld [vmem:[%s1973 + $0x10] sm:$0xff]
    %v1977 = vld [vmem:[%s1973 + $0x18] sm:$0xff]
    %v1978 = vld [vmem:[%s1973 + $0x20] sm:$0xff]
    %v1979 = vld [vmem:[%s1973 + $0x28] sm:$0xff]
    %v1980 = vld [vmem:[%s1973 + $0x30] sm:$0xff]
    %v1981 = vld [vmem:[%s1973 + $0x38] sm:$0xff]
    %v1982 = vpack.c.bf16 %v1970, %v1969
    %v1983 = vpack.c.bf16 %v1972, %v1971
    %v1984 = vpack.c.bf16 %v1975, %v1974
    %v1985 = vpack.c.bf16 %v1977, %v1976
    %v1986 = vpack.c.bf16 %v1979, %v1978
    %v1987 = vpack.c.bf16 %v1981, %v1980
    %s1988 = scalar_lea.vmem %s15, 1
    %v1989 = vld [vmem:[%s1988] sm:$0x1]
    %v1991 = vlaneseq
    %v1992 = vshrl.u32 %v1991, 7
    %v1993 = vsub.s32 0, %v1992
    %v1994 = vrot.slane %v1989, %v1993
    %v1997 = vsel %vm158, %v1982, 0
    %v2000 = vsel %vm158, %v1983, 0
    %2002 = vmatprep.subr.bf16.mxu0 0
    %2003 = vmatpush1.bf16.msra.mxu0 %v1984
    %2004 = vmatprep.subr.bf16.mxu0 0
    %2005 = vmatpush1.bf16.msra.mxu0 %v1985
    %2006 = vmatprep.subr.bf16.mxu0 0
    %2007 = vmatpush1.bf16.msra.mxu0 %v1986
    %2008 = vmatprep.subr.bf16.mxu0 0
    %2009 = vmatpush1.bf16.msra.mxu0 %v1987
    %2010 = vmatprep.subr.bf16.mxu0 0
    %2011 = vmatpush1.bf16.msra.mxu0 0
    %2012 = vmatprep.subr.bf16.mxu0 0
    %2013 = vmatpush1.bf16.msra.mxu0 0
    %2014 = vmatprep.subr.bf16.mxu0 0
    %2015 = vmatpush1.bf16.msra.mxu0 0
    %2016 = vmatprep.subr.bf16.mxu0 0
    %2017 = vmatpush1.bf16.msra.mxu0 0
    %2018 = vmatprep.subr.bf16.mxu0 0
    %2019 = vmatpush1.bf16.msra.mxu0 0
    %2020 = vmatprep.subr.bf16.mxu0 0
    %2021 = vmatpush1.bf16.msra.mxu0 0
    %2022 = vmatprep.subr.bf16.mxu0 0
    %2023 = vmatpush1.bf16.msra.mxu0 0
    %2024 = vmatprep.subr.bf16.mxu0 0
    %2025 = vmatpush1.bf16.msra.mxu0 0
    %2026 = vmatprep.subr.bf16.mxu0 0
    %2027 = vmatpush1.bf16.msra.mxu0 0
    %2028 = vmatprep.subr.bf16.mxu0 0
    %2029 = vmatpush1.bf16.msra.mxu0 0
    %2030 = vmatprep.subr.bf16.mxu0 0
    %2031 = vmatpush1.bf16.msra.mxu0 0
    %2032 = vmatprep.subr.bf16.mxu0 0
    %2033 = vmatpush1.bf16.msra.mxu0 0
    %2034 = vmatprep.mubr.bf16.mxu0 0
    %2035 = vmatmul.mubr.bf16.gmra.mrb[0].mxu0 %v1997
    %v2036 = vpop.f32.mrb[0].mxu0
    %v2037 = vadd.f32 %v1994, %v2036
    %v2038 = vpop.f32.mrb[0].mxu0
    %v2039 = vpop.f32.mrb[0].mxu0
    %v2040 = vadd.f32 %v1994, %v2039
    %v2041 = vpop.f32.mrb[0].mxu0
    %2042 = vmatprep.mubr.bf16.mxu0 0
    %2043 = vmatmul.mubr.bf16.gmra.mrb[0].mxu0 %v2000
    %v2044 = vpop.f32.mrb[0].mxu0
    %v2045 = vadd.f32 %v1994, %v2044
    %v2046 = vpop.f32.mrb[0].mxu0
    %v2047 = vpop.f32.mrb[0].mxu0
    %v2048 = vadd.f32 %v1994, %v2047
    %v2049 = vpop.f32.mrb[0].mxu0
    %2050 = vdwg.mxu0
    %v2051 = vmul.f32 %v2037, %v2037
    %v2052 = vmul.f32 %v2040, %v2040
    %v2053 = vmul.f32 %v2045, %v2045
    %v2054 = vmul.f32 %v2048, %v2048
    %v2055 = vmul.f32 %v2037, %v2051
    %v2056 = vmul.f32 %v2040, %v2052
    %v2057 = vmul.f32 %v2045, %v2053
    %v2058 = vmul.f32 %v2048, %v2054
    %v2059 = vmul.f32 %v2055, 0.044715
    %v2060 = vmul.f32 %v2056, 0.044715
    %v2061 = vmul.f32 %v2057, 0.044715
    %v2062 = vmul.f32 %v2058, 0.044715
    %v2063 = vadd.f32 %v2037, %v2059
    %v2064 = vadd.f32 %v2040, %v2060
    %v2065 = vadd.f32 %v2045, %v2061
    %v2066 = vadd.f32 %v2048, %v2062
    %v2067 = vmul.f32 %v2063, 0.7978846
    %v2068 = vmul.f32 %v2064, 0.7978846
    %v2069 = vmul.f32 %v2065, 0.7978846
    %v2070 = vmul.f32 %v2066, 0.7978846
    %v2071 = vtanh.pop %v2067
    %v2072 = vtanh.pop %v2068
    %v2073 = vtanh.pop %v2069
    %v2074 = vtanh.pop %v2070
    %v2075 = vadd.f32 %v2071, 1.0
    %v2076 = vadd.f32 %v2072, 1.0
    %v2077 = vadd.f32 %v2073, 1.0
    %v2078 = vadd.f32 %v2074, 1.0
    %v2079 = vmul.f32 %v2075, 0.5
    %v2080 = vmul.f32 %v2076, 0.5
    %v2081 = vmul.f32 %v2077, 0.5
    %v2082 = vmul.f32 %v2078, 0.5
    %v2083 = vmul.f32 %v2037, %v2079
    %v2084 = vmul.f32 %v2040, %v2080
    %v2085 = vmul.f32 %v2045, %v2081
    %v2086 = vmul.f32 %v2048, %v2082
    %s2087 = scalar_lea.vmem %s16, 128
    %v2088 = vld [vmem:[%s2087] sm:$0xff]
    %v2089 = vld [vmem:[%s2087 + $0x8] sm:$0xff]
    %v2090 = vld [vmem:[%s2087 + $0x10] sm:$0xff]
    %v2091 = vld [vmem:[%s2087 + $0x18] sm:$0xff]
    %v2092 = vld [vmem:[%s2087 + $0x20] sm:$0xff]
    %v2093 = vld [vmem:[%s2087 + $0x28] sm:$0xff]
    %v2094 = vld [vmem:[%s2087 + $0x30] sm:$0xff]
    %v2095 = vld [vmem:[%s2087 + $0x38] sm:$0xff]
    %v2096 = vld [vmem:[%s2087 + $0x40] sm:$0xff]
    %v2097 = vld [vmem:[%s2087 + $0x48] sm:$0xff]
    %v2098 = vld [vmem:[%s2087 + $0x50] sm:$0xff]
    %v2099 = vld [vmem:[%s2087 + $0x58] sm:$0xff]
    %v2100 = vld [vmem:[%s2087 + $0x60] sm:$0xff]
    %v2101 = vld [vmem:[%s2087 + $0x68] sm:$0xff]
    %v2102 = vld [vmem:[%s2087 + $0x70] sm:$0xff]
    %v2103 = vld [vmem:[%s2087 + $0x78] sm:$0xff]
    %v2104 = vpack.c.bf16 %v2084, %v2083
    %v2105 = vpack.c.bf16 %v2086, %v2085
    %v2106 = vpack.c.bf16 %v2089, %v2088
    %v2107 = vpack.c.bf16 %v2091, %v2090
    %v2108 = vpack.c.bf16 %v2093, %v2092
    %v2109 = vpack.c.bf16 %v2095, %v2094
    %v2110 = vpack.c.bf16 %v2097, %v2096
    %v2111 = vpack.c.bf16 %v2099, %v2098
    %v2112 = vpack.c.bf16 %v2101, %v2100
    %v2113 = vpack.c.bf16 %v2103, %v2102
    %s2114 = scalar_lea.vmem %s17, 1
    %v2115 = vld [vmem:[%s2114] sm:$0x1]
    %v2117 = vlaneseq
    %v2118 = vshrl.u32 %v2117, 7
    %v2119 = vsub.s32 0, %v2118
    %v2120 = vrot.slane %v2115, %v2119
    %2122 = vmatprep.subr.bf16.mxu0 0
    %2123 = vmatpush1.bf16.msra.mxu0 %v2106
    %2124 = vmatprep.subr.bf16.mxu0 0
    %2125 = vmatpush1.bf16.msra.mxu0 %v2107
    %2126 = vmatprep.subr.bf16.mxu0 0
    %2127 = vmatpush1.bf16.msra.mxu0 %v2108
    %2128 = vmatprep.subr.bf16.mxu0 0
    %2129 = vmatpush1.bf16.msra.mxu0 %v2109
    %2130 = vmatprep.subr.bf16.mxu0 0
    %2131 = vmatpush1.bf16.msra.mxu0 %v2110
    %2132 = vmatprep.subr.bf16.mxu0 0
    %2133 = vmatpush1.bf16.msra.mxu0 %v2111
    %2134 = vmatprep.subr.bf16.mxu0 0
    %2135 = vmatpush1.bf16.msra.mxu0 %v2112
    %2136 = vmatprep.subr.bf16.mxu0 0
    %2137 = vmatpush1.bf16.msra.mxu0 %v2113
    %2138 = vmatprep.subr.bf16.mxu0 0
    %2139 = vmatpush1.bf16.msra.mxu0 0
    %2140 = vmatprep.subr.bf16.mxu0 0
    %2141 = vmatpush1.bf16.msra.mxu0 0
    %2142 = vmatprep.subr.bf16.mxu0 0
    %2143 = vmatpush1.bf16.msra.mxu0 0
    %2144 = vmatprep.subr.bf16.mxu0 0
    %2145 = vmatpush1.bf16.msra.mxu0 0
    %2146 = vmatprep.subr.bf16.mxu0 0
    %2147 = vmatpush1.bf16.msra.mxu0 0
    %2148 = vmatprep.subr.bf16.mxu0 0
    %2149 = vmatpush1.bf16.msra.mxu0 0
    %2150 = vmatprep.subr.bf16.mxu0 0
    %2151 = vmatpush1.bf16.msra.mxu0 0
    %2152 = vmatprep.subr.bf16.mxu0 0
    %2153 = vmatpush1.bf16.msra.mxu0 0
    %2154 = vmatprep.mubr.bf16.mxu0 0
    %2155 = vmatmul.mubr.bf16.gmra.mrb[0].mxu0 %v2104
    %v2156 = vpop.f32.mrb[0].mxu0
    %v2157 = vadd.f32 %v2120, %v2156
    %v2158 = vpop.f32.mrb[0].mxu0
    %v2159 = vpop.f32.mrb[0].mxu0
    %v2160 = vadd.f32 %v2120, %v2159
    %v2161 = vpop.f32.mrb[0].mxu0
    %2162 = vmatprep.mubr.bf16.mxu0 0
    %2163 = vmatmul.mubr.bf16.gmra.mrb[0].mxu0 %v2105
    %v2164 = vpop.f32.mrb[0].mxu0
    %v2165 = vadd.f32 %v2120, %v2164
    %v2166 = vpop.f32.mrb[0].mxu0
    %v2167 = vpop.f32.mrb[0].mxu0
    %v2168 = vadd.f32 %v2120, %v2167
    %v2169 = vpop.f32.mrb[0].mxu0
    %2170 = vdwg.mxu0
    %v2171 = vadd.f32 %v2157, %v1969
    %v2172 = vadd.f32 %v2160, %v1970
    %v2173 = vadd.f32 %v2165, %v1971
    %v2174 = vadd.f32 %v2168, %v1972
    %s2175 = scalar_lea.vmem [#allocation5], 1
    %v2176 = vld [vmem:[%s2175] sm:$0x1]
    %s2177 = scalar_lea.vmem [#allocation7], 1
    %v2178 = vld [vmem:[%s2177] sm:$0x1]
    %v2179 = vsel %vm158, %v2171, 0.0
    %2180 = vadd.xlane.f32.xlu0 %v2179
    %v2181 = vpop.xlane.xlu0 %2180
    %v2182 = vsel %vm158, %v2172, 0.0
    %2183 = vadd.xlane.f32.xlu0 %v2182
    %v2184 = vpop.xlane.xlu0 %2183
    %v2185 = vsel %vm158, %v2173, 0.0
    %2186 = vadd.xlane.f32.xlu0 %v2185
    %v2187 = vpop.xlane.xlu0 %2186
    %v2188 = vsel %vm158, %v2174, 0.0
    %2189 = vadd.xlane.f32.xlu0 %v2188
    %v2190 = vpop.xlane.xlu0 %2189
    %v2191 = vmul.f32 %v2181, %v270
    %v2192 = vmul.f32 %v2184, %v270
    %v2193 = vmul.f32 %v2187, %v270
    %v2194 = vmul.f32 %v2190, %v270
    %v2195 = vsub.f32 %v2171, %v2191
    %v2196 = vsub.f32 %v2172, %v2192
    %v2197 = vsub.f32 %v2173, %v2193
    %v2198 = vsub.f32 %v2174, %v2194
    %v2199 = vmul.f32 %v2195, %v2195
    %v2200 = vmul.f32 %v2196, %v2196
    %v2201 = vmul.f32 %v2197, %v2197
    %v2202 = vmul.f32 %v2198, %v2198
    %v2203 = vsel %vm158, %v2199, 0.0
    %2204 = vadd.xlane.f32.xlu0 %v2203
    %v2205 = vpop.xlane.xlu0 %2204
    %v2206 = vsel %vm158, %v2200, 0.0
    %2207 = vadd.xlane.f32.xlu0 %v2206
    %v2208 = vpop.xlane.xlu0 %2207
    %v2209 = vsel %vm158, %v2201, 0.0
    %2210 = vadd.xlane.f32.xlu0 %v2209
    %v2211 = vpop.xlane.xlu0 %2210
    %v2212 = vsel %vm158, %v2202, 0.0
    %2213 = vadd.xlane.f32.xlu0 %v2212
    %v2214 = vpop.xlane.xlu0 %2213
    %v2215 = vmul.f32 %v2205, %v270
    %v2216 = vmul.f32 %v2208, %v270
    %v2217 = vmul.f32 %v2211, %v270
    %v2218 = vmul.f32 %v2214, %v270
    %v2219 = vadd.f32 %v2215, 1e-12
    %v2220 = vadd.f32 %v2216, 1e-12
    %v2221 = vadd.f32 %v2217, 1e-12
    %v2222 = vadd.f32 %v2218, 1e-12
    %v2223 = vrsqrt.pop %v2219
    %v2224 = vrsqrt.pop %v2220
    %v2225 = vrsqrt.pop %v2221
    %v2226 = vrsqrt.pop %v2222
    %v2227 = vmul.f32 %v2195, %v2223
    %v2228 = vmul.f32 %v2196, %v2224
    %v2229 = vmul.f32 %v2197, %v2225
    %v2230 = vmul.f32 %v2198, %v2226
    %v2232 = vlaneseq
    %v2233 = vshrl.u32 %v2232, 7
    %v2234 = vsub.s32 0, %v2233
    %v2235 = vrot.slane %v2176, %v2234
    %v2237 = vmul.f32 %v2227, %v2235
    %v2238 = vmul.f32 %v2228, %v2235
    %v2239 = vmul.f32 %v2229, %v2235
    %v2240 = vmul.f32 %v2230, %v2235
    %v2242 = vlaneseq
    %v2243 = vshrl.u32 %v2242, 7
    %v2244 = vsub.s32 0, %v2243
    %v2245 = vrot.slane %v2178, %v2244
    %v2247 = vadd.f32 %v2237, %v2245
    %v2248 = vadd.f32 %v2238, %v2245
    %v2249 = vadd.f32 %v2239, %v2245
    %v2250 = vadd.f32 %v2240, %v2245
    %v2251 = vld [vmem:[%s20] sm:$0x1f]
    %v2252 = vpack.c.bf16 %v2251, %v2251
    %v2253 = vpack.c.bf16 %v2248, %v2247
    %v2254 = vpack.c.bf16 %v2250, %v2249
    %v2255 = vld [vmem:[%s21] sm:$0x1f]
    %2257 = vset.pattern.permute.xlu0 0
    %2258 = vperm.xlu0 %2257, %v2255
    %v2259 = vpop.permute.xlu0 %2258
    %v2262 = vsel %vm158, %v2252, 0
    %v2265 = vsel %vm158, %v2253, 0
    %v2268 = vsel %vm158, %v2254, 0
    %2270 = vmatprep.subr.bf16.mxu0 0
    %2271 = vmatpush1.bf16.xpose.msra.mxu0 %v2265
    %2272 = vmatprep.subr.bf16.mxu0 0
    %2273 = vmatpush1.bf16.xpose.msra.mxu0 %v2268
    %2274 = vmatprep.subr.bf16.mxu0 0
    %2275 = vmatpush1.bf16.xpose.msra.mxu0 0
    %2276 = vmatprep.subr.bf16.mxu0 0
    %2277 = vmatpush1.bf16.xpose.msra.mxu0 0
    %2278 = vmatprep.subr.bf16.mxu0 0
    %2279 = vmatpush1.bf16.xpose.msra.mxu0 0
    %2280 = vmatprep.subr.bf16.mxu0 0
    %2281 = vmatpush1.bf16.xpose.msra.mxu0 0
    %2282 = vmatprep.subr.bf16.mxu0 0
    %2283 = vmatpush1.bf16.xpose.msra.mxu0 0
    %2284 = vmatprep.subr.bf16.mxu0 0
    %2285 = vmatpush1.bf16.xpose.msra.mxu0 0
    %2286 = vmatprep.subr.bf16.mxu0 0
    %2287 = vmatpush1.bf16.xpose.msra.mxu0 0
    %2288 = vmatprep.subr.bf16.mxu0 0
    %2289 = vmatpush1.bf16.xpose.msra.mxu0 0
    %2290 = vmatprep.subr.bf16.mxu0 0
    %2291 = vmatpush1.bf16.xpose.msra.mxu0 0
    %2292 = vmatprep.subr.bf16.mxu0 0
    %2293 = vmatpush1.bf16.xpose.msra.mxu0 0
    %2294 = vmatprep.subr.bf16.mxu0 0
    %2295 = vmatpush1.bf16.xpose.msra.mxu0 0
    %2296 = vmatprep.subr.bf16.mxu0 0
    %2297 = vmatpush1.bf16.xpose.msra.mxu0 0
    %2298 = vmatprep.subr.bf16.mxu0 0
    %2299 = vmatpush1.bf16.xpose.msra.mxu0 0
    %2300 = vmatprep.subr.bf16.mxu0 0
    %2301 = vmatpush1.bf16.xpose.msra.mxu0 0
    %2302 = vmatprep.mubr.bf16.mxu0 0
    %2303 = vmatmul.mubr.bf16.gmra.mrb[0].mxu0 %v2262
    %v2304 = vpop.f32.mrb[0].mxu0
    %v2305 = vadd.f32 %v2259, %v2304
    %v2306 = vpop.f32.mrb[0].mxu0
    %v2307 = vpop.f32.mrb[0].mxu0
    %v2308 = vpop.f32.mrb[0].mxu0
    %2309 = vdwg.mxu0
    %v2310 = vld [vmem:[%s3] sm:$0x1]
    %vm2311 = vcmp.ne.s32.totalorder %v2310, 0
    %v2312 = vsel %vm2311, 1, 0
    %v2313 = vcvt.s32.f32 %v2312
    %v2314 = vlaneseq
    %v2315 = vshrl.u32 %v2314, 7
    %vm2316 = vcmask 258048
    %v2317 = vsel %vm2316, %v2305, -inf
    %v2318 = vrot.slane %v2317, 4
    %v2319 = vmax.f32 %v2317, %v2318
    %v2320 = vrot.slane %v2319, 2
    %v2321 = vmax.f32 %v2319, %v2320
    %v2322 = vrot.slane %v2321, 1
    %v2323 = vmax.f32 %v2321, %v2322
    %v2324 = vsub.f32 %v2305, %v2323
    %v2325 = vmul.f32 %v2324, 1.442695
    %v2326 = vpow.pop %v2325
    %v2327 = vsel %vm2316, %v2326, 0.0
    %v2328 = vrot.slane %v2327, 4
    %v2329 = vadd.f32 %v2327, %v2328
    %v2330 = vrot.slane %v2329, 2
    %v2331 = vadd.f32 %v2329, %v2330
    %v2332 = vrot.slane %v2331, 1
    %v2333 = vadd.f32 %v2331, %v2332
    %v2334 = vlog2.pop %v2333
    %v2335 = vmul.f32 %v2334, 0.6931472
    %v2336 = vadd.f32 %v2335, %v2323
    %v2337 = vlaneseq
    %v2338 = vshrl.u32 %v2337, 7
    %v2339 = vsub.s32 0, %v2338
    %v2340 = vrot.slane %v2310, %v2339
    %vm2341 = vcmp.eq.s32.totalorder %v2315, %v2340
    %v2342 = vsel %vm2341, %v2305, 0.0
    %v2343 = vsel %vm2316, %v2342, 0.0
    %v2344 = vrot.slane %v2343, 4
    %v2345 = vadd.f32 %v2343, %v2344
    %v2346 = vrot.slane %v2345, 2
    %v2347 = vadd.f32 %v2345, %v2346
    %v2348 = vrot.slane %v2347, 1
    %v2349 = vadd.f32 %v2347, %v2348
    %v2350 = vsub.f32 %v2336, %v2349
    %v2351 = vmul.f32 %v2350, %v2313
    %vm2352 = vcmask 253952
    %v2353 = vsel %vm2352, %v2351, 0.0
    %2354 = vadd.xlane.f32.xlu0 %v2353
    %v2355 = vpop.xlane.xlu0 %2354
    %v2356 = vrot.slane %v2355, 4
    %v2357 = vadd.f32 %v2355, %v2356
    %v2358 = vrot.slane %v2357, 2
    %v2359 = vadd.f32 %v2357, %v2358
    %v2360 = vrot.slane %v2359, 1
    %v2361 = vadd.f32 %v2359, %v2360
    %s2362 = vtos %v2361
    %v2363 = vstv %s2362
    %v2364 = vsel %vm2352, %v2313, 0.0
    %2365 = vadd.xlane.f32.xlu0 %v2364
    %v2366 = vpop.xlane.xlu0 %2365
    %v2367 = vrot.slane %v2366, 4
    %v2368 = vadd.f32 %v2366, %v2367
    %v2369 = vrot.slane %v2368, 2
    %v2370 = vadd.f32 %v2368, %v2369
    %v2371 = vrot.slane %v2370, 1
    %v2372 = vadd.f32 %v2370, %v2371
    %s2373 = vtos %v2372
    %v2374 = vstv %s2373
    %v2375 = vmax.f32 %v2374, 1.0
    %v2376 = vrcp.pop %v2375
    %v2377 = vmul.f32 %v2363, %v2376
    %vm2378 = vcmask 0
    %2379 = vst.msk [vmem:[#allocation8] sm:$0x1] %vm2378, %v2377
    %vm2380 = vcmp.eq.f32.partialorder %v2305, %v2323
    %v2381 = vcvt.s32.f32 %v2315
    %v2382 = vsel %vm2380, %v2381, 5.0
    %v2383 = vsel %vm2316, %v2382, inf
    %v2384 = vrot.slane %v2383, 4
    %v2385 = vmin.f32 %v2383, %v2384
    %v2386 = vrot.slane %v2385, 2
    %v2387 = vmin.f32 %v2385, %v2386
    %v2388 = vrot.slane %v2387, 1
    %v2389 = vmin.f32 %v2387, %v2388
    %v2390 = vcvt.f32.s32.to.zero.pseudo %v2389
    %2391 = vst.msk [vmem:[%s23] sm:$0x1] %vm2352, %v2390
    // Predicated region
    $region102: #{bert_forward.1} parent=1 // pred_check
      _
    $region103: #{bert_forward.1} parent=1 // pred_check_branch
      %2393 = sbr.rel (0) target = $region105
    $region104: #{bert_forward.1} parent=1 // pred_region
      %s2395 = ssub.s32 16, 16
      %2396 = vsyncadd [#allocation4], %s2395
      %s2398 = sshll.u32 [#allocation8], 4
      %s2399 = int_to_ptr.vmem [resolvable:$true] %s2398
      %2401 = dma.vmem_to_hbm [thread:$0]  %s2399, 16, %s22, [#allocation4]
    $region105: #{bert_forward.1} parent=1 // pred_fallthru
      _
    // Predicated region
    $region106: #{bert_forward.1} parent=1 // pred_check
      _
    $region107: #{bert_forward.1} parent=1 // pred_check_branch
      %2403 = sbr.rel (0) target = $region109
    $region108: #{bert_forward.1} parent=1 // pred_region
      _
    $region109: #{bert_forward.1} parent=1 // pred_fallthru
      _
    // Predicated region
    $region110: #{bert_forward.1} parent=1 // pred_check
      _
    $region111: #{bert_forward.1} parent=1 // pred_check_branch
      %2405 = sbr.rel (0) target = $region113
    $region112: #{bert_forward.1} parent=1 // pred_region
      %2406 = dma.done [#allocation4], 16
    $region113: #{bert_forward.1} parent=1 // pred_fallthru
      _
    // Predicated region
    $region114: #{bert_forward.1} parent=1 // pred_check
      _
    $region115: #{bert_forward.1} parent=1 // pred_check_branch
      %2408 = sbr.rel (0) target = $region117
    $region116: #{bert_forward.1} parent=1 // pred_region
      _
    $region117: #{bert_forward.1} parent=1 // pred_fallthru
      _
    %2409 = vsyncpa [#allocation3], 1
    %2410 = vsyncpa [#allocation6], 1
    %2411 = vsyncpa [#allocation4], 1

</llo_original>
